<compile_context>
chip_gen: v5e
topology: v5e:2x2
jax: 0.10.0
libtpu: 0.0.40
codegen_flags: <defaults>
</compile_context>

<pallas_src>
import functools

import jax
import jax.numpy as jnp
from jax.experimental import pallas as pl
from jax.experimental.pallas import tpu as pltpu

# ------------------------- config (small, deterministic) -------------------------
HIDDEN = 32        # config.hidden_size
LSTM_HIDDEN = 32   # config.lstm_hidden_dim
LSTM_LAYERS = 2    # config.lstm_layers
BATCH = 2
SEQ = 8


# ------------------------------ fused Pallas kernel -------------------------------
def lstm_encoder_kernel(
    lens_ref, x_ref,
    wih0_ref, whhf0_ref, whhb0_ref, b0_ref,
    wih1_ref, whhf1_ref, whhb1_ref, b1_ref,
    wproj_ref, bproj_ref, wpool_ref, bpool_ref,
    seq_ref, pool_ref,
    l0_scr, l1_scr,
    *, T, B, H,
):
    f32 = jnp.float32
    lens = lens_ref[...]                     # (B, 1) int32, loaded once

    def bilstm_layer(x_all, wih_ref, whhf_ref, whhb_ref, b_ref, out_scr):
        # Hoisted input projection for BOTH directions: (T*B, Din) @ (Din, 8H) + b.
        gx = jnp.dot(x_all, wih_ref[...], preferred_element_type=f32) + b_ref[...]
        whh_f = whhf_ref[...]                # (H, 4H)
        whh_b = whhb_ref[...]                # (H, 4H)

        def cell(gx_t, h, c, whh):
            gates = gx_t + jnp.dot(h, whh, preferred_element_type=f32)   # (B, 4H)
            # Nonlinearities over the full 128-lane gates vreg, then per-gate slices.
            sig = jax.nn.sigmoid(gates)
            tnh = jnp.tanh(gates)
            i_g = sig[:, 0:H]
            f_g = sig[:, H:2 * H]
            g_g = tnh[:, 2 * H:3 * H]
            o_g = sig[:, 3 * H:4 * H]
            c_new = f_g * c + i_g * g_g
            h_new = o_g * jnp.tanh(c_new)
            return h_new, c_new

        h_f = jnp.zeros((B, H), f32)
        c_f = jnp.zeros((B, H), f32)
        h_b = jnp.zeros((B, H), f32)
        c_b = jnp.zeros((B, H), f32)

        for s in range(T):                   # static unroll (T is small)
            # ---- forward direction, timestep t = s ----
            t = s
            hn, cn = cell(gx[t * B:(t + 1) * B, 0:4 * H], h_f, c_f, whh_f)
            valid = lens > t                 # (B, 1) bool
            h_f = jnp.where(valid, hn, h_f)
            c_f = jnp.where(valid, cn, c_f)
            out_scr[t * B:(t + 1) * B, 0:H] = jnp.where(valid, hn, 0.0)
            # ---- backward direction, timestep t = T - 1 - s ----
            t = T - 1 - s
            hn, cn = cell(gx[t * B:(t + 1) * B, 4 * H:8 * H], h_b, c_b, whh_b)
            valid = lens > t
            h_b = jnp.where(valid, hn, h_b)
            c_b = jnp.where(valid, cn, c_b)
            out_scr[t * B:(t + 1) * B, H:2 * H] = jnp.where(valid, hn, 0.0)

    # Layer 0 (input: embeddings), layer 1 (input: layer-0 bidirectional output).
    bilstm_layer(x_ref[...], wih0_ref, whhf0_ref, whhb0_ref, b0_ref, l0_scr)
    bilstm_layer(l0_scr[...], wih1_ref, whhf1_ref, whhb1_ref, b1_ref, l1_scr)

    # Projection over all timesteps at once: (T*B, 2H) @ (2H, HIDDEN) + b.
    proj = jnp.dot(l1_scr[...], wproj_ref[...], preferred_element_type=f32) + bproj_ref[...]
    seq_ref[...] = proj                      # single bulk store (time-major rows t*B + b)

    # Pooler on the t = 0 (CLS) rows: Linear + Tanh.
    cls = proj[0:B, :]
    pool_ref[...] = jnp.tanh(
        jnp.dot(cls, wpool_ref[...], preferred_element_type=f32) + bpool_ref[...]
    )


# ------------------------------ wrapper --------------------------------------------
def lstm_encoder_forward(inputs_embeds, attention_mask, params):
    """Mirrors LSTMEncoder.forward. inputs_embeds: (B, T, D); attention_mask: (B, T)."""
    B, T, D = inputs_embeds.shape
    H = LSTM_HIDDEN

    if attention_mask is None:
        lengths = jnp.full((B,), T, dtype=jnp.int32)
    else:
        lengths = jnp.sum(attention_mask, axis=1).astype(jnp.int32)
    lengths_col = lengths[:, None]                                   # (B, 1)

    # Time-major, flattened to (T*B, D): row index = t*B + b (layout plumbing in XLA).
    x2d = jnp.transpose(inputs_embeds, (1, 0, 2)).reshape(T * B, D).astype(jnp.float32)

    layer0, layer1 = params["lstm"]
    flat_weights = (*layer0, *layer1, *params["projection"], *params["pooler"])

    kernel = functools.partial(lstm_encoder_kernel, T=T, B=B, H=H)
    seq2d, pooled = pl.pallas_call(
        kernel,
        out_shape=(
            jax.ShapeDtypeStruct((T * B, HIDDEN), jnp.float32),
            jax.ShapeDtypeStruct((B, HIDDEN), jnp.float32),
        ),
        scratch_shapes=[
            pltpu.VMEM((T * B, 2 * H), jnp.float32),   # layer-0 bidirectional output
            pltpu.VMEM((T * B, 2 * H), jnp.float32),   # layer-1 bidirectional output
        ],
    )(lengths_col, x2d, *flat_weights)

    sequence_output = seq2d.reshape(T, B, HIDDEN).transpose(1, 0, 2)  # (B, T, D)
    return {"last_hidden_state": sequence_output, "pooler_output": pooled}


# ------------------------------ parameter init --------------------------------------
def init_params(key):
    bound = 1.0 / (LSTM_HIDDEN ** 0.5)

    def uniform(k, shape):
        return jax.random.uniform(k, shape, jnp.float32, -bound, bound)

    layers = []
    for l in range(LSTM_LAYERS):
        din = HIDDEN if l == 0 else 2 * LSTM_HIDDEN
        dirs = {}
        for dname in ("fw", "bw"):
            key, k1, k2, k3, k4 = jax.random.split(key, 5)
            w_ih = uniform(k1, (4 * LSTM_HIDDEN, din))          # PyTorch (4H, Din), gates i,f,g,o
            w_hh = uniform(k2, (4 * LSTM_HIDDEN, LSTM_HIDDEN))  # (4H, H)
            b_ih = uniform(k3, (4 * LSTM_HIDDEN,))
            b_hh = uniform(k4, (4 * LSTM_HIDDEN,))
            dirs[dname] = (w_ih, w_hh, b_ih + b_hh)
        wih_cat = jnp.concatenate([dirs["fw"][0].T, dirs["bw"][0].T], axis=1)   # (Din, 8H)
        b_cat = jnp.concatenate([dirs["fw"][2], dirs["bw"][2]])[None, :]        # (1, 8H)
        layers.append((wih_cat, dirs["fw"][1].T, dirs["bw"][1].T, b_cat))

    key, k1, k2, k3, k4 = jax.random.split(key, 5)
    w_proj = uniform(k1, (HIDDEN, 2 * LSTM_HIDDEN))             # Linear(2H -> D)
    b_proj = uniform(k2, (HIDDEN,))
    w_pool = uniform(k3, (HIDDEN, HIDDEN))                      # Linear(D -> D)
    b_pool = uniform(k4, (HIDDEN,))
    return {
        "lstm": layers,
        "projection": (w_proj.T, b_proj[None, :]),
        "pooler": (w_pool.T, b_pool[None, :]),
    }


# ----------------------------------- main --------------------------------------------
if __name__ == "__main__":
    key = jax.random.PRNGKey(0)
    k_x, k_p = jax.random.split(key)

    inputs_embeds = jax.random.normal(k_x, (BATCH, SEQ, HIDDEN), jnp.float32)
    # lengths [8, 5] -> padded positions get zero LSTM output (then projection bias).
    lengths = jnp.array([SEQ, 5], dtype=jnp.int32)
    attention_mask = (jnp.arange(SEQ)[None, :] < lengths[:, None]).astype(jnp.float32)

    params = init_params(k_p)

    out = lstm_encoder_forward(inputs_embeds, attention_mask, params)
    jax.block_until_ready(out)

    assert out["last_hidden_state"].shape == (BATCH, SEQ, HIDDEN)
    assert out["pooler_output"].shape == (BATCH, HIDDEN)
    print("KERNEL_OK")
</pallas_src>

<mosaic_0001>
module attributes {stable_mosaic.version = 11 : i64} {
  func.func @lstm_encoder_kernel(%arg0: memref<2x1xi32, #tpu.memory_space<vmem>>, %arg1: memref<16x32xf32, #tpu.memory_space<vmem>>, %arg2: memref<32x256xf32, #tpu.memory_space<vmem>>, %arg3: memref<32x128xf32, #tpu.memory_space<vmem>>, %arg4: memref<32x128xf32, #tpu.memory_space<vmem>>, %arg5: memref<1x256xf32, #tpu.memory_space<vmem>>, %arg6: memref<64x256xf32, #tpu.memory_space<vmem>>, %arg7: memref<32x128xf32, #tpu.memory_space<vmem>>, %arg8: memref<32x128xf32, #tpu.memory_space<vmem>>, %arg9: memref<1x256xf32, #tpu.memory_space<vmem>>, %arg10: memref<64x32xf32, #tpu.memory_space<vmem>>, %arg11: memref<1x32xf32, #tpu.memory_space<vmem>>, %arg12: memref<32x32xf32, #tpu.memory_space<vmem>>, %arg13: memref<1x32xf32, #tpu.memory_space<vmem>>, %arg14: memref<16x32xf32, #tpu.memory_space<vmem>>, %arg15: memref<2x32xf32, #tpu.memory_space<vmem>>, %arg16: memref<16x64xf32, #tpu.memory_space<vmem>>, %arg17: memref<16x64xf32, #tpu.memory_space<vmem>>) attributes {dimension_semantics = [], scalar_prefetch = 0 : i64, scratch_operands = 2 : i64, tpu.core_type = #tpu.core_type<tc>} {
    %c0 = arith.constant 0 : index
    %c0_0 = arith.constant 0 : index
    %0 = vector.load %arg0[%c0, %c0_0] : memref<2x1xi32, #tpu.memory_space<vmem>>, vector<2x1xi32>
    %c0_1 = arith.constant 0 : index
    %c0_2 = arith.constant 0 : index
    %1 = vector.load %arg1[%c0_1, %c0_2] : memref<16x32xf32, #tpu.memory_space<vmem>>, vector<16x32xf32>
    %c0_3 = arith.constant 0 : index
    %c0_4 = arith.constant 0 : index
    %2 = vector.load %arg2[%c0_3, %c0_4] : memref<32x256xf32, #tpu.memory_space<vmem>>, vector<32x256xf32>
    %cst = arith.constant dense<0.000000e+00> : vector<16x256xf32>
    %3 = tpu.matmul %1, %2, %cst {dimension_numbers = #tpu.dot_dimension_numbers<[1], [0], [0], [1], [0, 0, 1, 1], [], []>} : vector<16x32xf32>, vector<32x256xf32>, vector<16x256xf32> -> vector<16x256xf32>
    %c0_5 = arith.constant 0 : index
    %c0_6 = arith.constant 0 : index
    %4 = vector.load %arg5[%c0_5, %c0_6] : memref<1x256xf32, #tpu.memory_space<vmem>>, vector<1x256xf32>
    %5 = vector.broadcast %4 : vector<1x256xf32> to vector<16x256xf32>
    %6 = arith.addf %3, %5 : vector<16x256xf32>
    %c0_7 = arith.constant 0 : index
    %c0_8 = arith.constant 0 : index
    %7 = vector.load %arg3[%c0_7, %c0_8] : memref<32x128xf32, #tpu.memory_space<vmem>>, vector<32x128xf32>
    %c0_9 = arith.constant 0 : index
    %c0_10 = arith.constant 0 : index
    %8 = vector.load %arg4[%c0_9, %c0_10] : memref<32x128xf32, #tpu.memory_space<vmem>>, vector<32x128xf32>
    %cst_11 = arith.constant 0.000000e+00 : f32
    %9 = vector.broadcast %cst_11 : f32 to vector<2x32xf32>
    %cst_12 = arith.constant 0.000000e+00 : f32
    %10 = vector.broadcast %cst_12 : f32 to vector<2x32xf32>
    %cst_13 = arith.constant 0.000000e+00 : f32
    %11 = vector.broadcast %cst_13 : f32 to vector<2x32xf32>
    %cst_14 = arith.constant 0.000000e+00 : f32
    %12 = vector.broadcast %cst_14 : f32 to vector<2x32xf32>
    %13 = vector.extract_strided_slice %6 {offsets = [0, 0], sizes = [2, 128], strides = [1, 1]} : vector<16x256xf32> to vector<2x128xf32>
    %cst_15 = arith.constant dense<0.000000e+00> : vector<2x128xf32>
    %14 = tpu.matmul %9, %7, %cst_15 {dimension_numbers = #tpu.dot_dimension_numbers<[1], [0], [0], [1], [0, 0, 1, 1], [], []>} : vector<2x32xf32>, vector<32x128xf32>, vector<2x128xf32> -> vector<2x128xf32>
    %15 = arith.addf %13, %14 : vector<2x128xf32>
    %16 = arith.negf %15 : vector<2x128xf32>
    %17 = math.exp %16 : vector<2x128xf32>
    %cst_16 = arith.constant 1.000000e+00 : f32
    %18 = vector.broadcast %cst_16 : f32 to vector<2x128xf32>
    %19 = arith.addf %18, %17 : vector<2x128xf32>
    %20 = arith.divf %18, %19 : vector<2x128xf32>
    %21 = math.tanh %15 : vector<2x128xf32>
    %22 = vector.extract_strided_slice %20 {offsets = [0, 0], sizes = [2, 32], strides = [1, 1]} : vector<2x128xf32> to vector<2x32xf32>
    %23 = vector.extract_strided_slice %20 {offsets = [0, 32], sizes = [2, 32], strides = [1, 1]} : vector<2x128xf32> to vector<2x32xf32>
    %24 = vector.extract_strided_slice %21 {offsets = [0, 64], sizes = [2, 32], strides = [1, 1]} : vector<2x128xf32> to vector<2x32xf32>
    %25 = vector.extract_strided_slice %20 {offsets = [0, 96], sizes = [2, 32], strides = [1, 1]} : vector<2x128xf32> to vector<2x32xf32>
    %26 = arith.mulf %23, %10 : vector<2x32xf32>
    %27 = arith.mulf %22, %24 : vector<2x32xf32>
    %28 = arith.addf %26, %27 : vector<2x32xf32>
    %29 = math.tanh %28 : vector<2x32xf32>
    %30 = arith.mulf %25, %29 : vector<2x32xf32>
    %c0_i32 = arith.constant 0 : i32
    %31 = vector.broadcast %c0_i32 : i32 to vector<2x1xi32>
    %32 = arith.cmpi sgt, %0, %31 : vector<2x1xi32>
    %33 = vector.shape_cast %32 : vector<2x1xi1> to vector<2x1xi1>
    %34 = vector.broadcast %33 : vector<2x1xi1> to vector<2x32xi1>
    %35 = arith.select %34, %30, %9 : vector<2x32xi1>, vector<2x32xf32>
    %36 = vector.shape_cast %32 : vector<2x1xi1> to vector<2x1xi1>
    %37 = vector.broadcast %36 : vector<2x1xi1> to vector<2x32xi1>
    %38 = arith.select %37, %28, %10 : vector<2x32xi1>, vector<2x32xf32>
    %cst_17 = arith.constant 0.000000e+00 : f32
    %39 = vector.shape_cast %32 : vector<2x1xi1> to vector<2x1xi1>
    %40 = vector.broadcast %39 : vector<2x1xi1> to vector<2x32xi1>
    %41 = vector.broadcast %cst_17 : f32 to vector<2x32xf32>
    %42 = arith.select %40, %30, %41 : vector<2x32xi1>, vector<2x32xf32>
    %c0_18 = arith.constant 0 : index
    %c0_19 = arith.constant 0 : index
    %43 = vector.load %arg16[%c0_18, %c0_19] : memref<16x64xf32, #tpu.memory_space<vmem>>, vector<2x32xf32>
    tpu.vector_store %arg16[%c0_18, %c0_19], %42 {strides = array<i32>} : memref<16x64xf32, #tpu.memory_space<vmem>>, vector<2x32xf32>,
    %44 = vector.extract_strided_slice %6 {offsets = [14, 128], sizes = [2, 128], strides = [1, 1]} : vector<16x256xf32> to vector<2x128xf32>
    %cst_20 = arith.constant dense<0.000000e+00> : vector<2x128xf32>
    %45 = tpu.matmul %11, %8, %cst_20 {dimension_numbers = #tpu.dot_dimension_numbers<[1], [0], [0], [1], [0, 0, 1, 1], [], []>} : vector<2x32xf32>, vector<32x128xf32>, vector<2x128xf32> -> vector<2x128xf32>
    %46 = arith.addf %44, %45 : vector<2x128xf32>
    %47 = arith.negf %46 : vector<2x128xf32>
    %48 = math.exp %47 : vector<2x128xf32>
    %cst_21 = arith.constant 1.000000e+00 : f32
    %49 = vector.broadcast %cst_21 : f32 to vector<2x128xf32>
    %50 = arith.addf %49, %48 : vector<2x128xf32>
    %51 = arith.divf %49, %50 : vector<2x128xf32>
    %52 = math.tanh %46 : vector<2x128xf32>
    %53 = vector.extract_strided_slice %51 {offsets = [0, 0], sizes = [2, 32], strides = [1, 1]} : vector<2x128xf32> to vector<2x32xf32>
    %54 = vector.extract_strided_slice %51 {offsets = [0, 32], sizes = [2, 32], strides = [1, 1]} : vector<2x128xf32> to vector<2x32xf32>
    %55 = vector.extract_strided_slice %52 {offsets = [0, 64], sizes = [2, 32], strides = [1, 1]} : vector<2x128xf32> to vector<2x32xf32>
    %56 = vector.extract_strided_slice %51 {offsets = [0, 96], sizes = [2, 32], strides = [1, 1]} : vector<2x128xf32> to vector<2x32xf32>
    %57 = arith.mulf %54, %12 : vector<2x32xf32>
    %58 = arith.mulf %53, %55 : vector<2x32xf32>
    %59 = arith.addf %57, %58 : vector<2x32xf32>
    %60 = math.tanh %59 : vector<2x32xf32>
    %61 = arith.mulf %56, %60 : vector<2x32xf32>
    %c7_i32 = arith.constant 7 : i32
    %62 = vector.broadcast %c7_i32 : i32 to vector<2x1xi32>
    %63 = arith.cmpi sgt, %0, %62 : vector<2x1xi32>
    %64 = vector.shape_cast %63 : vector<2x1xi1> to vector<2x1xi1>
    %65 = vector.broadcast %64 : vector<2x1xi1> to vector<2x32xi1>
    %66 = arith.select %65, %61, %11 : vector<2x32xi1>, vector<2x32xf32>
    %67 = vector.shape_cast %63 : vector<2x1xi1> to vector<2x1xi1>
    %68 = vector.broadcast %67 : vector<2x1xi1> to vector<2x32xi1>
    %69 = arith.select %68, %59, %12 : vector<2x32xi1>, vector<2x32xf32>
    %cst_22 = arith.constant 0.000000e+00 : f32
    %70 = vector.shape_cast %63 : vector<2x1xi1> to vector<2x1xi1>
    %71 = vector.broadcast %70 : vector<2x1xi1> to vector<2x32xi1>
    %72 = vector.broadcast %cst_22 : f32 to vector<2x32xf32>
    %73 = arith.select %71, %61, %72 : vector<2x32xi1>, vector<2x32xf32>
    %c14 = arith.constant 14 : index
    %c32 = arith.constant 32 : index
    %74 = vector.load %arg16[%c14, %c32] : memref<16x64xf32, #tpu.memory_space<vmem>>, vector<2x32xf32>
    tpu.vector_store %arg16[%c14, %c32], %73 {strides = array<i32>} : memref<16x64xf32, #tpu.memory_space<vmem>>, vector<2x32xf32>,
    %75 = vector.extract_strided_slice %6 {offsets = [2, 0], sizes = [2, 128], strides = [1, 1]} : vector<16x256xf32> to vector<2x128xf32>
    %cst_23 = arith.constant dense<0.000000e+00> : vector<2x128xf32>
    %76 = tpu.matmul %35, %7, %cst_23 {dimension_numbers = #tpu.dot_dimension_numbers<[1], [0], [0], [1], [0, 0, 1, 1], [], []>} : vector<2x32xf32>, vector<32x128xf32>, vector<2x128xf32> -> vector<2x128xf32>
    %77 = arith.addf %75, %76 : vector<2x128xf32>
    %78 = arith.negf %77 : vector<2x128xf32>
    %79 = math.exp %78 : vector<2x128xf32>
    %cst_24 = arith.constant 1.000000e+00 : f32
    %80 = vector.broadcast %cst_24 : f32 to vector<2x128xf32>
    %81 = arith.addf %80, %79 : vector<2x128xf32>
    %82 = arith.divf %80, %81 : vector<2x128xf32>
    %83 = math.tanh %77 : vector<2x128xf32>
    %84 = vector.extract_strided_slice %82 {offsets = [0, 0], sizes = [2, 32], strides = [1, 1]} : vector<2x128xf32> to vector<2x32xf32>
    %85 = vector.extract_strided_slice %82 {offsets = [0, 32], sizes = [2, 32], strides = [1, 1]} : vector<2x128xf32> to vector<2x32xf32>
    %86 = vector.extract_strided_slice %83 {offsets = [0, 64], sizes = [2, 32], strides = [1, 1]} : vector<2x128xf32> to vector<2x32xf32>
    %87 = vector.extract_strided_slice %82 {offsets = [0, 96], sizes = [2, 32], strides = [1, 1]} : vector<2x128xf32> to vector<2x32xf32>
    %88 = arith.mulf %85, %38 : vector<2x32xf32>
    %89 = arith.mulf %84, %86 : vector<2x32xf32>
    %90 = arith.addf %88, %89 : vector<2x32xf32>
    %91 = math.tanh %90 : vector<2x32xf32>
    %92 = arith.mulf %87, %91 : vector<2x32xf32>
    %c1_i32 = arith.constant 1 : i32
    %93 = vector.broadcast %c1_i32 : i32 to vector<2x1xi32>
    %94 = arith.cmpi sgt, %0, %93 : vector<2x1xi32>
    %95 = vector.shape_cast %94 : vector<2x1xi1> to vector<2x1xi1>
    %96 = vector.broadcast %95 : vector<2x1xi1> to vector<2x32xi1>
    %97 = arith.select %96, %92, %35 : vector<2x32xi1>, vector<2x32xf32>
    %98 = vector.shape_cast %94 : vector<2x1xi1> to vector<2x1xi1>
    %99 = vector.broadcast %98 : vector<2x1xi1> to vector<2x32xi1>
    %100 = arith.select %99, %90, %38 : vector<2x32xi1>, vector<2x32xf32>
    %cst_25 = arith.constant 0.000000e+00 : f32
    %101 = vector.shape_cast %94 : vector<2x1xi1> to vector<2x1xi1>
    %102 = vector.broadcast %101 : vector<2x1xi1> to vector<2x32xi1>
    %103 = vector.broadcast %cst_25 : f32 to vector<2x32xf32>
    %104 = arith.select %102, %92, %103 : vector<2x32xi1>, vector<2x32xf32>
    %c2 = arith.constant 2 : index
    %c0_26 = arith.constant 0 : index
    %105 = vector.load %arg16[%c2, %c0_26] : memref<16x64xf32, #tpu.memory_space<vmem>>, vector<2x32xf32>
    tpu.vector_store %arg16[%c2, %c0_26], %104 {strides = array<i32>} : memref<16x64xf32, #tpu.memory_space<vmem>>, vector<2x32xf32>,
    %106 = vector.extract_strided_slice %6 {offsets = [12, 128], sizes = [2, 128], strides = [1, 1]} : vector<16x256xf32> to vector<2x128xf32>
    %cst_27 = arith.constant dense<0.000000e+00> : vector<2x128xf32>
    %107 = tpu.matmul %66, %8, %cst_27 {dimension_numbers = #tpu.dot_dimension_numbers<[1], [0], [0], [1], [0, 0, 1, 1], [], []>} : vector<2x32xf32>, vector<32x128xf32>, vector<2x128xf32> -> vector<2x128xf32>
    %108 = arith.addf %106, %107 : vector<2x128xf32>
    %109 = arith.negf %108 : vector<2x128xf32>
    %110 = math.exp %109 : vector<2x128xf32>
    %cst_28 = arith.constant 1.000000e+00 : f32
    %111 = vector.broadcast %cst_28 : f32 to vector<2x128xf32>
    %112 = arith.addf %111, %110 : vector<2x128xf32>
    %113 = arith.divf %111, %112 : vector<2x128xf32>
    %114 = math.tanh %108 : vector<2x128xf32>
    %115 = vector.extract_strided_slice %113 {offsets = [0, 0], sizes = [2, 32], strides = [1, 1]} : vector<2x128xf32> to vector<2x32xf32>
    %116 = vector.extract_strided_slice %113 {offsets = [0, 32], sizes = [2, 32], strides = [1, 1]} : vector<2x128xf32> to vector<2x32xf32>
    %117 = vector.extract_strided_slice %114 {offsets = [0, 64], sizes = [2, 32], strides = [1, 1]} : vector<2x128xf32> to vector<2x32xf32>
    %118 = vector.extract_strided_slice %113 {offsets = [0, 96], sizes = [2, 32], strides = [1, 1]} : vector<2x128xf32> to vector<2x32xf32>
    %119 = arith.mulf %116, %69 : vector<2x32xf32>
    %120 = arith.mulf %115, %117 : vector<2x32xf32>
    %121 = arith.addf %119, %120 : vector<2x32xf32>
    %122 = math.tanh %121 : vector<2x32xf32>
    %123 = arith.mulf %118, %122 : vector<2x32xf32>
    %c6_i32 = arith.constant 6 : i32
    %124 = vector.broadcast %c6_i32 : i32 to vector<2x1xi32>
    %125 = arith.cmpi sgt, %0, %124 : vector<2x1xi32>
    %126 = vector.shape_cast %125 : vector<2x1xi1> to vector<2x1xi1>
    %127 = vector.broadcast %126 : vector<2x1xi1> to vector<2x32xi1>
    %128 = arith.select %127, %123, %66 : vector<2x32xi1>, vector<2x32xf32>
    %129 = vector.shape_cast %125 : vector<2x1xi1> to vector<2x1xi1>
    %130 = vector.broadcast %129 : vector<2x1xi1> to vector<2x32xi1>
    %131 = arith.select %130, %121, %69 : vector<2x32xi1>, vector<2x32xf32>
    %cst_29 = arith.constant 0.000000e+00 : f32
    %132 = vector.shape_cast %125 : vector<2x1xi1> to vector<2x1xi1>
    %133 = vector.broadcast %132 : vector<2x1xi1> to vector<2x32xi1>
    %134 = vector.broadcast %cst_29 : f32 to vector<2x32xf32>
    %135 = arith.select %133, %123, %134 : vector<2x32xi1>, vector<2x32xf32>
    %c12 = arith.constant 12 : index
    %c32_30 = arith.constant 32 : index
    %136 = vector.load %arg16[%c12, %c32_30] : memref<16x64xf32, #tpu.memory_space<vmem>>, vector<2x32xf32>
    tpu.vector_store %arg16[%c12, %c32_30], %135 {strides = array<i32>} : memref<16x64xf32, #tpu.memory_space<vmem>>, vector<2x32xf32>,
    %137 = vector.extract_strided_slice %6 {offsets = [4, 0], sizes = [2, 128], strides = [1, 1]} : vector<16x256xf32> to vector<2x128xf32>
    %cst_31 = arith.constant dense<0.000000e+00> : vector<2x128xf32>
    %138 = tpu.matmul %97, %7, %cst_31 {dimension_numbers = #tpu.dot_dimension_numbers<[1], [0], [0], [1], [0, 0, 1, 1], [], []>} : vector<2x32xf32>, vector<32x128xf32>, vector<2x128xf32> -> vector<2x128xf32>
    %139 = arith.addf %137, %138 : vector<2x128xf32>
    %140 = arith.negf %139 : vector<2x128xf32>
    %141 = math.exp %140 : vector<2x128xf32>
    %cst_32 = arith.constant 1.000000e+00 : f32
    %142 = vector.broadcast %cst_32 : f32 to vector<2x128xf32>
    %143 = arith.addf %142, %141 : vector<2x128xf32>
    %144 = arith.divf %142, %143 : vector<2x128xf32>
    %145 = math.tanh %139 : vector<2x128xf32>
    %146 = vector.extract_strided_slice %144 {offsets = [0, 0], sizes = [2, 32], strides = [1, 1]} : vector<2x128xf32> to vector<2x32xf32>
    %147 = vector.extract_strided_slice %144 {offsets = [0, 32], sizes = [2, 32], strides = [1, 1]} : vector<2x128xf32> to vector<2x32xf32>
    %148 = vector.extract_strided_slice %145 {offsets = [0, 64], sizes = [2, 32], strides = [1, 1]} : vector<2x128xf32> to vector<2x32xf32>
    %149 = vector.extract_strided_slice %144 {offsets = [0, 96], sizes = [2, 32], strides = [1, 1]} : vector<2x128xf32> to vector<2x32xf32>
    %150 = arith.mulf %147, %100 : vector<2x32xf32>
    %151 = arith.mulf %146, %148 : vector<2x32xf32>
    %152 = arith.addf %150, %151 : vector<2x32xf32>
    %153 = math.tanh %152 : vector<2x32xf32>
    %154 = arith.mulf %149, %153 : vector<2x32xf32>
    %c2_i32 = arith.constant 2 : i32
    %155 = vector.broadcast %c2_i32 : i32 to vector<2x1xi32>
    %156 = arith.cmpi sgt, %0, %155 : vector<2x1xi32>
    %157 = vector.shape_cast %156 : vector<2x1xi1> to vector<2x1xi1>
    %158 = vector.broadcast %157 : vector<2x1xi1> to vector<2x32xi1>
    %159 = arith.select %158, %154, %97 : vector<2x32xi1>, vector<2x32xf32>
    %160 = vector.shape_cast %156 : vector<2x1xi1> to vector<2x1xi1>
    %161 = vector.broadcast %160 : vector<2x1xi1> to vector<2x32xi1>
    %162 = arith.select %161, %152, %100 : vector<2x32xi1>, vector<2x32xf32>
    %cst_33 = arith.constant 0.000000e+00 : f32
    %163 = vector.shape_cast %156 : vector<2x1xi1> to vector<2x1xi1>
    %164 = vector.broadcast %163 : vector<2x1xi1> to vector<2x32xi1>
    %165 = vector.broadcast %cst_33 : f32 to vector<2x32xf32>
    %166 = arith.select %164, %154, %165 : vector<2x32xi1>, vector<2x32xf32>
    %c4 = arith.constant 4 : index
    %c0_34 = arith.constant 0 : index
    %167 = vector.load %arg16[%c4, %c0_34] : memref<16x64xf32, #tpu.memory_space<vmem>>, vector<2x32xf32>
    tpu.vector_store %arg16[%c4, %c0_34], %166 {strides = array<i32>} : memref<16x64xf32, #tpu.memory_space<vmem>>, vector<2x32xf32>,
    %168 = vector.extract_strided_slice %6 {offsets = [10, 128], sizes = [2, 128], strides = [1, 1]} : vector<16x256xf32> to vector<2x128xf32>
    %cst_35 = arith.constant dense<0.000000e+00> : vector<2x128xf32>
    %169 = tpu.matmul %128, %8, %cst_35 {dimension_numbers = #tpu.dot_dimension_numbers<[1], [0], [0], [1], [0, 0, 1, 1], [], []>} : vector<2x32xf32>, vector<32x128xf32>, vector<2x128xf32> -> vector<2x128xf32>
    %170 = arith.addf %168, %169 : vector<2x128xf32>
    %171 = arith.negf %170 : vector<2x128xf32>
    %172 = math.exp %171 : vector<2x128xf32>
    %cst_36 = arith.constant 1.000000e+00 : f32
    %173 = vector.broadcast %cst_36 : f32 to vector<2x128xf32>
    %174 = arith.addf %173, %172 : vector<2x128xf32>
    %175 = arith.divf %173, %174 : vector<2x128xf32>
    %176 = math.tanh %170 : vector<2x128xf32>
    %177 = vector.extract_strided_slice %175 {offsets = [0, 0], sizes = [2, 32], strides = [1, 1]} : vector<2x128xf32> to vector<2x32xf32>
    %178 = vector.extract_strided_slice %175 {offsets = [0, 32], sizes = [2, 32], strides = [1, 1]} : vector<2x128xf32> to vector<2x32xf32>
    %179 = vector.extract_strided_slice %176 {offsets = [0, 64], sizes = [2, 32], strides = [1, 1]} : vector<2x128xf32> to vector<2x32xf32>
    %180 = vector.extract_strided_slice %175 {offsets = [0, 96], sizes = [2, 32], strides = [1, 1]} : vector<2x128xf32> to vector<2x32xf32>
    %181 = arith.mulf %178, %131 : vector<2x32xf32>
    %182 = arith.mulf %177, %179 : vector<2x32xf32>
    %183 = arith.addf %181, %182 : vector<2x32xf32>
    %184 = math.tanh %183 : vector<2x32xf32>
    %185 = arith.mulf %180, %184 : vector<2x32xf32>
    %c5_i32 = arith.constant 5 : i32
    %186 = vector.broadcast %c5_i32 : i32 to vector<2x1xi32>
    %187 = arith.cmpi sgt, %0, %186 : vector<2x1xi32>
    %188 = vector.shape_cast %187 : vector<2x1xi1> to vector<2x1xi1>
    %189 = vector.broadcast %188 : vector<2x1xi1> to vector<2x32xi1>
    %190 = arith.select %189, %185, %128 : vector<2x32xi1>, vector<2x32xf32>
    %191 = vector.shape_cast %187 : vector<2x1xi1> to vector<2x1xi1>
    %192 = vector.broadcast %191 : vector<2x1xi1> to vector<2x32xi1>
    %193 = arith.select %192, %183, %131 : vector<2x32xi1>, vector<2x32xf32>
    %cst_37 = arith.constant 0.000000e+00 : f32
    %194 = vector.shape_cast %187 : vector<2x1xi1> to vector<2x1xi1>
    %195 = vector.broadcast %194 : vector<2x1xi1> to vector<2x32xi1>
    %196 = vector.broadcast %cst_37 : f32 to vector<2x32xf32>
    %197 = arith.select %195, %185, %196 : vector<2x32xi1>, vector<2x32xf32>
    %c10 = arith.constant 10 : index
    %c32_38 = arith.constant 32 : index
    %198 = vector.load %arg16[%c10, %c32_38] : memref<16x64xf32, #tpu.memory_space<vmem>>, vector<2x32xf32>
    tpu.vector_store %arg16[%c10, %c32_38], %197 {strides = array<i32>} : memref<16x64xf32, #tpu.memory_space<vmem>>, vector<2x32xf32>,
    %199 = vector.extract_strided_slice %6 {offsets = [6, 0], sizes = [2, 128], strides = [1, 1]} : vector<16x256xf32> to vector<2x128xf32>
    %cst_39 = arith.constant dense<0.000000e+00> : vector<2x128xf32>
    %200 = tpu.matmul %159, %7, %cst_39 {dimension_numbers = #tpu.dot_dimension_numbers<[1], [0], [0], [1], [0, 0, 1, 1], [], []>} : vector<2x32xf32>, vector<32x128xf32>, vector<2x128xf32> -> vector<2x128xf32>
    %201 = arith.addf %199, %200 : vector<2x128xf32>
    %202 = arith.negf %201 : vector<2x128xf32>
    %203 = math.exp %202 : vector<2x128xf32>
    %cst_40 = arith.constant 1.000000e+00 : f32
    %204 = vector.broadcast %cst_40 : f32 to vector<2x128xf32>
    %205 = arith.addf %204, %203 : vector<2x128xf32>
    %206 = arith.divf %204, %205 : vector<2x128xf32>
    %207 = math.tanh %201 : vector<2x128xf32>
    %208 = vector.extract_strided_slice %206 {offsets = [0, 0], sizes = [2, 32], strides = [1, 1]} : vector<2x128xf32> to vector<2x32xf32>
    %209 = vector.extract_strided_slice %206 {offsets = [0, 32], sizes = [2, 32], strides = [1, 1]} : vector<2x128xf32> to vector<2x32xf32>
    %210 = vector.extract_strided_slice %207 {offsets = [0, 64], sizes = [2, 32], strides = [1, 1]} : vector<2x128xf32> to vector<2x32xf32>
    %211 = vector.extract_strided_slice %206 {offsets = [0, 96], sizes = [2, 32], strides = [1, 1]} : vector<2x128xf32> to vector<2x32xf32>
    %212 = arith.mulf %209, %162 : vector<2x32xf32>
    %213 = arith.mulf %208, %210 : vector<2x32xf32>
    %214 = arith.addf %212, %213 : vector<2x32xf32>
    %215 = math.tanh %214 : vector<2x32xf32>
    %216 = arith.mulf %211, %215 : vector<2x32xf32>
    %c3_i32 = arith.constant 3 : i32
    %217 = vector.broadcast %c3_i32 : i32 to vector<2x1xi32>
    %218 = arith.cmpi sgt, %0, %217 : vector<2x1xi32>
    %219 = vector.shape_cast %218 : vector<2x1xi1> to vector<2x1xi1>
    %220 = vector.broadcast %219 : vector<2x1xi1> to vector<2x32xi1>
    %221 = arith.select %220, %216, %159 : vector<2x32xi1>, vector<2x32xf32>
    %222 = vector.shape_cast %218 : vector<2x1xi1> to vector<2x1xi1>
    %223 = vector.broadcast %222 : vector<2x1xi1> to vector<2x32xi1>
    %224 = arith.select %223, %214, %162 : vector<2x32xi1>, vector<2x32xf32>
    %cst_41 = arith.constant 0.000000e+00 : f32
    %225 = vector.shape_cast %218 : vector<2x1xi1> to vector<2x1xi1>
    %226 = vector.broadcast %225 : vector<2x1xi1> to vector<2x32xi1>
    %227 = vector.broadcast %cst_41 : f32 to vector<2x32xf32>
    %228 = arith.select %226, %216, %227 : vector<2x32xi1>, vector<2x32xf32>
    %c6 = arith.constant 6 : index
    %c0_42 = arith.constant 0 : index
    %229 = vector.load %arg16[%c6, %c0_42] : memref<16x64xf32, #tpu.memory_space<vmem>>, vector<2x32xf32>
    tpu.vector_store %arg16[%c6, %c0_42], %228 {strides = array<i32>} : memref<16x64xf32, #tpu.memory_space<vmem>>, vector<2x32xf32>,
    %230 = vector.extract_strided_slice %6 {offsets = [8, 128], sizes = [2, 128], strides = [1, 1]} : vector<16x256xf32> to vector<2x128xf32>
    %cst_43 = arith.constant dense<0.000000e+00> : vector<2x128xf32>
    %231 = tpu.matmul %190, %8, %cst_43 {dimension_numbers = #tpu.dot_dimension_numbers<[1], [0], [0], [1], [0, 0, 1, 1], [], []>} : vector<2x32xf32>, vector<32x128xf32>, vector<2x128xf32> -> vector<2x128xf32>
    %232 = arith.addf %230, %231 : vector<2x128xf32>
    %233 = arith.negf %232 : vector<2x128xf32>
    %234 = math.exp %233 : vector<2x128xf32>
    %cst_44 = arith.constant 1.000000e+00 : f32
    %235 = vector.broadcast %cst_44 : f32 to vector<2x128xf32>
    %236 = arith.addf %235, %234 : vector<2x128xf32>
    %237 = arith.divf %235, %236 : vector<2x128xf32>
    %238 = math.tanh %232 : vector<2x128xf32>
    %239 = vector.extract_strided_slice %237 {offsets = [0, 0], sizes = [2, 32], strides = [1, 1]} : vector<2x128xf32> to vector<2x32xf32>
    %240 = vector.extract_strided_slice %237 {offsets = [0, 32], sizes = [2, 32], strides = [1, 1]} : vector<2x128xf32> to vector<2x32xf32>
    %241 = vector.extract_strided_slice %238 {offsets = [0, 64], sizes = [2, 32], strides = [1, 1]} : vector<2x128xf32> to vector<2x32xf32>
    %242 = vector.extract_strided_slice %237 {offsets = [0, 96], sizes = [2, 32], strides = [1, 1]} : vector<2x128xf32> to vector<2x32xf32>
    %243 = arith.mulf %240, %193 : vector<2x32xf32>
    %244 = arith.mulf %239, %241 : vector<2x32xf32>
    %245 = arith.addf %243, %244 : vector<2x32xf32>
    %246 = math.tanh %245 : vector<2x32xf32>
    %247 = arith.mulf %242, %246 : vector<2x32xf32>
    %c4_i32 = arith.constant 4 : i32
    %248 = vector.broadcast %c4_i32 : i32 to vector<2x1xi32>
    %249 = arith.cmpi sgt, %0, %248 : vector<2x1xi32>
    %250 = vector.shape_cast %249 : vector<2x1xi1> to vector<2x1xi1>
    %251 = vector.broadcast %250 : vector<2x1xi1> to vector<2x32xi1>
    %252 = arith.select %251, %247, %190 : vector<2x32xi1>, vector<2x32xf32>
    %253 = vector.shape_cast %249 : vector<2x1xi1> to vector<2x1xi1>
    %254 = vector.broadcast %253 : vector<2x1xi1> to vector<2x32xi1>
    %255 = arith.select %254, %245, %193 : vector<2x32xi1>, vector<2x32xf32>
    %cst_45 = arith.constant 0.000000e+00 : f32
    %256 = vector.shape_cast %249 : vector<2x1xi1> to vector<2x1xi1>
    %257 = vector.broadcast %256 : vector<2x1xi1> to vector<2x32xi1>
    %258 = vector.broadcast %cst_45 : f32 to vector<2x32xf32>
    %259 = arith.select %257, %247, %258 : vector<2x32xi1>, vector<2x32xf32>
    %c8 = arith.constant 8 : index
    %c32_46 = arith.constant 32 : index
    %260 = vector.load %arg16[%c8, %c32_46] : memref<16x64xf32, #tpu.memory_space<vmem>>, vector<2x32xf32>
    tpu.vector_store %arg16[%c8, %c32_46], %259 {strides = array<i32>} : memref<16x64xf32, #tpu.memory_space<vmem>>, vector<2x32xf32>,
    %261 = vector.extract_strided_slice %6 {offsets = [8, 0], sizes = [2, 128], strides = [1, 1]} : vector<16x256xf32> to vector<2x128xf32>
    %cst_47 = arith.constant dense<0.000000e+00> : vector<2x128xf32>
    %262 = tpu.matmul %221, %7, %cst_47 {dimension_numbers = #tpu.dot_dimension_numbers<[1], [0], [0], [1], [0, 0, 1, 1], [], []>} : vector<2x32xf32>, vector<32x128xf32>, vector<2x128xf32> -> vector<2x128xf32>
    %263 = arith.addf %261, %262 : vector<2x128xf32>
    %264 = arith.negf %263 : vector<2x128xf32>
    %265 = math.exp %264 : vector<2x128xf32>
    %cst_48 = arith.constant 1.000000e+00 : f32
    %266 = vector.broadcast %cst_48 : f32 to vector<2x128xf32>
    %267 = arith.addf %266, %265 : vector<2x128xf32>
    %268 = arith.divf %266, %267 : vector<2x128xf32>
    %269 = math.tanh %263 : vector<2x128xf32>
    %270 = vector.extract_strided_slice %268 {offsets = [0, 0], sizes = [2, 32], strides = [1, 1]} : vector<2x128xf32> to vector<2x32xf32>
    %271 = vector.extract_strided_slice %268 {offsets = [0, 32], sizes = [2, 32], strides = [1, 1]} : vector<2x128xf32> to vector<2x32xf32>
    %272 = vector.extract_strided_slice %269 {offsets = [0, 64], sizes = [2, 32], strides = [1, 1]} : vector<2x128xf32> to vector<2x32xf32>
    %273 = vector.extract_strided_slice %268 {offsets = [0, 96], sizes = [2, 32], strides = [1, 1]} : vector<2x128xf32> to vector<2x32xf32>
    %274 = arith.mulf %271, %224 : vector<2x32xf32>
    %275 = arith.mulf %270, %272 : vector<2x32xf32>
    %276 = arith.addf %274, %275 : vector<2x32xf32>
    %277 = math.tanh %276 : vector<2x32xf32>
    %278 = arith.mulf %273, %277 : vector<2x32xf32>
    %c4_i32_49 = arith.constant 4 : i32
    %279 = vector.broadcast %c4_i32_49 : i32 to vector<2x1xi32>
    %280 = arith.cmpi sgt, %0, %279 : vector<2x1xi32>
    %281 = vector.shape_cast %280 : vector<2x1xi1> to vector<2x1xi1>
    %282 = vector.broadcast %281 : vector<2x1xi1> to vector<2x32xi1>
    %283 = arith.select %282, %278, %221 : vector<2x32xi1>, vector<2x32xf32>
    %284 = vector.shape_cast %280 : vector<2x1xi1> to vector<2x1xi1>
    %285 = vector.broadcast %284 : vector<2x1xi1> to vector<2x32xi1>
    %286 = arith.select %285, %276, %224 : vector<2x32xi1>, vector<2x32xf32>
    %cst_50 = arith.constant 0.000000e+00 : f32
    %287 = vector.shape_cast %280 : vector<2x1xi1> to vector<2x1xi1>
    %288 = vector.broadcast %287 : vector<2x1xi1> to vector<2x32xi1>
    %289 = vector.broadcast %cst_50 : f32 to vector<2x32xf32>
    %290 = arith.select %288, %278, %289 : vector<2x32xi1>, vector<2x32xf32>
    %c8_51 = arith.constant 8 : index
    %c0_52 = arith.constant 0 : index
    %291 = vector.load %arg16[%c8_51, %c0_52] : memref<16x64xf32, #tpu.memory_space<vmem>>, vector<2x32xf32>
    tpu.vector_store %arg16[%c8_51, %c0_52], %290 {strides = array<i32>} : memref<16x64xf32, #tpu.memory_space<vmem>>, vector<2x32xf32>,
    %292 = vector.extract_strided_slice %6 {offsets = [6, 128], sizes = [2, 128], strides = [1, 1]} : vector<16x256xf32> to vector<2x128xf32>
    %cst_53 = arith.constant dense<0.000000e+00> : vector<2x128xf32>
    %293 = tpu.matmul %252, %8, %cst_53 {dimension_numbers = #tpu.dot_dimension_numbers<[1], [0], [0], [1], [0, 0, 1, 1], [], []>} : vector<2x32xf32>, vector<32x128xf32>, vector<2x128xf32> -> vector<2x128xf32>
    %294 = arith.addf %292, %293 : vector<2x128xf32>
    %295 = arith.negf %294 : vector<2x128xf32>
    %296 = math.exp %295 : vector<2x128xf32>
    %cst_54 = arith.constant 1.000000e+00 : f32
    %297 = vector.broadcast %cst_54 : f32 to vector<2x128xf32>
    %298 = arith.addf %297, %296 : vector<2x128xf32>
    %299 = arith.divf %297, %298 : vector<2x128xf32>
    %300 = math.tanh %294 : vector<2x128xf32>
    %301 = vector.extract_strided_slice %299 {offsets = [0, 0], sizes = [2, 32], strides = [1, 1]} : vector<2x128xf32> to vector<2x32xf32>
    %302 = vector.extract_strided_slice %299 {offsets = [0, 32], sizes = [2, 32], strides = [1, 1]} : vector<2x128xf32> to vector<2x32xf32>
    %303 = vector.extract_strided_slice %300 {offsets = [0, 64], sizes = [2, 32], strides = [1, 1]} : vector<2x128xf32> to vector<2x32xf32>
    %304 = vector.extract_strided_slice %299 {offsets = [0, 96], sizes = [2, 32], strides = [1, 1]} : vector<2x128xf32> to vector<2x32xf32>
    %305 = arith.mulf %302, %255 : vector<2x32xf32>
    %306 = arith.mulf %301, %303 : vector<2x32xf32>
    %307 = arith.addf %305, %306 : vector<2x32xf32>
    %308 = math.tanh %307 : vector<2x32xf32>
    %309 = arith.mulf %304, %308 : vector<2x32xf32>
    %c3_i32_55 = arith.constant 3 : i32
    %310 = vector.broadcast %c3_i32_55 : i32 to vector<2x1xi32>
    %311 = arith.cmpi sgt, %0, %310 : vector<2x1xi32>
    %312 = vector.shape_cast %311 : vector<2x1xi1> to vector<2x1xi1>
    %313 = vector.broadcast %312 : vector<2x1xi1> to vector<2x32xi1>
    %314 = arith.select %313, %309, %252 : vector<2x32xi1>, vector<2x32xf32>
    %315 = vector.shape_cast %311 : vector<2x1xi1> to vector<2x1xi1>
    %316 = vector.broadcast %315 : vector<2x1xi1> to vector<2x32xi1>
    %317 = arith.select %316, %307, %255 : vector<2x32xi1>, vector<2x32xf32>
    %cst_56 = arith.constant 0.000000e+00 : f32
    %318 = vector.shape_cast %311 : vector<2x1xi1> to vector<2x1xi1>
    %319 = vector.broadcast %318 : vector<2x1xi1> to vector<2x32xi1>
    %320 = vector.broadcast %cst_56 : f32 to vector<2x32xf32>
    %321 = arith.select %319, %309, %320 : vector<2x32xi1>, vector<2x32xf32>
    %c6_57 = arith.constant 6 : index
    %c32_58 = arith.constant 32 : index
    %322 = vector.load %arg16[%c6_57, %c32_58] : memref<16x64xf32, #tpu.memory_space<vmem>>, vector<2x32xf32>
    tpu.vector_store %arg16[%c6_57, %c32_58], %321 {strides = array<i32>} : memref<16x64xf32, #tpu.memory_space<vmem>>, vector<2x32xf32>,
    %323 = vector.extract_strided_slice %6 {offsets = [10, 0], sizes = [2, 128], strides = [1, 1]} : vector<16x256xf32> to vector<2x128xf32>
    %cst_59 = arith.constant dense<0.000000e+00> : vector<2x128xf32>
    %324 = tpu.matmul %283, %7, %cst_59 {dimension_numbers = #tpu.dot_dimension_numbers<[1], [0], [0], [1], [0, 0, 1, 1], [], []>} : vector<2x32xf32>, vector<32x128xf32>, vector<2x128xf32> -> vector<2x128xf32>
    %325 = arith.addf %323, %324 : vector<2x128xf32>
    %326 = arith.negf %325 : vector<2x128xf32>
    %327 = math.exp %326 : vector<2x128xf32>
    %cst_60 = arith.constant 1.000000e+00 : f32
    %328 = vector.broadcast %cst_60 : f32 to vector<2x128xf32>
    %329 = arith.addf %328, %327 : vector<2x128xf32>
    %330 = arith.divf %328, %329 : vector<2x128xf32>
    %331 = math.tanh %325 : vector<2x128xf32>
    %332 = vector.extract_strided_slice %330 {offsets = [0, 0], sizes = [2, 32], strides = [1, 1]} : vector<2x128xf32> to vector<2x32xf32>
    %333 = vector.extract_strided_slice %330 {offsets = [0, 32], sizes = [2, 32], strides = [1, 1]} : vector<2x128xf32> to vector<2x32xf32>
    %334 = vector.extract_strided_slice %331 {offsets = [0, 64], sizes = [2, 32], strides = [1, 1]} : vector<2x128xf32> to vector<2x32xf32>
    %335 = vector.extract_strided_slice %330 {offsets = [0, 96], sizes = [2, 32], strides = [1, 1]} : vector<2x128xf32> to vector<2x32xf32>
    %336 = arith.mulf %333, %286 : vector<2x32xf32>
    %337 = arith.mulf %332, %334 : vector<2x32xf32>
    %338 = arith.addf %336, %337 : vector<2x32xf32>
    %339 = math.tanh %338 : vector<2x32xf32>
    %340 = arith.mulf %335, %339 : vector<2x32xf32>
    %c5_i32_61 = arith.constant 5 : i32
    %341 = vector.broadcast %c5_i32_61 : i32 to vector<2x1xi32>
    %342 = arith.cmpi sgt, %0, %341 : vector<2x1xi32>
    %343 = vector.shape_cast %342 : vector<2x1xi1> to vector<2x1xi1>
    %344 = vector.broadcast %343 : vector<2x1xi1> to vector<2x32xi1>
    %345 = arith.select %344, %340, %283 : vector<2x32xi1>, vector<2x32xf32>
    %346 = vector.shape_cast %342 : vector<2x1xi1> to vector<2x1xi1>
    %347 = vector.broadcast %346 : vector<2x1xi1> to vector<2x32xi1>
    %348 = arith.select %347, %338, %286 : vector<2x32xi1>, vector<2x32xf32>
    %cst_62 = arith.constant 0.000000e+00 : f32
    %349 = vector.shape_cast %342 : vector<2x1xi1> to vector<2x1xi1>
    %350 = vector.broadcast %349 : vector<2x1xi1> to vector<2x32xi1>
    %351 = vector.broadcast %cst_62 : f32 to vector<2x32xf32>
    %352 = arith.select %350, %340, %351 : vector<2x32xi1>, vector<2x32xf32>
    %c10_63 = arith.constant 10 : index
    %c0_64 = arith.constant 0 : index
    %353 = vector.load %arg16[%c10_63, %c0_64] : memref<16x64xf32, #tpu.memory_space<vmem>>, vector<2x32xf32>
    tpu.vector_store %arg16[%c10_63, %c0_64], %352 {strides = array<i32>} : memref<16x64xf32, #tpu.memory_space<vmem>>, vector<2x32xf32>,
    %354 = vector.extract_strided_slice %6 {offsets = [4, 128], sizes = [2, 128], strides = [1, 1]} : vector<16x256xf32> to vector<2x128xf32>
    %cst_65 = arith.constant dense<0.000000e+00> : vector<2x128xf32>
    %355 = tpu.matmul %314, %8, %cst_65 {dimension_numbers = #tpu.dot_dimension_numbers<[1], [0], [0], [1], [0, 0, 1, 1], [], []>} : vector<2x32xf32>, vector<32x128xf32>, vector<2x128xf32> -> vector<2x128xf32>
    %356 = arith.addf %354, %355 : vector<2x128xf32>
    %357 = arith.negf %356 : vector<2x128xf32>
    %358 = math.exp %357 : vector<2x128xf32>
    %cst_66 = arith.constant 1.000000e+00 : f32
    %359 = vector.broadcast %cst_66 : f32 to vector<2x128xf32>
    %360 = arith.addf %359, %358 : vector<2x128xf32>
    %361 = arith.divf %359, %360 : vector<2x128xf32>
    %362 = math.tanh %356 : vector<2x128xf32>
    %363 = vector.extract_strided_slice %361 {offsets = [0, 0], sizes = [2, 32], strides = [1, 1]} : vector<2x128xf32> to vector<2x32xf32>
    %364 = vector.extract_strided_slice %361 {offsets = [0, 32], sizes = [2, 32], strides = [1, 1]} : vector<2x128xf32> to vector<2x32xf32>
    %365 = vector.extract_strided_slice %362 {offsets = [0, 64], sizes = [2, 32], strides = [1, 1]} : vector<2x128xf32> to vector<2x32xf32>
    %366 = vector.extract_strided_slice %361 {offsets = [0, 96], sizes = [2, 32], strides = [1, 1]} : vector<2x128xf32> to vector<2x32xf32>
    %367 = arith.mulf %364, %317 : vector<2x32xf32>
    %368 = arith.mulf %363, %365 : vector<2x32xf32>
    %369 = arith.addf %367, %368 : vector<2x32xf32>
    %370 = math.tanh %369 : vector<2x32xf32>
    %371 = arith.mulf %366, %370 : vector<2x32xf32>
    %c2_i32_67 = arith.constant 2 : i32
    %372 = vector.broadcast %c2_i32_67 : i32 to vector<2x1xi32>
    %373 = arith.cmpi sgt, %0, %372 : vector<2x1xi32>
    %374 = vector.shape_cast %373 : vector<2x1xi1> to vector<2x1xi1>
    %375 = vector.broadcast %374 : vector<2x1xi1> to vector<2x32xi1>
    %376 = arith.select %375, %371, %314 : vector<2x32xi1>, vector<2x32xf32>
    %377 = vector.shape_cast %373 : vector<2x1xi1> to vector<2x1xi1>
    %378 = vector.broadcast %377 : vector<2x1xi1> to vector<2x32xi1>
    %379 = arith.select %378, %369, %317 : vector<2x32xi1>, vector<2x32xf32>
    %cst_68 = arith.constant 0.000000e+00 : f32
    %380 = vector.shape_cast %373 : vector<2x1xi1> to vector<2x1xi1>
    %381 = vector.broadcast %380 : vector<2x1xi1> to vector<2x32xi1>
    %382 = vector.broadcast %cst_68 : f32 to vector<2x32xf32>
    %383 = arith.select %381, %371, %382 : vector<2x32xi1>, vector<2x32xf32>
    %c4_69 = arith.constant 4 : index
    %c32_70 = arith.constant 32 : index
    %384 = vector.load %arg16[%c4_69, %c32_70] : memref<16x64xf32, #tpu.memory_space<vmem>>, vector<2x32xf32>
    tpu.vector_store %arg16[%c4_69, %c32_70], %383 {strides = array<i32>} : memref<16x64xf32, #tpu.memory_space<vmem>>, vector<2x32xf32>,
    %385 = vector.extract_strided_slice %6 {offsets = [12, 0], sizes = [2, 128], strides = [1, 1]} : vector<16x256xf32> to vector<2x128xf32>
    %cst_71 = arith.constant dense<0.000000e+00> : vector<2x128xf32>
    %386 = tpu.matmul %345, %7, %cst_71 {dimension_numbers = #tpu.dot_dimension_numbers<[1], [0], [0], [1], [0, 0, 1, 1], [], []>} : vector<2x32xf32>, vector<32x128xf32>, vector<2x128xf32> -> vector<2x128xf32>
    %387 = arith.addf %385, %386 : vector<2x128xf32>
    %388 = arith.negf %387 : vector<2x128xf32>
    %389 = math.exp %388 : vector<2x128xf32>
    %cst_72 = arith.constant 1.000000e+00 : f32
    %390 = vector.broadcast %cst_72 : f32 to vector<2x128xf32>
    %391 = arith.addf %390, %389 : vector<2x128xf32>
    %392 = arith.divf %390, %391 : vector<2x128xf32>
    %393 = math.tanh %387 : vector<2x128xf32>
    %394 = vector.extract_strided_slice %392 {offsets = [0, 0], sizes = [2, 32], strides = [1, 1]} : vector<2x128xf32> to vector<2x32xf32>
    %395 = vector.extract_strided_slice %392 {offsets = [0, 32], sizes = [2, 32], strides = [1, 1]} : vector<2x128xf32> to vector<2x32xf32>
    %396 = vector.extract_strided_slice %393 {offsets = [0, 64], sizes = [2, 32], strides = [1, 1]} : vector<2x128xf32> to vector<2x32xf32>
    %397 = vector.extract_strided_slice %392 {offsets = [0, 96], sizes = [2, 32], strides = [1, 1]} : vector<2x128xf32> to vector<2x32xf32>
    %398 = arith.mulf %395, %348 : vector<2x32xf32>
    %399 = arith.mulf %394, %396 : vector<2x32xf32>
    %400 = arith.addf %398, %399 : vector<2x32xf32>
    %401 = math.tanh %400 : vector<2x32xf32>
    %402 = arith.mulf %397, %401 : vector<2x32xf32>
    %c6_i32_73 = arith.constant 6 : i32
    %403 = vector.broadcast %c6_i32_73 : i32 to vector<2x1xi32>
    %404 = arith.cmpi sgt, %0, %403 : vector<2x1xi32>
    %405 = vector.shape_cast %404 : vector<2x1xi1> to vector<2x1xi1>
    %406 = vector.broadcast %405 : vector<2x1xi1> to vector<2x32xi1>
    %407 = arith.select %406, %402, %345 : vector<2x32xi1>, vector<2x32xf32>
    %408 = vector.shape_cast %404 : vector<2x1xi1> to vector<2x1xi1>
    %409 = vector.broadcast %408 : vector<2x1xi1> to vector<2x32xi1>
    %410 = arith.select %409, %400, %348 : vector<2x32xi1>, vector<2x32xf32>
    %cst_74 = arith.constant 0.000000e+00 : f32
    %411 = vector.shape_cast %404 : vector<2x1xi1> to vector<2x1xi1>
    %412 = vector.broadcast %411 : vector<2x1xi1> to vector<2x32xi1>
    %413 = vector.broadcast %cst_74 : f32 to vector<2x32xf32>
    %414 = arith.select %412, %402, %413 : vector<2x32xi1>, vector<2x32xf32>
    %c12_75 = arith.constant 12 : index
    %c0_76 = arith.constant 0 : index
    %415 = vector.load %arg16[%c12_75, %c0_76] : memref<16x64xf32, #tpu.memory_space<vmem>>, vector<2x32xf32>
    tpu.vector_store %arg16[%c12_75, %c0_76], %414 {strides = array<i32>} : memref<16x64xf32, #tpu.memory_space<vmem>>, vector<2x32xf32>,
    %416 = vector.extract_strided_slice %6 {offsets = [2, 128], sizes = [2, 128], strides = [1, 1]} : vector<16x256xf32> to vector<2x128xf32>
    %cst_77 = arith.constant dense<0.000000e+00> : vector<2x128xf32>
    %417 = tpu.matmul %376, %8, %cst_77 {dimension_numbers = #tpu.dot_dimension_numbers<[1], [0], [0], [1], [0, 0, 1, 1], [], []>} : vector<2x32xf32>, vector<32x128xf32>, vector<2x128xf32> -> vector<2x128xf32>
    %418 = arith.addf %416, %417 : vector<2x128xf32>
    %419 = arith.negf %418 : vector<2x128xf32>
    %420 = math.exp %419 : vector<2x128xf32>
    %cst_78 = arith.constant 1.000000e+00 : f32
    %421 = vector.broadcast %cst_78 : f32 to vector<2x128xf32>
    %422 = arith.addf %421, %420 : vector<2x128xf32>
    %423 = arith.divf %421, %422 : vector<2x128xf32>
    %424 = math.tanh %418 : vector<2x128xf32>
    %425 = vector.extract_strided_slice %423 {offsets = [0, 0], sizes = [2, 32], strides = [1, 1]} : vector<2x128xf32> to vector<2x32xf32>
    %426 = vector.extract_strided_slice %423 {offsets = [0, 32], sizes = [2, 32], strides = [1, 1]} : vector<2x128xf32> to vector<2x32xf32>
    %427 = vector.extract_strided_slice %424 {offsets = [0, 64], sizes = [2, 32], strides = [1, 1]} : vector<2x128xf32> to vector<2x32xf32>
    %428 = vector.extract_strided_slice %423 {offsets = [0, 96], sizes = [2, 32], strides = [1, 1]} : vector<2x128xf32> to vector<2x32xf32>
    %429 = arith.mulf %426, %379 : vector<2x32xf32>
    %430 = arith.mulf %425, %427 : vector<2x32xf32>
    %431 = arith.addf %429, %430 : vector<2x32xf32>
    %432 = math.tanh %431 : vector<2x32xf32>
    %433 = arith.mulf %428, %432 : vector<2x32xf32>
    %c1_i32_79 = arith.constant 1 : i32
    %434 = vector.broadcast %c1_i32_79 : i32 to vector<2x1xi32>
    %435 = arith.cmpi sgt, %0, %434 : vector<2x1xi32>
    %436 = vector.shape_cast %435 : vector<2x1xi1> to vector<2x1xi1>
    %437 = vector.broadcast %436 : vector<2x1xi1> to vector<2x32xi1>
    %438 = arith.select %437, %433, %376 : vector<2x32xi1>, vector<2x32xf32>
    %439 = vector.shape_cast %435 : vector<2x1xi1> to vector<2x1xi1>
    %440 = vector.broadcast %439 : vector<2x1xi1> to vector<2x32xi1>
    %441 = arith.select %440, %431, %379 : vector<2x32xi1>, vector<2x32xf32>
    %cst_80 = arith.constant 0.000000e+00 : f32
    %442 = vector.shape_cast %435 : vector<2x1xi1> to vector<2x1xi1>
    %443 = vector.broadcast %442 : vector<2x1xi1> to vector<2x32xi1>
    %444 = vector.broadcast %cst_80 : f32 to vector<2x32xf32>
    %445 = arith.select %443, %433, %444 : vector<2x32xi1>, vector<2x32xf32>
    %c2_81 = arith.constant 2 : index
    %c32_82 = arith.constant 32 : index
    %446 = vector.load %arg16[%c2_81, %c32_82] : memref<16x64xf32, #tpu.memory_space<vmem>>, vector<2x32xf32>
    tpu.vector_store %arg16[%c2_81, %c32_82], %445 {strides = array<i32>} : memref<16x64xf32, #tpu.memory_space<vmem>>, vector<2x32xf32>,
    %447 = vector.extract_strided_slice %6 {offsets = [14, 0], sizes = [2, 128], strides = [1, 1]} : vector<16x256xf32> to vector<2x128xf32>
    %cst_83 = arith.constant dense<0.000000e+00> : vector<2x128xf32>
    %448 = tpu.matmul %407, %7, %cst_83 {dimension_numbers = #tpu.dot_dimension_numbers<[1], [0], [0], [1], [0, 0, 1, 1], [], []>} : vector<2x32xf32>, vector<32x128xf32>, vector<2x128xf32> -> vector<2x128xf32>
    %449 = arith.addf %447, %448 : vector<2x128xf32>
    %450 = arith.negf %449 : vector<2x128xf32>
    %451 = math.exp %450 : vector<2x128xf32>
    %cst_84 = arith.constant 1.000000e+00 : f32
    %452 = vector.broadcast %cst_84 : f32 to vector<2x128xf32>
    %453 = arith.addf %452, %451 : vector<2x128xf32>
    %454 = arith.divf %452, %453 : vector<2x128xf32>
    %455 = math.tanh %449 : vector<2x128xf32>
    %456 = vector.extract_strided_slice %454 {offsets = [0, 0], sizes = [2, 32], strides = [1, 1]} : vector<2x128xf32> to vector<2x32xf32>
    %457 = vector.extract_strided_slice %454 {offsets = [0, 32], sizes = [2, 32], strides = [1, 1]} : vector<2x128xf32> to vector<2x32xf32>
    %458 = vector.extract_strided_slice %455 {offsets = [0, 64], sizes = [2, 32], strides = [1, 1]} : vector<2x128xf32> to vector<2x32xf32>
    %459 = vector.extract_strided_slice %454 {offsets = [0, 96], sizes = [2, 32], strides = [1, 1]} : vector<2x128xf32> to vector<2x32xf32>
    %460 = arith.mulf %457, %410 : vector<2x32xf32>
    %461 = arith.mulf %456, %458 : vector<2x32xf32>
    %462 = arith.addf %460, %461 : vector<2x32xf32>
    %463 = math.tanh %462 : vector<2x32xf32>
    %464 = arith.mulf %459, %463 : vector<2x32xf32>
    %c7_i32_85 = arith.constant 7 : i32
    %465 = vector.broadcast %c7_i32_85 : i32 to vector<2x1xi32>
    %466 = arith.cmpi sgt, %0, %465 : vector<2x1xi32>
    %cst_86 = arith.constant 0.000000e+00 : f32
    %467 = vector.shape_cast %466 : vector<2x1xi1> to vector<2x1xi1>
    %468 = vector.broadcast %467 : vector<2x1xi1> to vector<2x32xi1>
    %469 = vector.broadcast %cst_86 : f32 to vector<2x32xf32>
    %470 = arith.select %468, %464, %469 : vector<2x32xi1>, vector<2x32xf32>
    %c14_87 = arith.constant 14 : index
    %c0_88 = arith.constant 0 : index
    %471 = vector.load %arg16[%c14_87, %c0_88] : memref<16x64xf32, #tpu.memory_space<vmem>>, vector<2x32xf32>
    tpu.vector_store %arg16[%c14_87, %c0_88], %470 {strides = array<i32>} : memref<16x64xf32, #tpu.memory_space<vmem>>, vector<2x32xf32>,
    %472 = vector.extract_strided_slice %6 {offsets = [0, 128], sizes = [2, 128], strides = [1, 1]} : vector<16x256xf32> to vector<2x128xf32>
    %cst_89 = arith.constant dense<0.000000e+00> : vector<2x128xf32>
    %473 = tpu.matmul %438, %8, %cst_89 {dimension_numbers = #tpu.dot_dimension_numbers<[1], [0], [0], [1], [0, 0, 1, 1], [], []>} : vector<2x32xf32>, vector<32x128xf32>, vector<2x128xf32> -> vector<2x128xf32>
    %474 = arith.addf %472, %473 : vector<2x128xf32>
    %475 = arith.negf %474 : vector<2x128xf32>
    %476 = math.exp %475 : vector<2x128xf32>
    %cst_90 = arith.constant 1.000000e+00 : f32
    %477 = vector.broadcast %cst_90 : f32 to vector<2x128xf32>
    %478 = arith.addf %477, %476 : vector<2x128xf32>
    %479 = arith.divf %477, %478 : vector<2x128xf32>
    %480 = math.tanh %474 : vector<2x128xf32>
    %481 = vector.extract_strided_slice %479 {offsets = [0, 0], sizes = [2, 32], strides = [1, 1]} : vector<2x128xf32> to vector<2x32xf32>
    %482 = vector.extract_strided_slice %479 {offsets = [0, 32], sizes = [2, 32], strides = [1, 1]} : vector<2x128xf32> to vector<2x32xf32>
    %483 = vector.extract_strided_slice %480 {offsets = [0, 64], sizes = [2, 32], strides = [1, 1]} : vector<2x128xf32> to vector<2x32xf32>
    %484 = vector.extract_strided_slice %479 {offsets = [0, 96], sizes = [2, 32], strides = [1, 1]} : vector<2x128xf32> to vector<2x32xf32>
    %485 = arith.mulf %482, %441 : vector<2x32xf32>
    %486 = arith.mulf %481, %483 : vector<2x32xf32>
    %487 = arith.addf %485, %486 : vector<2x32xf32>
    %488 = math.tanh %487 : vector<2x32xf32>
    %489 = arith.mulf %484, %488 : vector<2x32xf32>
    %c0_i32_91 = arith.constant 0 : i32
    %490 = vector.broadcast %c0_i32_91 : i32 to vector<2x1xi32>
    %491 = arith.cmpi sgt, %0, %490 : vector<2x1xi32>
    %cst_92 = arith.constant 0.000000e+00 : f32
    %492 = vector.shape_cast %491 : vector<2x1xi1> to vector<2x1xi1>
    %493 = vector.broadcast %492 : vector<2x1xi1> to vector<2x32xi1>
    %494 = vector.broadcast %cst_92 : f32 to vector<2x32xf32>
    %495 = arith.select %493, %489, %494 : vector<2x32xi1>, vector<2x32xf32>
    %c0_93 = arith.constant 0 : index
    %c32_94 = arith.constant 32 : index
    %496 = vector.load %arg16[%c0_93, %c32_94] : memref<16x64xf32, #tpu.memory_space<vmem>>, vector<2x32xf32>
    tpu.vector_store %arg16[%c0_93, %c32_94], %495 {strides = array<i32>} : memref<16x64xf32, #tpu.memory_space<vmem>>, vector<2x32xf32>,
    %c0_95 = arith.constant 0 : index
    %c0_96 = arith.constant 0 : index
    %497 = vector.load %arg16[%c0_95, %c0_96] : memref<16x64xf32, #tpu.memory_space<vmem>>, vector<16x64xf32>
    %c0_97 = arith.constant 0 : index
    %c0_98 = arith.constant 0 : index
    %498 = vector.load %arg6[%c0_97, %c0_98] : memref<64x256xf32, #tpu.memory_space<vmem>>, vector<64x256xf32>
    %cst_99 = arith.constant dense<0.000000e+00> : vector<16x256xf32>
    %499 = tpu.matmul %497, %498, %cst_99 {dimension_numbers = #tpu.dot_dimension_numbers<[1], [0], [0], [1], [0, 0, 1, 1], [], []>} : vector<16x64xf32>, vector<64x256xf32>, vector<16x256xf32> -> vector<16x256xf32>
    %c0_100 = arith.constant 0 : index
    %c0_101 = arith.constant 0 : index
    %500 = vector.load %arg9[%c0_100, %c0_101] : memref<1x256xf32, #tpu.memory_space<vmem>>, vector<1x256xf32>
    %501 = vector.broadcast %500 : vector<1x256xf32> to vector<16x256xf32>
    %502 = arith.addf %499, %501 : vector<16x256xf32>
    %c0_102 = arith.constant 0 : index
    %c0_103 = arith.constant 0 : index
    %503 = vector.load %arg7[%c0_102, %c0_103] : memref<32x128xf32, #tpu.memory_space<vmem>>, vector<32x128xf32>
    %c0_104 = arith.constant 0 : index
    %c0_105 = arith.constant 0 : index
    %504 = vector.load %arg8[%c0_104, %c0_105] : memref<32x128xf32, #tpu.memory_space<vmem>>, vector<32x128xf32>
    %cst_106 = arith.constant 0.000000e+00 : f32
    %505 = vector.broadcast %cst_106 : f32 to vector<2x32xf32>
    %cst_107 = arith.constant 0.000000e+00 : f32
    %506 = vector.broadcast %cst_107 : f32 to vector<2x32xf32>
    %cst_108 = arith.constant 0.000000e+00 : f32
    %507 = vector.broadcast %cst_108 : f32 to vector<2x32xf32>
    %cst_109 = arith.constant 0.000000e+00 : f32
    %508 = vector.broadcast %cst_109 : f32 to vector<2x32xf32>
    %509 = vector.extract_strided_slice %502 {offsets = [0, 0], sizes = [2, 128], strides = [1, 1]} : vector<16x256xf32> to vector<2x128xf32>
    %cst_110 = arith.constant dense<0.000000e+00> : vector<2x128xf32>
    %510 = tpu.matmul %505, %503, %cst_110 {dimension_numbers = #tpu.dot_dimension_numbers<[1], [0], [0], [1], [0, 0, 1, 1], [], []>} : vector<2x32xf32>, vector<32x128xf32>, vector<2x128xf32> -> vector<2x128xf32>
    %511 = arith.addf %509, %510 : vector<2x128xf32>
    %512 = arith.negf %511 : vector<2x128xf32>
    %513 = math.exp %512 : vector<2x128xf32>
    %cst_111 = arith.constant 1.000000e+00 : f32
    %514 = vector.broadcast %cst_111 : f32 to vector<2x128xf32>
    %515 = arith.addf %514, %513 : vector<2x128xf32>
    %516 = arith.divf %514, %515 : vector<2x128xf32>
    %517 = math.tanh %511 : vector<2x128xf32>
    %518 = vector.extract_strided_slice %516 {offsets = [0, 0], sizes = [2, 32], strides = [1, 1]} : vector<2x128xf32> to vector<2x32xf32>
    %519 = vector.extract_strided_slice %516 {offsets = [0, 32], sizes = [2, 32], strides = [1, 1]} : vector<2x128xf32> to vector<2x32xf32>
    %520 = vector.extract_strided_slice %517 {offsets = [0, 64], sizes = [2, 32], strides = [1, 1]} : vector<2x128xf32> to vector<2x32xf32>
    %521 = vector.extract_strided_slice %516 {offsets = [0, 96], sizes = [2, 32], strides = [1, 1]} : vector<2x128xf32> to vector<2x32xf32>
    %522 = arith.mulf %519, %506 : vector<2x32xf32>
    %523 = arith.mulf %518, %520 : vector<2x32xf32>
    %524 = arith.addf %522, %523 : vector<2x32xf32>
    %525 = math.tanh %524 : vector<2x32xf32>
    %526 = arith.mulf %521, %525 : vector<2x32xf32>
    %c0_i32_112 = arith.constant 0 : i32
    %527 = vector.broadcast %c0_i32_112 : i32 to vector<2x1xi32>
    %528 = arith.cmpi sgt, %0, %527 : vector<2x1xi32>
    %529 = vector.shape_cast %528 : vector<2x1xi1> to vector<2x1xi1>
    %530 = vector.broadcast %529 : vector<2x1xi1> to vector<2x32xi1>
    %531 = arith.select %530, %526, %505 : vector<2x32xi1>, vector<2x32xf32>
    %532 = vector.shape_cast %528 : vector<2x1xi1> to vector<2x1xi1>
    %533 = vector.broadcast %532 : vector<2x1xi1> to vector<2x32xi1>
    %534 = arith.select %533, %524, %506 : vector<2x32xi1>, vector<2x32xf32>
    %cst_113 = arith.constant 0.000000e+00 : f32
    %535 = vector.shape_cast %528 : vector<2x1xi1> to vector<2x1xi1>
    %536 = vector.broadcast %535 : vector<2x1xi1> to vector<2x32xi1>
    %537 = vector.broadcast %cst_113 : f32 to vector<2x32xf32>
    %538 = arith.select %536, %526, %537 : vector<2x32xi1>, vector<2x32xf32>
    %c0_114 = arith.constant 0 : index
    %c0_115 = arith.constant 0 : index
    %539 = vector.load %arg17[%c0_114, %c0_115] : memref<16x64xf32, #tpu.memory_space<vmem>>, vector<2x32xf32>
    tpu.vector_store %arg17[%c0_114, %c0_115], %538 {strides = array<i32>} : memref<16x64xf32, #tpu.memory_space<vmem>>, vector<2x32xf32>,
    %540 = vector.extract_strided_slice %502 {offsets = [14, 128], sizes = [2, 128], strides = [1, 1]} : vector<16x256xf32> to vector<2x128xf32>
    %cst_116 = arith.constant dense<0.000000e+00> : vector<2x128xf32>
    %541 = tpu.matmul %507, %504, %cst_116 {dimension_numbers = #tpu.dot_dimension_numbers<[1], [0], [0], [1], [0, 0, 1, 1], [], []>} : vector<2x32xf32>, vector<32x128xf32>, vector<2x128xf32> -> vector<2x128xf32>
    %542 = arith.addf %540, %541 : vector<2x128xf32>
    %543 = arith.negf %542 : vector<2x128xf32>
    %544 = math.exp %543 : vector<2x128xf32>
    %cst_117 = arith.constant 1.000000e+00 : f32
    %545 = vector.broadcast %cst_117 : f32 to vector<2x128xf32>
    %546 = arith.addf %545, %544 : vector<2x128xf32>
    %547 = arith.divf %545, %546 : vector<2x128xf32>
    %548 = math.tanh %542 : vector<2x128xf32>
    %549 = vector.extract_strided_slice %547 {offsets = [0, 0], sizes = [2, 32], strides = [1, 1]} : vector<2x128xf32> to vector<2x32xf32>
    %550 = vector.extract_strided_slice %547 {offsets = [0, 32], sizes = [2, 32], strides = [1, 1]} : vector<2x128xf32> to vector<2x32xf32>
    %551 = vector.extract_strided_slice %548 {offsets = [0, 64], sizes = [2, 32], strides = [1, 1]} : vector<2x128xf32> to vector<2x32xf32>
    %552 = vector.extract_strided_slice %547 {offsets = [0, 96], sizes = [2, 32], strides = [1, 1]} : vector<2x128xf32> to vector<2x32xf32>
    %553 = arith.mulf %550, %508 : vector<2x32xf32>
    %554 = arith.mulf %549, %551 : vector<2x32xf32>
    %555 = arith.addf %553, %554 : vector<2x32xf32>
    %556 = math.tanh %555 : vector<2x32xf32>
    %557 = arith.mulf %552, %556 : vector<2x32xf32>
    %c7_i32_118 = arith.constant 7 : i32
    %558 = vector.broadcast %c7_i32_118 : i32 to vector<2x1xi32>
    %559 = arith.cmpi sgt, %0, %558 : vector<2x1xi32>
    %560 = vector.shape_cast %559 : vector<2x1xi1> to vector<2x1xi1>
    %561 = vector.broadcast %560 : vector<2x1xi1> to vector<2x32xi1>
    %562 = arith.select %561, %557, %507 : vector<2x32xi1>, vector<2x32xf32>
    %563 = vector.shape_cast %559 : vector<2x1xi1> to vector<2x1xi1>
    %564 = vector.broadcast %563 : vector<2x1xi1> to vector<2x32xi1>
    %565 = arith.select %564, %555, %508 : vector<2x32xi1>, vector<2x32xf32>
    %cst_119 = arith.constant 0.000000e+00 : f32
    %566 = vector.shape_cast %559 : vector<2x1xi1> to vector<2x1xi1>
    %567 = vector.broadcast %566 : vector<2x1xi1> to vector<2x32xi1>
    %568 = vector.broadcast %cst_119 : f32 to vector<2x32xf32>
    %569 = arith.select %567, %557, %568 : vector<2x32xi1>, vector<2x32xf32>
    %c14_120 = arith.constant 14 : index
    %c32_121 = arith.constant 32 : index
    %570 = vector.load %arg17[%c14_120, %c32_121] : memref<16x64xf32, #tpu.memory_space<vmem>>, vector<2x32xf32>
    tpu.vector_store %arg17[%c14_120, %c32_121], %569 {strides = array<i32>} : memref<16x64xf32, #tpu.memory_space<vmem>>, vector<2x32xf32>,
    %571 = vector.extract_strided_slice %502 {offsets = [2, 0], sizes = [2, 128], strides = [1, 1]} : vector<16x256xf32> to vector<2x128xf32>
    %cst_122 = arith.constant dense<0.000000e+00> : vector<2x128xf32>
    %572 = tpu.matmul %531, %503, %cst_122 {dimension_numbers = #tpu.dot_dimension_numbers<[1], [0], [0], [1], [0, 0, 1, 1], [], []>} : vector<2x32xf32>, vector<32x128xf32>, vector<2x128xf32> -> vector<2x128xf32>
    %573 = arith.addf %571, %572 : vector<2x128xf32>
    %574 = arith.negf %573 : vector<2x128xf32>
    %575 = math.exp %574 : vector<2x128xf32>
    %cst_123 = arith.constant 1.000000e+00 : f32
    %576 = vector.broadcast %cst_123 : f32 to vector<2x128xf32>
    %577 = arith.addf %576, %575 : vector<2x128xf32>
    %578 = arith.divf %576, %577 : vector<2x128xf32>
    %579 = math.tanh %573 : vector<2x128xf32>
    %580 = vector.extract_strided_slice %578 {offsets = [0, 0], sizes = [2, 32], strides = [1, 1]} : vector<2x128xf32> to vector<2x32xf32>
    %581 = vector.extract_strided_slice %578 {offsets = [0, 32], sizes = [2, 32], strides = [1, 1]} : vector<2x128xf32> to vector<2x32xf32>
    %582 = vector.extract_strided_slice %579 {offsets = [0, 64], sizes = [2, 32], strides = [1, 1]} : vector<2x128xf32> to vector<2x32xf32>
    %583 = vector.extract_strided_slice %578 {offsets = [0, 96], sizes = [2, 32], strides = [1, 1]} : vector<2x128xf32> to vector<2x32xf32>
    %584 = arith.mulf %581, %534 : vector<2x32xf32>
    %585 = arith.mulf %580, %582 : vector<2x32xf32>
    %586 = arith.addf %584, %585 : vector<2x32xf32>
    %587 = math.tanh %586 : vector<2x32xf32>
    %588 = arith.mulf %583, %587 : vector<2x32xf32>
    %c1_i32_124 = arith.constant 1 : i32
    %589 = vector.broadcast %c1_i32_124 : i32 to vector<2x1xi32>
    %590 = arith.cmpi sgt, %0, %589 : vector<2x1xi32>
    %591 = vector.shape_cast %590 : vector<2x1xi1> to vector<2x1xi1>
    %592 = vector.broadcast %591 : vector<2x1xi1> to vector<2x32xi1>
    %593 = arith.select %592, %588, %531 : vector<2x32xi1>, vector<2x32xf32>
    %594 = vector.shape_cast %590 : vector<2x1xi1> to vector<2x1xi1>
    %595 = vector.broadcast %594 : vector<2x1xi1> to vector<2x32xi1>
    %596 = arith.select %595, %586, %534 : vector<2x32xi1>, vector<2x32xf32>
    %cst_125 = arith.constant 0.000000e+00 : f32
    %597 = vector.shape_cast %590 : vector<2x1xi1> to vector<2x1xi1>
    %598 = vector.broadcast %597 : vector<2x1xi1> to vector<2x32xi1>
    %599 = vector.broadcast %cst_125 : f32 to vector<2x32xf32>
    %600 = arith.select %598, %588, %599 : vector<2x32xi1>, vector<2x32xf32>
    %c2_126 = arith.constant 2 : index
    %c0_127 = arith.constant 0 : index
    %601 = vector.load %arg17[%c2_126, %c0_127] : memref<16x64xf32, #tpu.memory_space<vmem>>, vector<2x32xf32>
    tpu.vector_store %arg17[%c2_126, %c0_127], %600 {strides = array<i32>} : memref<16x64xf32, #tpu.memory_space<vmem>>, vector<2x32xf32>,
    %602 = vector.extract_strided_slice %502 {offsets = [12, 128], sizes = [2, 128], strides = [1, 1]} : vector<16x256xf32> to vector<2x128xf32>
    %cst_128 = arith.constant dense<0.000000e+00> : vector<2x128xf32>
    %603 = tpu.matmul %562, %504, %cst_128 {dimension_numbers = #tpu.dot_dimension_numbers<[1], [0], [0], [1], [0, 0, 1, 1], [], []>} : vector<2x32xf32>, vector<32x128xf32>, vector<2x128xf32> -> vector<2x128xf32>
    %604 = arith.addf %602, %603 : vector<2x128xf32>
    %605 = arith.negf %604 : vector<2x128xf32>
    %606 = math.exp %605 : vector<2x128xf32>
    %cst_129 = arith.constant 1.000000e+00 : f32
    %607 = vector.broadcast %cst_129 : f32 to vector<2x128xf32>
    %608 = arith.addf %607, %606 : vector<2x128xf32>
    %609 = arith.divf %607, %608 : vector<2x128xf32>
    %610 = math.tanh %604 : vector<2x128xf32>
    %611 = vector.extract_strided_slice %609 {offsets = [0, 0], sizes = [2, 32], strides = [1, 1]} : vector<2x128xf32> to vector<2x32xf32>
    %612 = vector.extract_strided_slice %609 {offsets = [0, 32], sizes = [2, 32], strides = [1, 1]} : vector<2x128xf32> to vector<2x32xf32>
    %613 = vector.extract_strided_slice %610 {offsets = [0, 64], sizes = [2, 32], strides = [1, 1]} : vector<2x128xf32> to vector<2x32xf32>
    %614 = vector.extract_strided_slice %609 {offsets = [0, 96], sizes = [2, 32], strides = [1, 1]} : vector<2x128xf32> to vector<2x32xf32>
    %615 = arith.mulf %612, %565 : vector<2x32xf32>
    %616 = arith.mulf %611, %613 : vector<2x32xf32>
    %617 = arith.addf %615, %616 : vector<2x32xf32>
    %618 = math.tanh %617 : vector<2x32xf32>
    %619 = arith.mulf %614, %618 : vector<2x32xf32>
    %c6_i32_130 = arith.constant 6 : i32
    %620 = vector.broadcast %c6_i32_130 : i32 to vector<2x1xi32>
    %621 = arith.cmpi sgt, %0, %620 : vector<2x1xi32>
    %622 = vector.shape_cast %621 : vector<2x1xi1> to vector<2x1xi1>
    %623 = vector.broadcast %622 : vector<2x1xi1> to vector<2x32xi1>
    %624 = arith.select %623, %619, %562 : vector<2x32xi1>, vector<2x32xf32>
    %625 = vector.shape_cast %621 : vector<2x1xi1> to vector<2x1xi1>
    %626 = vector.broadcast %625 : vector<2x1xi1> to vector<2x32xi1>
    %627 = arith.select %626, %617, %565 : vector<2x32xi1>, vector<2x32xf32>
    %cst_131 = arith.constant 0.000000e+00 : f32
    %628 = vector.shape_cast %621 : vector<2x1xi1> to vector<2x1xi1>
    %629 = vector.broadcast %628 : vector<2x1xi1> to vector<2x32xi1>
    %630 = vector.broadcast %cst_131 : f32 to vector<2x32xf32>
    %631 = arith.select %629, %619, %630 : vector<2x32xi1>, vector<2x32xf32>
    %c12_132 = arith.constant 12 : index
    %c32_133 = arith.constant 32 : index
    %632 = vector.load %arg17[%c12_132, %c32_133] : memref<16x64xf32, #tpu.memory_space<vmem>>, vector<2x32xf32>
    tpu.vector_store %arg17[%c12_132, %c32_133], %631 {strides = array<i32>} : memref<16x64xf32, #tpu.memory_space<vmem>>, vector<2x32xf32>,
    %633 = vector.extract_strided_slice %502 {offsets = [4, 0], sizes = [2, 128], strides = [1, 1]} : vector<16x256xf32> to vector<2x128xf32>
    %cst_134 = arith.constant dense<0.000000e+00> : vector<2x128xf32>
    %634 = tpu.matmul %593, %503, %cst_134 {dimension_numbers = #tpu.dot_dimension_numbers<[1], [0], [0], [1], [0, 0, 1, 1], [], []>} : vector<2x32xf32>, vector<32x128xf32>, vector<2x128xf32> -> vector<2x128xf32>
    %635 = arith.addf %633, %634 : vector<2x128xf32>
    %636 = arith.negf %635 : vector<2x128xf32>
    %637 = math.exp %636 : vector<2x128xf32>
    %cst_135 = arith.constant 1.000000e+00 : f32
    %638 = vector.broadcast %cst_135 : f32 to vector<2x128xf32>
    %639 = arith.addf %638, %637 : vector<2x128xf32>
    %640 = arith.divf %638, %639 : vector<2x128xf32>
    %641 = math.tanh %635 : vector<2x128xf32>
    %642 = vector.extract_strided_slice %640 {offsets = [0, 0], sizes = [2, 32], strides = [1, 1]} : vector<2x128xf32> to vector<2x32xf32>
    %643 = vector.extract_strided_slice %640 {offsets = [0, 32], sizes = [2, 32], strides = [1, 1]} : vector<2x128xf32> to vector<2x32xf32>
    %644 = vector.extract_strided_slice %641 {offsets = [0, 64], sizes = [2, 32], strides = [1, 1]} : vector<2x128xf32> to vector<2x32xf32>
    %645 = vector.extract_strided_slice %640 {offsets = [0, 96], sizes = [2, 32], strides = [1, 1]} : vector<2x128xf32> to vector<2x32xf32>
    %646 = arith.mulf %643, %596 : vector<2x32xf32>
    %647 = arith.mulf %642, %644 : vector<2x32xf32>
    %648 = arith.addf %646, %647 : vector<2x32xf32>
    %649 = math.tanh %648 : vector<2x32xf32>
    %650 = arith.mulf %645, %649 : vector<2x32xf32>
    %c2_i32_136 = arith.constant 2 : i32
    %651 = vector.broadcast %c2_i32_136 : i32 to vector<2x1xi32>
    %652 = arith.cmpi sgt, %0, %651 : vector<2x1xi32>
    %653 = vector.shape_cast %652 : vector<2x1xi1> to vector<2x1xi1>
    %654 = vector.broadcast %653 : vector<2x1xi1> to vector<2x32xi1>
    %655 = arith.select %654, %650, %593 : vector<2x32xi1>, vector<2x32xf32>
    %656 = vector.shape_cast %652 : vector<2x1xi1> to vector<2x1xi1>
    %657 = vector.broadcast %656 : vector<2x1xi1> to vector<2x32xi1>
    %658 = arith.select %657, %648, %596 : vector<2x32xi1>, vector<2x32xf32>
    %cst_137 = arith.constant 0.000000e+00 : f32
    %659 = vector.shape_cast %652 : vector<2x1xi1> to vector<2x1xi1>
    %660 = vector.broadcast %659 : vector<2x1xi1> to vector<2x32xi1>
    %661 = vector.broadcast %cst_137 : f32 to vector<2x32xf32>
    %662 = arith.select %660, %650, %661 : vector<2x32xi1>, vector<2x32xf32>
    %c4_138 = arith.constant 4 : index
    %c0_139 = arith.constant 0 : index
    %663 = vector.load %arg17[%c4_138, %c0_139] : memref<16x64xf32, #tpu.memory_space<vmem>>, vector<2x32xf32>
    tpu.vector_store %arg17[%c4_138, %c0_139], %662 {strides = array<i32>} : memref<16x64xf32, #tpu.memory_space<vmem>>, vector<2x32xf32>,
    %664 = vector.extract_strided_slice %502 {offsets = [10, 128], sizes = [2, 128], strides = [1, 1]} : vector<16x256xf32> to vector<2x128xf32>
    %cst_140 = arith.constant dense<0.000000e+00> : vector<2x128xf32>
    %665 = tpu.matmul %624, %504, %cst_140 {dimension_numbers = #tpu.dot_dimension_numbers<[1], [0], [0], [1], [0, 0, 1, 1], [], []>} : vector<2x32xf32>, vector<32x128xf32>, vector<2x128xf32> -> vector<2x128xf32>
    %666 = arith.addf %664, %665 : vector<2x128xf32>
    %667 = arith.negf %666 : vector<2x128xf32>
    %668 = math.exp %667 : vector<2x128xf32>
    %cst_141 = arith.constant 1.000000e+00 : f32
    %669 = vector.broadcast %cst_141 : f32 to vector<2x128xf32>
    %670 = arith.addf %669, %668 : vector<2x128xf32>
    %671 = arith.divf %669, %670 : vector<2x128xf32>
    %672 = math.tanh %666 : vector<2x128xf32>
    %673 = vector.extract_strided_slice %671 {offsets = [0, 0], sizes = [2, 32], strides = [1, 1]} : vector<2x128xf32> to vector<2x32xf32>
    %674 = vector.extract_strided_slice %671 {offsets = [0, 32], sizes = [2, 32], strides = [1, 1]} : vector<2x128xf32> to vector<2x32xf32>
    %675 = vector.extract_strided_slice %672 {offsets = [0, 64], sizes = [2, 32], strides = [1, 1]} : vector<2x128xf32> to vector<2x32xf32>
    %676 = vector.extract_strided_slice %671 {offsets = [0, 96], sizes = [2, 32], strides = [1, 1]} : vector<2x128xf32> to vector<2x32xf32>
    %677 = arith.mulf %674, %627 : vector<2x32xf32>
    %678 = arith.mulf %673, %675 : vector<2x32xf32>
    %679 = arith.addf %677, %678 : vector<2x32xf32>
    %680 = math.tanh %679 : vector<2x32xf32>
    %681 = arith.mulf %676, %680 : vector<2x32xf32>
    %c5_i32_142 = arith.constant 5 : i32
    %682 = vector.broadcast %c5_i32_142 : i32 to vector<2x1xi32>
    %683 = arith.cmpi sgt, %0, %682 : vector<2x1xi32>
    %684 = vector.shape_cast %683 : vector<2x1xi1> to vector<2x1xi1>
    %685 = vector.broadcast %684 : vector<2x1xi1> to vector<2x32xi1>
    %686 = arith.select %685, %681, %624 : vector<2x32xi1>, vector<2x32xf32>
    %687 = vector.shape_cast %683 : vector<2x1xi1> to vector<2x1xi1>
    %688 = vector.broadcast %687 : vector<2x1xi1> to vector<2x32xi1>
    %689 = arith.select %688, %679, %627 : vector<2x32xi1>, vector<2x32xf32>
    %cst_143 = arith.constant 0.000000e+00 : f32
    %690 = vector.shape_cast %683 : vector<2x1xi1> to vector<2x1xi1>
    %691 = vector.broadcast %690 : vector<2x1xi1> to vector<2x32xi1>
    %692 = vector.broadcast %cst_143 : f32 to vector<2x32xf32>
    %693 = arith.select %691, %681, %692 : vector<2x32xi1>, vector<2x32xf32>
    %c10_144 = arith.constant 10 : index
    %c32_145 = arith.constant 32 : index
    %694 = vector.load %arg17[%c10_144, %c32_145] : memref<16x64xf32, #tpu.memory_space<vmem>>, vector<2x32xf32>
    tpu.vector_store %arg17[%c10_144, %c32_145], %693 {strides = array<i32>} : memref<16x64xf32, #tpu.memory_space<vmem>>, vector<2x32xf32>,
    %695 = vector.extract_strided_slice %502 {offsets = [6, 0], sizes = [2, 128], strides = [1, 1]} : vector<16x256xf32> to vector<2x128xf32>
    %cst_146 = arith.constant dense<0.000000e+00> : vector<2x128xf32>
    %696 = tpu.matmul %655, %503, %cst_146 {dimension_numbers = #tpu.dot_dimension_numbers<[1], [0], [0], [1], [0, 0, 1, 1], [], []>} : vector<2x32xf32>, vector<32x128xf32>, vector<2x128xf32> -> vector<2x128xf32>
    %697 = arith.addf %695, %696 : vector<2x128xf32>
    %698 = arith.negf %697 : vector<2x128xf32>
    %699 = math.exp %698 : vector<2x128xf32>
    %cst_147 = arith.constant 1.000000e+00 : f32
    %700 = vector.broadcast %cst_147 : f32 to vector<2x128xf32>
    %701 = arith.addf %700, %699 : vector<2x128xf32>
    %702 = arith.divf %700, %701 : vector<2x128xf32>
    %703 = math.tanh %697 : vector<2x128xf32>
    %704 = vector.extract_strided_slice %702 {offsets = [0, 0], sizes = [2, 32], strides = [1, 1]} : vector<2x128xf32> to vector<2x32xf32>
    %705 = vector.extract_strided_slice %702 {offsets = [0, 32], sizes = [2, 32], strides = [1, 1]} : vector<2x128xf32> to vector<2x32xf32>
    %706 = vector.extract_strided_slice %703 {offsets = [0, 64], sizes = [2, 32], strides = [1, 1]} : vector<2x128xf32> to vector<2x32xf32>
    %707 = vector.extract_strided_slice %702 {offsets = [0, 96], sizes = [2, 32], strides = [1, 1]} : vector<2x128xf32> to vector<2x32xf32>
    %708 = arith.mulf %705, %658 : vector<2x32xf32>
    %709 = arith.mulf %704, %706 : vector<2x32xf32>
    %710 = arith.addf %708, %709 : vector<2x32xf32>
    %711 = math.tanh %710 : vector<2x32xf32>
    %712 = arith.mulf %707, %711 : vector<2x32xf32>
    %c3_i32_148 = arith.constant 3 : i32
    %713 = vector.broadcast %c3_i32_148 : i32 to vector<2x1xi32>
    %714 = arith.cmpi sgt, %0, %713 : vector<2x1xi32>
    %715 = vector.shape_cast %714 : vector<2x1xi1> to vector<2x1xi1>
    %716 = vector.broadcast %715 : vector<2x1xi1> to vector<2x32xi1>
    %717 = arith.select %716, %712, %655 : vector<2x32xi1>, vector<2x32xf32>
    %718 = vector.shape_cast %714 : vector<2x1xi1> to vector<2x1xi1>
    %719 = vector.broadcast %718 : vector<2x1xi1> to vector<2x32xi1>
    %720 = arith.select %719, %710, %658 : vector<2x32xi1>, vector<2x32xf32>
    %cst_149 = arith.constant 0.000000e+00 : f32
    %721 = vector.shape_cast %714 : vector<2x1xi1> to vector<2x1xi1>
    %722 = vector.broadcast %721 : vector<2x1xi1> to vector<2x32xi1>
    %723 = vector.broadcast %cst_149 : f32 to vector<2x32xf32>
    %724 = arith.select %722, %712, %723 : vector<2x32xi1>, vector<2x32xf32>
    %c6_150 = arith.constant 6 : index
    %c0_151 = arith.constant 0 : index
    %725 = vector.load %arg17[%c6_150, %c0_151] : memref<16x64xf32, #tpu.memory_space<vmem>>, vector<2x32xf32>
    tpu.vector_store %arg17[%c6_150, %c0_151], %724 {strides = array<i32>} : memref<16x64xf32, #tpu.memory_space<vmem>>, vector<2x32xf32>,
    %726 = vector.extract_strided_slice %502 {offsets = [8, 128], sizes = [2, 128], strides = [1, 1]} : vector<16x256xf32> to vector<2x128xf32>
    %cst_152 = arith.constant dense<0.000000e+00> : vector<2x128xf32>
    %727 = tpu.matmul %686, %504, %cst_152 {dimension_numbers = #tpu.dot_dimension_numbers<[1], [0], [0], [1], [0, 0, 1, 1], [], []>} : vector<2x32xf32>, vector<32x128xf32>, vector<2x128xf32> -> vector<2x128xf32>
    %728 = arith.addf %726, %727 : vector<2x128xf32>
    %729 = arith.negf %728 : vector<2x128xf32>
    %730 = math.exp %729 : vector<2x128xf32>
    %cst_153 = arith.constant 1.000000e+00 : f32
    %731 = vector.broadcast %cst_153 : f32 to vector<2x128xf32>
    %732 = arith.addf %731, %730 : vector<2x128xf32>
    %733 = arith.divf %731, %732 : vector<2x128xf32>
    %734 = math.tanh %728 : vector<2x128xf32>
    %735 = vector.extract_strided_slice %733 {offsets = [0, 0], sizes = [2, 32], strides = [1, 1]} : vector<2x128xf32> to vector<2x32xf32>
    %736 = vector.extract_strided_slice %733 {offsets = [0, 32], sizes = [2, 32], strides = [1, 1]} : vector<2x128xf32> to vector<2x32xf32>
    %737 = vector.extract_strided_slice %734 {offsets = [0, 64], sizes = [2, 32], strides = [1, 1]} : vector<2x128xf32> to vector<2x32xf32>
    %738 = vector.extract_strided_slice %733 {offsets = [0, 96], sizes = [2, 32], strides = [1, 1]} : vector<2x128xf32> to vector<2x32xf32>
    %739 = arith.mulf %736, %689 : vector<2x32xf32>
    %740 = arith.mulf %735, %737 : vector<2x32xf32>
    %741 = arith.addf %739, %740 : vector<2x32xf32>
    %742 = math.tanh %741 : vector<2x32xf32>
    %743 = arith.mulf %738, %742 : vector<2x32xf32>
    %c4_i32_154 = arith.constant 4 : i32
    %744 = vector.broadcast %c4_i32_154 : i32 to vector<2x1xi32>
    %745 = arith.cmpi sgt, %0, %744 : vector<2x1xi32>
    %746 = vector.shape_cast %745 : vector<2x1xi1> to vector<2x1xi1>
    %747 = vector.broadcast %746 : vector<2x1xi1> to vector<2x32xi1>
    %748 = arith.select %747, %743, %686 : vector<2x32xi1>, vector<2x32xf32>
    %749 = vector.shape_cast %745 : vector<2x1xi1> to vector<2x1xi1>
    %750 = vector.broadcast %749 : vector<2x1xi1> to vector<2x32xi1>
    %751 = arith.select %750, %741, %689 : vector<2x32xi1>, vector<2x32xf32>
    %cst_155 = arith.constant 0.000000e+00 : f32
    %752 = vector.shape_cast %745 : vector<2x1xi1> to vector<2x1xi1>
    %753 = vector.broadcast %752 : vector<2x1xi1> to vector<2x32xi1>
    %754 = vector.broadcast %cst_155 : f32 to vector<2x32xf32>
    %755 = arith.select %753, %743, %754 : vector<2x32xi1>, vector<2x32xf32>
    %c8_156 = arith.constant 8 : index
    %c32_157 = arith.constant 32 : index
    %756 = vector.load %arg17[%c8_156, %c32_157] : memref<16x64xf32, #tpu.memory_space<vmem>>, vector<2x32xf32>
    tpu.vector_store %arg17[%c8_156, %c32_157], %755 {strides = array<i32>} : memref<16x64xf32, #tpu.memory_space<vmem>>, vector<2x32xf32>,
    %757 = vector.extract_strided_slice %502 {offsets = [8, 0], sizes = [2, 128], strides = [1, 1]} : vector<16x256xf32> to vector<2x128xf32>
    %cst_158 = arith.constant dense<0.000000e+00> : vector<2x128xf32>
    %758 = tpu.matmul %717, %503, %cst_158 {dimension_numbers = #tpu.dot_dimension_numbers<[1], [0], [0], [1], [0, 0, 1, 1], [], []>} : vector<2x32xf32>, vector<32x128xf32>, vector<2x128xf32> -> vector<2x128xf32>
    %759 = arith.addf %757, %758 : vector<2x128xf32>
    %760 = arith.negf %759 : vector<2x128xf32>
    %761 = math.exp %760 : vector<2x128xf32>
    %cst_159 = arith.constant 1.000000e+00 : f32
    %762 = vector.broadcast %cst_159 : f32 to vector<2x128xf32>
    %763 = arith.addf %762, %761 : vector<2x128xf32>
    %764 = arith.divf %762, %763 : vector<2x128xf32>
    %765 = math.tanh %759 : vector<2x128xf32>
    %766 = vector.extract_strided_slice %764 {offsets = [0, 0], sizes = [2, 32], strides = [1, 1]} : vector<2x128xf32> to vector<2x32xf32>
    %767 = vector.extract_strided_slice %764 {offsets = [0, 32], sizes = [2, 32], strides = [1, 1]} : vector<2x128xf32> to vector<2x32xf32>
    %768 = vector.extract_strided_slice %765 {offsets = [0, 64], sizes = [2, 32], strides = [1, 1]} : vector<2x128xf32> to vector<2x32xf32>
    %769 = vector.extract_strided_slice %764 {offsets = [0, 96], sizes = [2, 32], strides = [1, 1]} : vector<2x128xf32> to vector<2x32xf32>
    %770 = arith.mulf %767, %720 : vector<2x32xf32>
    %771 = arith.mulf %766, %768 : vector<2x32xf32>
    %772 = arith.addf %770, %771 : vector<2x32xf32>
    %773 = math.tanh %772 : vector<2x32xf32>
    %774 = arith.mulf %769, %773 : vector<2x32xf32>
    %c4_i32_160 = arith.constant 4 : i32
    %775 = vector.broadcast %c4_i32_160 : i32 to vector<2x1xi32>
    %776 = arith.cmpi sgt, %0, %775 : vector<2x1xi32>
    %777 = vector.shape_cast %776 : vector<2x1xi1> to vector<2x1xi1>
    %778 = vector.broadcast %777 : vector<2x1xi1> to vector<2x32xi1>
    %779 = arith.select %778, %774, %717 : vector<2x32xi1>, vector<2x32xf32>
    %780 = vector.shape_cast %776 : vector<2x1xi1> to vector<2x1xi1>
    %781 = vector.broadcast %780 : vector<2x1xi1> to vector<2x32xi1>
    %782 = arith.select %781, %772, %720 : vector<2x32xi1>, vector<2x32xf32>
    %cst_161 = arith.constant 0.000000e+00 : f32
    %783 = vector.shape_cast %776 : vector<2x1xi1> to vector<2x1xi1>
    %784 = vector.broadcast %783 : vector<2x1xi1> to vector<2x32xi1>
    %785 = vector.broadcast %cst_161 : f32 to vector<2x32xf32>
    %786 = arith.select %784, %774, %785 : vector<2x32xi1>, vector<2x32xf32>
    %c8_162 = arith.constant 8 : index
    %c0_163 = arith.constant 0 : index
    %787 = vector.load %arg17[%c8_162, %c0_163] : memref<16x64xf32, #tpu.memory_space<vmem>>, vector<2x32xf32>
    tpu.vector_store %arg17[%c8_162, %c0_163], %786 {strides = array<i32>} : memref<16x64xf32, #tpu.memory_space<vmem>>, vector<2x32xf32>,
    %788 = vector.extract_strided_slice %502 {offsets = [6, 128], sizes = [2, 128], strides = [1, 1]} : vector<16x256xf32> to vector<2x128xf32>
    %cst_164 = arith.constant dense<0.000000e+00> : vector<2x128xf32>
    %789 = tpu.matmul %748, %504, %cst_164 {dimension_numbers = #tpu.dot_dimension_numbers<[1], [0], [0], [1], [0, 0, 1, 1], [], []>} : vector<2x32xf32>, vector<32x128xf32>, vector<2x128xf32> -> vector<2x128xf32>
    %790 = arith.addf %788, %789 : vector<2x128xf32>
    %791 = arith.negf %790 : vector<2x128xf32>
    %792 = math.exp %791 : vector<2x128xf32>
    %cst_165 = arith.constant 1.000000e+00 : f32
    %793 = vector.broadcast %cst_165 : f32 to vector<2x128xf32>
    %794 = arith.addf %793, %792 : vector<2x128xf32>
    %795 = arith.divf %793, %794 : vector<2x128xf32>
    %796 = math.tanh %790 : vector<2x128xf32>
    %797 = vector.extract_strided_slice %795 {offsets = [0, 0], sizes = [2, 32], strides = [1, 1]} : vector<2x128xf32> to vector<2x32xf32>
    %798 = vector.extract_strided_slice %795 {offsets = [0, 32], sizes = [2, 32], strides = [1, 1]} : vector<2x128xf32> to vector<2x32xf32>
    %799 = vector.extract_strided_slice %796 {offsets = [0, 64], sizes = [2, 32], strides = [1, 1]} : vector<2x128xf32> to vector<2x32xf32>
    %800 = vector.extract_strided_slice %795 {offsets = [0, 96], sizes = [2, 32], strides = [1, 1]} : vector<2x128xf32> to vector<2x32xf32>
    %801 = arith.mulf %798, %751 : vector<2x32xf32>
    %802 = arith.mulf %797, %799 : vector<2x32xf32>
    %803 = arith.addf %801, %802 : vector<2x32xf32>
    %804 = math.tanh %803 : vector<2x32xf32>
    %805 = arith.mulf %800, %804 : vector<2x32xf32>
    %c3_i32_166 = arith.constant 3 : i32
    %806 = vector.broadcast %c3_i32_166 : i32 to vector<2x1xi32>
    %807 = arith.cmpi sgt, %0, %806 : vector<2x1xi32>
    %808 = vector.shape_cast %807 : vector<2x1xi1> to vector<2x1xi1>
    %809 = vector.broadcast %808 : vector<2x1xi1> to vector<2x32xi1>
    %810 = arith.select %809, %805, %748 : vector<2x32xi1>, vector<2x32xf32>
    %811 = vector.shape_cast %807 : vector<2x1xi1> to vector<2x1xi1>
    %812 = vector.broadcast %811 : vector<2x1xi1> to vector<2x32xi1>
    %813 = arith.select %812, %803, %751 : vector<2x32xi1>, vector<2x32xf32>
    %cst_167 = arith.constant 0.000000e+00 : f32
    %814 = vector.shape_cast %807 : vector<2x1xi1> to vector<2x1xi1>
    %815 = vector.broadcast %814 : vector<2x1xi1> to vector<2x32xi1>
    %816 = vector.broadcast %cst_167 : f32 to vector<2x32xf32>
    %817 = arith.select %815, %805, %816 : vector<2x32xi1>, vector<2x32xf32>
    %c6_168 = arith.constant 6 : index
    %c32_169 = arith.constant 32 : index
    %818 = vector.load %arg17[%c6_168, %c32_169] : memref<16x64xf32, #tpu.memory_space<vmem>>, vector<2x32xf32>
    tpu.vector_store %arg17[%c6_168, %c32_169], %817 {strides = array<i32>} : memref<16x64xf32, #tpu.memory_space<vmem>>, vector<2x32xf32>,
    %819 = vector.extract_strided_slice %502 {offsets = [10, 0], sizes = [2, 128], strides = [1, 1]} : vector<16x256xf32> to vector<2x128xf32>
    %cst_170 = arith.constant dense<0.000000e+00> : vector<2x128xf32>
    %820 = tpu.matmul %779, %503, %cst_170 {dimension_numbers = #tpu.dot_dimension_numbers<[1], [0], [0], [1], [0, 0, 1, 1], [], []>} : vector<2x32xf32>, vector<32x128xf32>, vector<2x128xf32> -> vector<2x128xf32>
    %821 = arith.addf %819, %820 : vector<2x128xf32>
    %822 = arith.negf %821 : vector<2x128xf32>
    %823 = math.exp %822 : vector<2x128xf32>
    %cst_171 = arith.constant 1.000000e+00 : f32
    %824 = vector.broadcast %cst_171 : f32 to vector<2x128xf32>
    %825 = arith.addf %824, %823 : vector<2x128xf32>
    %826 = arith.divf %824, %825 : vector<2x128xf32>
    %827 = math.tanh %821 : vector<2x128xf32>
    %828 = vector.extract_strided_slice %826 {offsets = [0, 0], sizes = [2, 32], strides = [1, 1]} : vector<2x128xf32> to vector<2x32xf32>
    %829 = vector.extract_strided_slice %826 {offsets = [0, 32], sizes = [2, 32], strides = [1, 1]} : vector<2x128xf32> to vector<2x32xf32>
    %830 = vector.extract_strided_slice %827 {offsets = [0, 64], sizes = [2, 32], strides = [1, 1]} : vector<2x128xf32> to vector<2x32xf32>
    %831 = vector.extract_strided_slice %826 {offsets = [0, 96], sizes = [2, 32], strides = [1, 1]} : vector<2x128xf32> to vector<2x32xf32>
    %832 = arith.mulf %829, %782 : vector<2x32xf32>
    %833 = arith.mulf %828, %830 : vector<2x32xf32>
    %834 = arith.addf %832, %833 : vector<2x32xf32>
    %835 = math.tanh %834 : vector<2x32xf32>
    %836 = arith.mulf %831, %835 : vector<2x32xf32>
    %c5_i32_172 = arith.constant 5 : i32
    %837 = vector.broadcast %c5_i32_172 : i32 to vector<2x1xi32>
    %838 = arith.cmpi sgt, %0, %837 : vector<2x1xi32>
    %839 = vector.shape_cast %838 : vector<2x1xi1> to vector<2x1xi1>
    %840 = vector.broadcast %839 : vector<2x1xi1> to vector<2x32xi1>
    %841 = arith.select %840, %836, %779 : vector<2x32xi1>, vector<2x32xf32>
    %842 = vector.shape_cast %838 : vector<2x1xi1> to vector<2x1xi1>
    %843 = vector.broadcast %842 : vector<2x1xi1> to vector<2x32xi1>
    %844 = arith.select %843, %834, %782 : vector<2x32xi1>, vector<2x32xf32>
    %cst_173 = arith.constant 0.000000e+00 : f32
    %845 = vector.shape_cast %838 : vector<2x1xi1> to vector<2x1xi1>
    %846 = vector.broadcast %845 : vector<2x1xi1> to vector<2x32xi1>
    %847 = vector.broadcast %cst_173 : f32 to vector<2x32xf32>
    %848 = arith.select %846, %836, %847 : vector<2x32xi1>, vector<2x32xf32>
    %c10_174 = arith.constant 10 : index
    %c0_175 = arith.constant 0 : index
    %849 = vector.load %arg17[%c10_174, %c0_175] : memref<16x64xf32, #tpu.memory_space<vmem>>, vector<2x32xf32>
    tpu.vector_store %arg17[%c10_174, %c0_175], %848 {strides = array<i32>} : memref<16x64xf32, #tpu.memory_space<vmem>>, vector<2x32xf32>,
    %850 = vector.extract_strided_slice %502 {offsets = [4, 128], sizes = [2, 128], strides = [1, 1]} : vector<16x256xf32> to vector<2x128xf32>
    %cst_176 = arith.constant dense<0.000000e+00> : vector<2x128xf32>
    %851 = tpu.matmul %810, %504, %cst_176 {dimension_numbers = #tpu.dot_dimension_numbers<[1], [0], [0], [1], [0, 0, 1, 1], [], []>} : vector<2x32xf32>, vector<32x128xf32>, vector<2x128xf32> -> vector<2x128xf32>
    %852 = arith.addf %850, %851 : vector<2x128xf32>
    %853 = arith.negf %852 : vector<2x128xf32>
    %854 = math.exp %853 : vector<2x128xf32>
    %cst_177 = arith.constant 1.000000e+00 : f32
    %855 = vector.broadcast %cst_177 : f32 to vector<2x128xf32>
    %856 = arith.addf %855, %854 : vector<2x128xf32>
    %857 = arith.divf %855, %856 : vector<2x128xf32>
    %858 = math.tanh %852 : vector<2x128xf32>
    %859 = vector.extract_strided_slice %857 {offsets = [0, 0], sizes = [2, 32], strides = [1, 1]} : vector<2x128xf32> to vector<2x32xf32>
    %860 = vector.extract_strided_slice %857 {offsets = [0, 32], sizes = [2, 32], strides = [1, 1]} : vector<2x128xf32> to vector<2x32xf32>
    %861 = vector.extract_strided_slice %858 {offsets = [0, 64], sizes = [2, 32], strides = [1, 1]} : vector<2x128xf32> to vector<2x32xf32>
    %862 = vector.extract_strided_slice %857 {offsets = [0, 96], sizes = [2, 32], strides = [1, 1]} : vector<2x128xf32> to vector<2x32xf32>
    %863 = arith.mulf %860, %813 : vector<2x32xf32>
    %864 = arith.mulf %859, %861 : vector<2x32xf32>
    %865 = arith.addf %863, %864 : vector<2x32xf32>
    %866 = math.tanh %865 : vector<2x32xf32>
    %867 = arith.mulf %862, %866 : vector<2x32xf32>
    %c2_i32_178 = arith.constant 2 : i32
    %868 = vector.broadcast %c2_i32_178 : i32 to vector<2x1xi32>
    %869 = arith.cmpi sgt, %0, %868 : vector<2x1xi32>
    %870 = vector.shape_cast %869 : vector<2x1xi1> to vector<2x1xi1>
    %871 = vector.broadcast %870 : vector<2x1xi1> to vector<2x32xi1>
    %872 = arith.select %871, %867, %810 : vector<2x32xi1>, vector<2x32xf32>
    %873 = vector.shape_cast %869 : vector<2x1xi1> to vector<2x1xi1>
    %874 = vector.broadcast %873 : vector<2x1xi1> to vector<2x32xi1>
    %875 = arith.select %874, %865, %813 : vector<2x32xi1>, vector<2x32xf32>
    %cst_179 = arith.constant 0.000000e+00 : f32
    %876 = vector.shape_cast %869 : vector<2x1xi1> to vector<2x1xi1>
    %877 = vector.broadcast %876 : vector<2x1xi1> to vector<2x32xi1>
    %878 = vector.broadcast %cst_179 : f32 to vector<2x32xf32>
    %879 = arith.select %877, %867, %878 : vector<2x32xi1>, vector<2x32xf32>
    %c4_180 = arith.constant 4 : index
    %c32_181 = arith.constant 32 : index
    %880 = vector.load %arg17[%c4_180, %c32_181] : memref<16x64xf32, #tpu.memory_space<vmem>>, vector<2x32xf32>
    tpu.vector_store %arg17[%c4_180, %c32_181], %879 {strides = array<i32>} : memref<16x64xf32, #tpu.memory_space<vmem>>, vector<2x32xf32>,
    %881 = vector.extract_strided_slice %502 {offsets = [12, 0], sizes = [2, 128], strides = [1, 1]} : vector<16x256xf32> to vector<2x128xf32>
    %cst_182 = arith.constant dense<0.000000e+00> : vector<2x128xf32>
    %882 = tpu.matmul %841, %503, %cst_182 {dimension_numbers = #tpu.dot_dimension_numbers<[1], [0], [0], [1], [0, 0, 1, 1], [], []>} : vector<2x32xf32>, vector<32x128xf32>, vector<2x128xf32> -> vector<2x128xf32>
    %883 = arith.addf %881, %882 : vector<2x128xf32>
    %884 = arith.negf %883 : vector<2x128xf32>
    %885 = math.exp %884 : vector<2x128xf32>
    %cst_183 = arith.constant 1.000000e+00 : f32
    %886 = vector.broadcast %cst_183 : f32 to vector<2x128xf32>
    %887 = arith.addf %886, %885 : vector<2x128xf32>
    %888 = arith.divf %886, %887 : vector<2x128xf32>
    %889 = math.tanh %883 : vector<2x128xf32>
    %890 = vector.extract_strided_slice %888 {offsets = [0, 0], sizes = [2, 32], strides = [1, 1]} : vector<2x128xf32> to vector<2x32xf32>
    %891 = vector.extract_strided_slice %888 {offsets = [0, 32], sizes = [2, 32], strides = [1, 1]} : vector<2x128xf32> to vector<2x32xf32>
    %892 = vector.extract_strided_slice %889 {offsets = [0, 64], sizes = [2, 32], strides = [1, 1]} : vector<2x128xf32> to vector<2x32xf32>
    %893 = vector.extract_strided_slice %888 {offsets = [0, 96], sizes = [2, 32], strides = [1, 1]} : vector<2x128xf32> to vector<2x32xf32>
    %894 = arith.mulf %891, %844 : vector<2x32xf32>
    %895 = arith.mulf %890, %892 : vector<2x32xf32>
    %896 = arith.addf %894, %895 : vector<2x32xf32>
    %897 = math.tanh %896 : vector<2x32xf32>
    %898 = arith.mulf %893, %897 : vector<2x32xf32>
    %c6_i32_184 = arith.constant 6 : i32
    %899 = vector.broadcast %c6_i32_184 : i32 to vector<2x1xi32>
    %900 = arith.cmpi sgt, %0, %899 : vector<2x1xi32>
    %901 = vector.shape_cast %900 : vector<2x1xi1> to vector<2x1xi1>
    %902 = vector.broadcast %901 : vector<2x1xi1> to vector<2x32xi1>
    %903 = arith.select %902, %898, %841 : vector<2x32xi1>, vector<2x32xf32>
    %904 = vector.shape_cast %900 : vector<2x1xi1> to vector<2x1xi1>
    %905 = vector.broadcast %904 : vector<2x1xi1> to vector<2x32xi1>
    %906 = arith.select %905, %896, %844 : vector<2x32xi1>, vector<2x32xf32>
    %cst_185 = arith.constant 0.000000e+00 : f32
    %907 = vector.shape_cast %900 : vector<2x1xi1> to vector<2x1xi1>
    %908 = vector.broadcast %907 : vector<2x1xi1> to vector<2x32xi1>
    %909 = vector.broadcast %cst_185 : f32 to vector<2x32xf32>
    %910 = arith.select %908, %898, %909 : vector<2x32xi1>, vector<2x32xf32>
    %c12_186 = arith.constant 12 : index
    %c0_187 = arith.constant 0 : index
    %911 = vector.load %arg17[%c12_186, %c0_187] : memref<16x64xf32, #tpu.memory_space<vmem>>, vector<2x32xf32>
    tpu.vector_store %arg17[%c12_186, %c0_187], %910 {strides = array<i32>} : memref<16x64xf32, #tpu.memory_space<vmem>>, vector<2x32xf32>,
    %912 = vector.extract_strided_slice %502 {offsets = [2, 128], sizes = [2, 128], strides = [1, 1]} : vector<16x256xf32> to vector<2x128xf32>
    %cst_188 = arith.constant dense<0.000000e+00> : vector<2x128xf32>
    %913 = tpu.matmul %872, %504, %cst_188 {dimension_numbers = #tpu.dot_dimension_numbers<[1], [0], [0], [1], [0, 0, 1, 1], [], []>} : vector<2x32xf32>, vector<32x128xf32>, vector<2x128xf32> -> vector<2x128xf32>
    %914 = arith.addf %912, %913 : vector<2x128xf32>
    %915 = arith.negf %914 : vector<2x128xf32>
    %916 = math.exp %915 : vector<2x128xf32>
    %cst_189 = arith.constant 1.000000e+00 : f32
    %917 = vector.broadcast %cst_189 : f32 to vector<2x128xf32>
    %918 = arith.addf %917, %916 : vector<2x128xf32>
    %919 = arith.divf %917, %918 : vector<2x128xf32>
    %920 = math.tanh %914 : vector<2x128xf32>
    %921 = vector.extract_strided_slice %919 {offsets = [0, 0], sizes = [2, 32], strides = [1, 1]} : vector<2x128xf32> to vector<2x32xf32>
    %922 = vector.extract_strided_slice %919 {offsets = [0, 32], sizes = [2, 32], strides = [1, 1]} : vector<2x128xf32> to vector<2x32xf32>
    %923 = vector.extract_strided_slice %920 {offsets = [0, 64], sizes = [2, 32], strides = [1, 1]} : vector<2x128xf32> to vector<2x32xf32>
    %924 = vector.extract_strided_slice %919 {offsets = [0, 96], sizes = [2, 32], strides = [1, 1]} : vector<2x128xf32> to vector<2x32xf32>
    %925 = arith.mulf %922, %875 : vector<2x32xf32>
    %926 = arith.mulf %921, %923 : vector<2x32xf32>
    %927 = arith.addf %925, %926 : vector<2x32xf32>
    %928 = math.tanh %927 : vector<2x32xf32>
    %929 = arith.mulf %924, %928 : vector<2x32xf32>
    %c1_i32_190 = arith.constant 1 : i32
    %930 = vector.broadcast %c1_i32_190 : i32 to vector<2x1xi32>
    %931 = arith.cmpi sgt, %0, %930 : vector<2x1xi32>
    %932 = vector.shape_cast %931 : vector<2x1xi1> to vector<2x1xi1>
    %933 = vector.broadcast %932 : vector<2x1xi1> to vector<2x32xi1>
    %934 = arith.select %933, %929, %872 : vector<2x32xi1>, vector<2x32xf32>
    %935 = vector.shape_cast %931 : vector<2x1xi1> to vector<2x1xi1>
    %936 = vector.broadcast %935 : vector<2x1xi1> to vector<2x32xi1>
    %937 = arith.select %936, %927, %875 : vector<2x32xi1>, vector<2x32xf32>
    %cst_191 = arith.constant 0.000000e+00 : f32
    %938 = vector.shape_cast %931 : vector<2x1xi1> to vector<2x1xi1>
    %939 = vector.broadcast %938 : vector<2x1xi1> to vector<2x32xi1>
    %940 = vector.broadcast %cst_191 : f32 to vector<2x32xf32>
    %941 = arith.select %939, %929, %940 : vector<2x32xi1>, vector<2x32xf32>
    %c2_192 = arith.constant 2 : index
    %c32_193 = arith.constant 32 : index
    %942 = vector.load %arg17[%c2_192, %c32_193] : memref<16x64xf32, #tpu.memory_space<vmem>>, vector<2x32xf32>
    tpu.vector_store %arg17[%c2_192, %c32_193], %941 {strides = array<i32>} : memref<16x64xf32, #tpu.memory_space<vmem>>, vector<2x32xf32>,
    %943 = vector.extract_strided_slice %502 {offsets = [14, 0], sizes = [2, 128], strides = [1, 1]} : vector<16x256xf32> to vector<2x128xf32>
    %cst_194 = arith.constant dense<0.000000e+00> : vector<2x128xf32>
    %944 = tpu.matmul %903, %503, %cst_194 {dimension_numbers = #tpu.dot_dimension_numbers<[1], [0], [0], [1], [0, 0, 1, 1], [], []>} : vector<2x32xf32>, vector<32x128xf32>, vector<2x128xf32> -> vector<2x128xf32>
    %945 = arith.addf %943, %944 : vector<2x128xf32>
    %946 = arith.negf %945 : vector<2x128xf32>
    %947 = math.exp %946 : vector<2x128xf32>
    %cst_195 = arith.constant 1.000000e+00 : f32
    %948 = vector.broadcast %cst_195 : f32 to vector<2x128xf32>
    %949 = arith.addf %948, %947 : vector<2x128xf32>
    %950 = arith.divf %948, %949 : vector<2x128xf32>
    %951 = math.tanh %945 : vector<2x128xf32>
    %952 = vector.extract_strided_slice %950 {offsets = [0, 0], sizes = [2, 32], strides = [1, 1]} : vector<2x128xf32> to vector<2x32xf32>
    %953 = vector.extract_strided_slice %950 {offsets = [0, 32], sizes = [2, 32], strides = [1, 1]} : vector<2x128xf32> to vector<2x32xf32>
    %954 = vector.extract_strided_slice %951 {offsets = [0, 64], sizes = [2, 32], strides = [1, 1]} : vector<2x128xf32> to vector<2x32xf32>
    %955 = vector.extract_strided_slice %950 {offsets = [0, 96], sizes = [2, 32], strides = [1, 1]} : vector<2x128xf32> to vector<2x32xf32>
    %956 = arith.mulf %953, %906 : vector<2x32xf32>
    %957 = arith.mulf %952, %954 : vector<2x32xf32>
    %958 = arith.addf %956, %957 : vector<2x32xf32>
    %959 = math.tanh %958 : vector<2x32xf32>
    %960 = arith.mulf %955, %959 : vector<2x32xf32>
    %c7_i32_196 = arith.constant 7 : i32
    %961 = vector.broadcast %c7_i32_196 : i32 to vector<2x1xi32>
    %962 = arith.cmpi sgt, %0, %961 : vector<2x1xi32>
    %cst_197 = arith.constant 0.000000e+00 : f32
    %963 = vector.shape_cast %962 : vector<2x1xi1> to vector<2x1xi1>
    %964 = vector.broadcast %963 : vector<2x1xi1> to vector<2x32xi1>
    %965 = vector.broadcast %cst_197 : f32 to vector<2x32xf32>
    %966 = arith.select %964, %960, %965 : vector<2x32xi1>, vector<2x32xf32>
    %c14_198 = arith.constant 14 : index
    %c0_199 = arith.constant 0 : index
    %967 = vector.load %arg17[%c14_198, %c0_199] : memref<16x64xf32, #tpu.memory_space<vmem>>, vector<2x32xf32>
    tpu.vector_store %arg17[%c14_198, %c0_199], %966 {strides = array<i32>} : memref<16x64xf32, #tpu.memory_space<vmem>>, vector<2x32xf32>,
    %968 = vector.extract_strided_slice %502 {offsets = [0, 128], sizes = [2, 128], strides = [1, 1]} : vector<16x256xf32> to vector<2x128xf32>
    %cst_200 = arith.constant dense<0.000000e+00> : vector<2x128xf32>
    %969 = tpu.matmul %934, %504, %cst_200 {dimension_numbers = #tpu.dot_dimension_numbers<[1], [0], [0], [1], [0, 0, 1, 1], [], []>} : vector<2x32xf32>, vector<32x128xf32>, vector<2x128xf32> -> vector<2x128xf32>
    %970 = arith.addf %968, %969 : vector<2x128xf32>
    %971 = arith.negf %970 : vector<2x128xf32>
    %972 = math.exp %971 : vector<2x128xf32>
    %cst_201 = arith.constant 1.000000e+00 : f32
    %973 = vector.broadcast %cst_201 : f32 to vector<2x128xf32>
    %974 = arith.addf %973, %972 : vector<2x128xf32>
    %975 = arith.divf %973, %974 : vector<2x128xf32>
    %976 = math.tanh %970 : vector<2x128xf32>
    %977 = vector.extract_strided_slice %975 {offsets = [0, 0], sizes = [2, 32], strides = [1, 1]} : vector<2x128xf32> to vector<2x32xf32>
    %978 = vector.extract_strided_slice %975 {offsets = [0, 32], sizes = [2, 32], strides = [1, 1]} : vector<2x128xf32> to vector<2x32xf32>
    %979 = vector.extract_strided_slice %976 {offsets = [0, 64], sizes = [2, 32], strides = [1, 1]} : vector<2x128xf32> to vector<2x32xf32>
    %980 = vector.extract_strided_slice %975 {offsets = [0, 96], sizes = [2, 32], strides = [1, 1]} : vector<2x128xf32> to vector<2x32xf32>
    %981 = arith.mulf %978, %937 : vector<2x32xf32>
    %982 = arith.mulf %977, %979 : vector<2x32xf32>
    %983 = arith.addf %981, %982 : vector<2x32xf32>
    %984 = math.tanh %983 : vector<2x32xf32>
    %985 = arith.mulf %980, %984 : vector<2x32xf32>
    %c0_i32_202 = arith.constant 0 : i32
    %986 = vector.broadcast %c0_i32_202 : i32 to vector<2x1xi32>
    %987 = arith.cmpi sgt, %0, %986 : vector<2x1xi32>
    %cst_203 = arith.constant 0.000000e+00 : f32
    %988 = vector.shape_cast %987 : vector<2x1xi1> to vector<2x1xi1>
    %989 = vector.broadcast %988 : vector<2x1xi1> to vector<2x32xi1>
    %990 = vector.broadcast %cst_203 : f32 to vector<2x32xf32>
    %991 = arith.select %989, %985, %990 : vector<2x32xi1>, vector<2x32xf32>
    %c0_204 = arith.constant 0 : index
    %c32_205 = arith.constant 32 : index
    %992 = vector.load %arg17[%c0_204, %c32_205] : memref<16x64xf32, #tpu.memory_space<vmem>>, vector<2x32xf32>
    tpu.vector_store %arg17[%c0_204, %c32_205], %991 {strides = array<i32>} : memref<16x64xf32, #tpu.memory_space<vmem>>, vector<2x32xf32>,
    %c0_206 = arith.constant 0 : index
    %c0_207 = arith.constant 0 : index
    %993 = vector.load %arg17[%c0_206, %c0_207] : memref<16x64xf32, #tpu.memory_space<vmem>>, vector<16x64xf32>
    %c0_208 = arith.constant 0 : index
    %c0_209 = arith.constant 0 : index
    %994 = vector.load %arg10[%c0_208, %c0_209] : memref<64x32xf32, #tpu.memory_space<vmem>>, vector<64x32xf32>
    %cst_210 = arith.constant dense<0.000000e+00> : vector<16x32xf32>
    %995 = tpu.matmul %993, %994, %cst_210 {dimension_numbers = #tpu.dot_dimension_numbers<[1], [0], [0], [1], [0, 0, 1, 1], [], []>} : vector<16x64xf32>, vector<64x32xf32>, vector<16x32xf32> -> vector<16x32xf32>
    %c0_211 = arith.constant 0 : index
    %c0_212 = arith.constant 0 : index
    %996 = vector.load %arg11[%c0_211, %c0_212] : memref<1x32xf32, #tpu.memory_space<vmem>>, vector<1x32xf32>
    %997 = vector.broadcast %996 : vector<1x32xf32> to vector<16x32xf32>
    %998 = arith.addf %995, %997 : vector<16x32xf32>
    %c0_213 = arith.constant 0 : index
    %c0_214 = arith.constant 0 : index
    %999 = vector.load %arg14[%c0_213, %c0_214] : memref<16x32xf32, #tpu.memory_space<vmem>>, vector<16x32xf32>
    tpu.vector_store %arg14[%c0_213, %c0_214], %998 {strides = array<i32>} : memref<16x32xf32, #tpu.memory_space<vmem>>, vector<16x32xf32>,
    %1000 = vector.extract_strided_slice %998 {offsets = [0, 0], sizes = [2, 32], strides = [1, 1]} : vector<16x32xf32> to vector<2x32xf32>
    %c0_215 = arith.constant 0 : index
    %c0_216 = arith.constant 0 : index
    %1001 = vector.load %arg12[%c0_215, %c0_216] : memref<32x32xf32, #tpu.memory_space<vmem>>, vector<32x32xf32>
    %cst_217 = arith.constant dense<0.000000e+00> : vector<2x32xf32>
    %1002 = tpu.matmul %1000, %1001, %cst_217 {dimension_numbers = #tpu.dot_dimension_numbers<[1], [0], [0], [1], [0, 0, 1, 1], [], []>} : vector<2x32xf32>, vector<32x32xf32>, vector<2x32xf32> -> vector<2x32xf32>
    %c0_218 = arith.constant 0 : index
    %c0_219 = arith.constant 0 : index
    %1003 = vector.load %arg13[%c0_218, %c0_219] : memref<1x32xf32, #tpu.memory_space<vmem>>, vector<1x32xf32>
    %1004 = vector.broadcast %1003 : vector<1x32xf32> to vector<2x32xf32>
    %1005 = arith.addf %1002, %1004 : vector<2x32xf32>
    %1006 = math.tanh %1005 : vector<2x32xf32>
    %c0_220 = arith.constant 0 : index
    %c0_221 = arith.constant 0 : index
    %1007 = vector.load %arg15[%c0_220, %c0_221] : memref<2x32xf32, #tpu.memory_space<vmem>>, vector<2x32xf32>
    tpu.vector_store %arg15[%c0_220, %c0_221], %1006 {strides = array<i32>} : memref<2x32xf32, #tpu.memory_space<vmem>>, vector<2x32xf32>,
    return
  }
}

</mosaic_0001>

<llo_original>
// kernel: tpu_custom_call.1
$region0: #{tpu_custom_call.1}
  #allocation0 [shape = 'u32[]', space=smem, size = 0x4, offset = 0x4, fixed_abs, tag = 'smem constant byte address 0x4 - core index']
  #allocation1 [shape = 'u32[72,128]{1,0:T(1,128)}', space=vmem, size = 0x9000, scoped, tag = 'internal scratch']
  #allocation2 [shape = 'f32[16,64]{1,0:T(8,128)}', space=vmem, size = 0x2000, scoped, tag = 'scratch operand']
  #allocation3 [shape = 'f32[16,64]{1,0:T(8,128)}', space=vmem, size = 0x2000, scoped, tag = 'scratch operand']
  %s0 = inlined_call_operand.vmem [shape: s32[2,1], index: 0, kind: input, shape index: {}]
  %s1 = inlined_call_operand.hbm [shape: f32[16,32], index: 1, kind: input, shape index: {}]
  %s2 = inlined_call_operand.vmem [shape: f32[32,256], index: 2, kind: input, shape index: {}]
  %s3 = inlined_call_operand.vmem [shape: f32[32,128], index: 3, kind: input, shape index: {}]
  %s4 = inlined_call_operand.hbm [shape: f32[32,128], index: 4, kind: input, shape index: {}]
  %s5 = inlined_call_operand.vmem [shape: f32[1,256], index: 5, kind: input, shape index: {}]
  %s6 = inlined_call_operand.hbm [shape: f32[64,256], index: 6, kind: input, shape index: {}]
  %s7 = inlined_call_operand.hbm [shape: f32[32,128], index: 7, kind: input, shape index: {}]
  %s8 = inlined_call_operand.hbm [shape: f32[32,128], index: 8, kind: input, shape index: {}]
  %s9 = inlined_call_operand.vmem [shape: f32[1,256], index: 9, kind: input, shape index: {}]
  %s10 = inlined_call_operand.vmem [shape: f32[64,32], index: 10, kind: input, shape index: {}]
  %s11 = inlined_call_operand.vmem [shape: f32[1,32], index: 11, kind: input, shape index: {}]
  %s12 = inlined_call_operand.hbm [shape: f32[32,32], index: 12, kind: input, shape index: {}]
  %s13 = inlined_call_operand.vmem [shape: f32[1,32], index: 13, kind: input, shape index: {}]
  %s14 = inlined_call_operand.hbm [shape: f32[16,32], index: 14, kind: output, shape index: {0}]
  %s15 = inlined_call_operand.hbm [shape: f32[2,32], index: 15, kind: output, shape index: {1}]
  %16 = xla_tuple %s14, %s15
  %s17 = sld [smem:[#allocation0]]
  $region98: #{tpu_custom_call.1} parent=0
    _
  %s19 = ssub.s32 1, %s17
  %s20 = scalar_select 0, %s19, %s17
  $region1: #{tpu_custom_call.1} parent=0
    #allocation4 [shape = 'u8[8192]{0}', space=vmem, size = 0x2000, scoped, tag = 'input window, operand 1, single buffered']
    #allocation5 [shape = 's32[1]{0}', space=sflag, size = 0x4, scoped, tag = 'scoped memory for tpu_custom_call.1']
    #allocation6 [shape = 's32[1]{0}', space=sflag, size = 0x4, scoped, tag = 'scoped memory for tpu_custom_call.1']
    #allocation7 [shape = 'u8[16384]{0}', space=vmem, size = 0x4000, scoped, tag = 'input window, operand 4, single buffered']
    #allocation8 [shape = 's32[1]{0}', space=sflag, size = 0x4, scoped, tag = 'scoped memory for tpu_custom_call.1']
    #allocation9 [shape = 'u8[65536]{0}', space=vmem, size = 0x10000, scoped, tag = 'input window, operand 6, single buffered']
    #allocation10 [shape = 'u8[16384]{0}', space=vmem, size = 0x4000, scoped, tag = 'input window, operand 7, single buffered']
    #allocation11 [shape = 's32[1]{0}', space=sflag, size = 0x4, scoped, tag = 'scoped memory for tpu_custom_call.1']
    #allocation12 [shape = 'u8[16384]{0}', space=vmem, size = 0x4000, scoped, tag = 'input window, operand 8, single buffered']
    #allocation13 [shape = 'u8[16384]{0}', space=vmem, size = 0x4000, scoped, tag = 'input window, operand 12, single buffered']
    #allocation14 [shape = 's32[1]{0}', space=sflag, size = 0x4, scoped, tag = 'scoped memory for tpu_custom_call.1']
    #allocation15 [shape = 'u8[8192]{0}', space=vmem, size = 0x2000, scoped, tag = 'output window, operand 0, single buffered']
    #allocation16 [shape = 'u8[1024]{0}', space=vmem, size = 0x400, scoped, tag = 'output window, operand 1, single buffered']
    #allocation17 [shape = 's32[1]{0}', space=sflag, size = 0x4, scoped, tag = 'scoped memory for tpu_custom_call.1']
    %21 = vsyncpa [#allocation5], 0
    %22 = vsyncpa [#allocation8], 0
    %23 = vsyncpa [#allocation11], 0
    %24 = vsyncpa [#allocation14], 0
    %25 = vsyncpa [#allocation6], 0
    %26 = vsyncpa [#allocation17], 0
    // Predicated region
    $region2: #{tpu_custom_call.1} parent=1 // pred_check
      _
    $region3: #{tpu_custom_call.1} parent=1 // pred_check_branch
      %28 = sbr.rel (0) target = $region5
    $region4: #{tpu_custom_call.1} parent=1 // pred_region
      _
    $region5: #{tpu_custom_call.1} parent=1 // pred_fallthru
      _
    // Predicated region
    $region6: #{tpu_custom_call.1} parent=1 // pred_check
      _
    $region7: #{tpu_custom_call.1} parent=1 // pred_check_branch
      %30 = sbr.rel (0) target = $region9
    $region8: #{tpu_custom_call.1} parent=1 // pred_region
      %32 = vsyncadd [#allocation5], 0
      %s33 = sshll.u32 %s1, 4
      %s34 = int_to_ptr.hbm [resolvable:$true] %s33
      %s35 = sshll.u32 [#allocation4], 4
      %s36 = int_to_ptr.vmem [resolvable:$true] %s35
      %41 = dma.hbm_to_vmem [thread:$0]  %s34, 256, %s36, [#allocation5], 128, 128, 8
    $region9: #{tpu_custom_call.1} parent=1 // pred_fallthru
      _
    // Predicated region
    $region10: #{tpu_custom_call.1} parent=1 // pred_check
      _
    $region11: #{tpu_custom_call.1} parent=1 // pred_check_branch
      %43 = sbr.rel (0) target = $region13
    $region12: #{tpu_custom_call.1} parent=1 // pred_region
      _
    $region13: #{tpu_custom_call.1} parent=1 // pred_fallthru
      _
    // Predicated region
    $region14: #{tpu_custom_call.1} parent=1 // pred_check
      _
    $region15: #{tpu_custom_call.1} parent=1 // pred_check_branch
      %45 = sbr.rel (0) target = $region17
    $region16: #{tpu_custom_call.1} parent=1 // pred_region
      _
    $region17: #{tpu_custom_call.1} parent=1 // pred_fallthru
      _
    // Predicated region
    $region18: #{tpu_custom_call.1} parent=1 // pred_check
      _
    $region19: #{tpu_custom_call.1} parent=1 // pred_check_branch
      %47 = sbr.rel (0) target = $region21
    $region20: #{tpu_custom_call.1} parent=1 // pred_region
      %49 = vsyncadd [#allocation8], 0
      %s50 = sshll.u32 %s4, 4
      %s51 = int_to_ptr.hbm [resolvable:$true] %s50
      %s52 = sshll.u32 [#allocation7], 4
      %s53 = int_to_ptr.vmem [resolvable:$true] %s52
      %58 = dma.hbm_to_vmem [thread:$0]  %s51, 512, %s53, [#allocation8], 128, 128, 8
    $region21: #{tpu_custom_call.1} parent=1 // pred_fallthru
      _
    // Predicated region
    $region22: #{tpu_custom_call.1} parent=1 // pred_check
      _
    $region23: #{tpu_custom_call.1} parent=1 // pred_check_branch
      %60 = sbr.rel (0) target = $region25
    $region24: #{tpu_custom_call.1} parent=1 // pred_region
      _
    $region25: #{tpu_custom_call.1} parent=1 // pred_fallthru
      _
    // Predicated region
    $region26: #{tpu_custom_call.1} parent=1 // pred_check
      _
    $region27: #{tpu_custom_call.1} parent=1 // pred_check_branch
      %62 = sbr.rel (0) target = $region29
    $region28: #{tpu_custom_call.1} parent=1 // pred_region
      %64 = vsyncadd [#allocation8], 0
      %s65 = sshll.u32 %s6, 4
      %s66 = int_to_ptr.hbm [resolvable:$true] %s65
      %s67 = sshll.u32 [#allocation9], 4
      %s68 = int_to_ptr.vmem [resolvable:$true] %s67
      %73 = dma.hbm_to_vmem [thread:$0]  %s66, 2048, %s68, [#allocation8], 256, 256, 16
    $region29: #{tpu_custom_call.1} parent=1 // pred_fallthru
      _
    // Predicated region
    $region30: #{tpu_custom_call.1} parent=1 // pred_check
      _
    $region31: #{tpu_custom_call.1} parent=1 // pred_check_branch
      %75 = sbr.rel (0) target = $region33
    $region32: #{tpu_custom_call.1} parent=1 // pred_region
      %77 = vsyncadd [#allocation11], 0
      %s78 = sshll.u32 %s7, 4
      %s79 = int_to_ptr.hbm [resolvable:$true] %s78
      %s80 = sshll.u32 [#allocation10], 4
      %s81 = int_to_ptr.vmem [resolvable:$true] %s80
      %86 = dma.hbm_to_vmem [thread:$0]  %s79, 512, %s81, [#allocation11], 128, 128, 8
    $region33: #{tpu_custom_call.1} parent=1 // pred_fallthru
      _
    // Predicated region
    $region34: #{tpu_custom_call.1} parent=1 // pred_check
      _
    $region35: #{tpu_custom_call.1} parent=1 // pred_check_branch
      %88 = sbr.rel (0) target = $region37
    $region36: #{tpu_custom_call.1} parent=1 // pred_region
      %90 = vsyncadd [#allocation11], 0
      %s91 = sshll.u32 %s8, 4
      %s92 = int_to_ptr.hbm [resolvable:$true] %s91
      %s93 = sshll.u32 [#allocation12], 4
      %s94 = int_to_ptr.vmem [resolvable:$true] %s93
      %99 = dma.hbm_to_vmem [thread:$0]  %s92, 512, %s94, [#allocation11], 128, 128, 8
    $region37: #{tpu_custom_call.1} parent=1 // pred_fallthru
      _
    // Predicated region
    $region38: #{tpu_custom_call.1} parent=1 // pred_check
      _
    $region39: #{tpu_custom_call.1} parent=1 // pred_check_branch
      %101 = sbr.rel (0) target = $region41
    $region40: #{tpu_custom_call.1} parent=1 // pred_region
      _
    $region41: #{tpu_custom_call.1} parent=1 // pred_fallthru
      _
    // Predicated region
    $region42: #{tpu_custom_call.1} parent=1 // pred_check
      _
    $region43: #{tpu_custom_call.1} parent=1 // pred_check_branch
      %103 = sbr.rel (0) target = $region45
    $region44: #{tpu_custom_call.1} parent=1 // pred_region
      _
    $region45: #{tpu_custom_call.1} parent=1 // pred_fallthru
      _
    // Predicated region
    $region46: #{tpu_custom_call.1} parent=1 // pred_check
      _
    $region47: #{tpu_custom_call.1} parent=1 // pred_check_branch
      %105 = sbr.rel (0) target = $region49
    $region48: #{tpu_custom_call.1} parent=1 // pred_region
      _
    $region49: #{tpu_custom_call.1} parent=1 // pred_fallthru
      _
    // Predicated region
    $region50: #{tpu_custom_call.1} parent=1 // pred_check
      _
    $region51: #{tpu_custom_call.1} parent=1 // pred_check_branch
      %107 = sbr.rel (0) target = $region53
    $region52: #{tpu_custom_call.1} parent=1 // pred_region
      %109 = vsyncadd [#allocation14], 0
      %s110 = sshll.u32 %s12, 4
      %s111 = int_to_ptr.hbm [resolvable:$true] %s110
      %s112 = sshll.u32 [#allocation13], 4
      %s113 = int_to_ptr.vmem [resolvable:$true] %s112
      %118 = dma.hbm_to_vmem [thread:$0]  %s111, 512, %s113, [#allocation14], 128, 128, 8
    $region53: #{tpu_custom_call.1} parent=1 // pred_fallthru
      _
    // Predicated region
    $region54: #{tpu_custom_call.1} parent=1 // pred_check
      _
    $region55: #{tpu_custom_call.1} parent=1 // pred_check_branch
      %120 = sbr.rel (0) target = $region57
    $region56: #{tpu_custom_call.1} parent=1 // pred_region
      _
    $region57: #{tpu_custom_call.1} parent=1 // pred_fallthru
      _
    // Predicated region
    $region58: #{tpu_custom_call.1} parent=1 // pred_check
      _
    $region59: #{tpu_custom_call.1} parent=1 // pred_check_branch
      %122 = sbr.rel (0) target = $region61
    $region60: #{tpu_custom_call.1} parent=1 // pred_region
      %124 = dma.done [#allocation5], 256
    $region61: #{tpu_custom_call.1} parent=1 // pred_fallthru
      _
    // Predicated region
    $region62: #{tpu_custom_call.1} parent=1 // pred_check
      _
    $region63: #{tpu_custom_call.1} parent=1 // pred_check_branch
      %126 = sbr.rel (0) target = $region65
    $region64: #{tpu_custom_call.1} parent=1 // pred_region
      %128 = dma.done [#allocation8], 512
    $region65: #{tpu_custom_call.1} parent=1 // pred_fallthru
      _
    // Predicated region
    $region66: #{tpu_custom_call.1} parent=1 // pred_check
      _
    $region67: #{tpu_custom_call.1} parent=1 // pred_check_branch
      %130 = sbr.rel (0) target = $region69
    $region68: #{tpu_custom_call.1} parent=1 // pred_region
      %132 = dma.done [#allocation8], 2048
    $region69: #{tpu_custom_call.1} parent=1 // pred_fallthru
      _
    // Predicated region
    $region70: #{tpu_custom_call.1} parent=1 // pred_check
      _
    $region71: #{tpu_custom_call.1} parent=1 // pred_check_branch
      %134 = sbr.rel (0) target = $region73
    $region72: #{tpu_custom_call.1} parent=1 // pred_region
      %136 = dma.done [#allocation11], 512
    $region73: #{tpu_custom_call.1} parent=1 // pred_fallthru
      _
    // Predicated region
    $region74: #{tpu_custom_call.1} parent=1 // pred_check
      _
    $region75: #{tpu_custom_call.1} parent=1 // pred_check_branch
      %138 = sbr.rel (0) target = $region77
    $region76: #{tpu_custom_call.1} parent=1 // pred_region
      %140 = dma.done [#allocation11], 512
    $region77: #{tpu_custom_call.1} parent=1 // pred_fallthru
      _
    // Predicated region
    $region78: #{tpu_custom_call.1} parent=1 // pred_check
      _
    $region79: #{tpu_custom_call.1} parent=1 // pred_check_branch
      %142 = sbr.rel (0) target = $region81
    $region80: #{tpu_custom_call.1} parent=1 // pred_region
      %144 = dma.done [#allocation14], 512
    $region81: #{tpu_custom_call.1} parent=1 // pred_fallthru
      _
    %v145 = vld [vmem:[%s0] sm:$0x3]
    %v146 = vld [vmem:[#allocation4] sm:$0xff]
    %v147 = vld [vmem:[#allocation4 + $0x8] sm:$0xff]
    %v148 = vld [vmem:[%s2] sm:$0xff]
    %v149 = vld [vmem:[%s2 + $0x8] sm:$0xff]
    %v150 = vld [vmem:[%s2 + $0x10] sm:$0xff]
    %v151 = vld [vmem:[%s2 + $0x18] sm:$0xff]
    %v152 = vld [vmem:[%s2 + $0x20] sm:$0xff]
    %v153 = vld [vmem:[%s2 + $0x28] sm:$0xff]
    %v154 = vld [vmem:[%s2 + $0x30] sm:$0xff]
    %v155 = vld [vmem:[%s2 + $0x38] sm:$0xff]
    %v156 = vld [vmem:[%s5] sm:$0x3]
    %v158 = vperm.slane %v156, 0
    %v159 = vperm.slane %v156, 1
    %vm162 = vcmask 261120
    %v164 = vsel %vm162, %v146, 0
    %v167 = vsel %vm162, %v147, 0
    %169 = vmatpush.msra.mxu0 0.0
    %170 = vmatpush.msra.mxu0 0.0
    %171 = vmatpush.msra.mxu0 0.0
    %172 = vmatpush.msra.mxu0 0.0
    %173 = vmatpush.msra.mxu0 0.0
    %174 = vmatpush.msra.mxu0 0.0
    %175 = vmatpush.msra.mxu0 0.0
    %176 = vmatpush.msra.mxu0 0.0
    %177 = vmatpush.msra.mxu0 0.0
    %178 = vmatpush.msra.mxu0 0.0
    %179 = vmatpush.msra.mxu0 0.0
    %180 = vmatpush.msra.mxu0 0.0
    %181 = vmatpush.msra.mxu0 %v154
    %182 = vmatpush.msra.mxu0 %v152
    %183 = vmatpush.msra.mxu0 %v150
    %184 = vmatpush.msra.mxu0 %v148
    %185 = vmatmul.f32.gmra.mxu0 %v164
    %v186 = vpop.f32.mrf.mxu0
    %v187 = vadd.f32 %v158, %v186
    %188 = vmatmul.f32.gmra.mxu0 %v167
    %v189 = vpop.f32.mrf.mxu0
    %v190 = vadd.f32 %v158, %v189
    %191 = vdwg.mxu0
    %192 = vmatpush.msra.mxu0 0.0
    %193 = vmatpush.msra.mxu0 0.0
    %194 = vmatpush.msra.mxu0 0.0
    %195 = vmatpush.msra.mxu0 0.0
    %196 = vmatpush.msra.mxu0 0.0
    %197 = vmatpush.msra.mxu0 0.0
    %198 = vmatpush.msra.mxu0 0.0
    %199 = vmatpush.msra.mxu0 0.0
    %200 = vmatpush.msra.mxu0 0.0
    %201 = vmatpush.msra.mxu0 0.0
    %202 = vmatpush.msra.mxu0 0.0
    %203 = vmatpush.msra.mxu0 0.0
    %204 = vmatpush.msra.mxu0 %v155
    %205 = vmatpush.msra.mxu0 %v153
    %206 = vmatpush.msra.mxu0 %v151
    %207 = vmatpush.msra.mxu0 %v149
    %208 = vmatmul.f32.gmra.mxu0 %v164
    %v209 = vpop.f32.mrf.mxu0
    %v210 = vadd.f32 %v159, %v209
    %211 = vmatmul.f32.gmra.mxu0 %v167
    %v212 = vpop.f32.mrf.mxu0
    %v213 = vadd.f32 %v159, %v212
    %214 = vdwg.mxu0
    %v215 = vld [vmem:[%s3] sm:$0xff]
    %v216 = vld [vmem:[%s3 + $0x8] sm:$0xff]
    %v217 = vld [vmem:[%s3 + $0x10] sm:$0xff]
    %v218 = vld [vmem:[%s3 + $0x18] sm:$0xff]
    %v219 = vld [vmem:[#allocation7] sm:$0xff]
    %v220 = vld [vmem:[#allocation7 + $0x8] sm:$0xff]
    %v221 = vld [vmem:[#allocation7 + $0x10] sm:$0xff]
    %v222 = vld [vmem:[#allocation7 + $0x18] sm:$0xff]
    %v224 = vsel %vm162, 0.0, 0
    %226 = vmatpush.msra.mxu0 0.0
    %227 = vmatpush.msra.mxu0 0.0
    %228 = vmatpush.msra.mxu0 0.0
    %229 = vmatpush.msra.mxu0 0.0
    %230 = vmatpush.msra.mxu0 0.0
    %231 = vmatpush.msra.mxu0 0.0
    %232 = vmatpush.msra.mxu0 0.0
    %233 = vmatpush.msra.mxu0 0.0
    %234 = vmatpush.msra.mxu0 0.0
    %235 = vmatpush.msra.mxu0 0.0
    %236 = vmatpush.msra.mxu0 0.0
    %237 = vmatpush.msra.mxu0 0.0
    %238 = vmatpush.msra.mxu0 %v218
    %239 = vmatpush.msra.mxu0 %v217
    %240 = vmatpush.msra.mxu0 %v216
    %241 = vmatpush.msra.mxu0 %v215
    %242 = vmatmul.f32.gmra.mxu0 %v224
    %v243 = vpop.f32.mrf.mxu0
    %v244 = vadd.f32 0.0, %v243
    %245 = vdwg.mxu0
    %v246 = vadd.f32 %v187, %v244
    %v247 = vxor.u32 %v246, 2147483648
    %v248 = vmul.f32 %v247, 1.442695
    %v249 = vpow.pop %v248
    %v250 = vadd.f32 %v249, 1.0
    %v251 = vrcp.pop %v250
    %v252 = vmul.f32 %v250, %v251
    %v253 = vsub.f32 1.0, %v252
    %v254 = vmul.f32 %v251, %v253
    %v255 = vadd.f32 %v251, %v254
    %vm256 = vweird.f32 %v250
    %vm257 = vweird.f32 %v251
    %vm258 = vmor %vm256, %vm257
    %v259 = vsel %vm258, %v251, %v255
    %v260 = vand.u32 2147483647, %v250
    %vm261 = vcmp.eq.f32.partialorder %v260, 8.507059e+37
    %v262 = vand.u32 %v250, 2147483648
    %v263 = vor.u32 1.1754944e-38, %v262
    %v264 = vsel %vm261, %v263, %v259
    %v265 = vmul.f32 1.0, %v264
    %v266 = vtanh.pop %v246
    %v267 = vmul.f32 %v265, 0.0
    %269 = vrot.lane.b32.xlu0 %v266, 64
    %v270 = vpop.permute.xlu0 %269
    %v272 = vmul.f32 %v265, %v270
    %274 = vrot.lane.b32.xlu0 %v272, 32
    %v275 = vpop.permute.xlu0 %274
    %v277 = vadd.f32 %v267, %v275
    %v278 = vtanh.pop %v277
    %280 = vrot.lane.b32.xlu0 %v278, 64
    %v281 = vpop.permute.xlu0 %280
    %v283 = vmul.f32 %v265, %v281
    %vm284 = vcmp.gt.s32.totalorder %v145, 0
    %v285 = vsel %vm284, 1, 0
    %286 = vset.pattern.permute.xlu0 0
    %287 = vperm.xlu0 %286, %v285
    %v288 = vpop.permute.xlu0 %287
    %vm289 = vcmp.eq.s32.totalorder %v288, 1
    %v290 = vsel %vm289, %v283, 0.0
    %v291 = vsel %vm289, %v277, 0.0
    %293 = vrot.lane.b32.xlu0 %v290, 32
    %v294 = vpop.permute.xlu0 %293
    %vm296 = vcmask 254976
    %297 = vst.msk [vmem:[#allocation2] sm:$0x3] %vm296, %v294
    %298 = vmatpush.msra.mxu0 0.0
    %299 = vmatpush.msra.mxu0 0.0
    %300 = vmatpush.msra.mxu0 0.0
    %301 = vmatpush.msra.mxu0 0.0
    %302 = vmatpush.msra.mxu0 0.0
    %303 = vmatpush.msra.mxu0 0.0
    %304 = vmatpush.msra.mxu0 0.0
    %305 = vmatpush.msra.mxu0 0.0
    %306 = vmatpush.msra.mxu0 0.0
    %307 = vmatpush.msra.mxu0 0.0
    %308 = vmatpush.msra.mxu0 0.0
    %309 = vmatpush.msra.mxu0 0.0
    %310 = vmatpush.msra.mxu0 %v222
    %311 = vmatpush.msra.mxu0 %v221
    %312 = vmatpush.msra.mxu0 %v220
    %313 = vmatpush.msra.mxu0 %v219
    %314 = vmatmul.f32.gmra.mxu0 %v224
    %v315 = vpop.f32.mrf.mxu0
    %v316 = vadd.f32 0.0, %v315
    %317 = vdwg.mxu0
    %v319 = vrot.slane %v316, 2
    %v321 = vadd.f32 %v213, %v319
    %v322 = vxor.u32 %v321, 2147483648
    %v323 = vmul.f32 %v322, 1.442695
    %v324 = vpow.pop %v323
    %v325 = vadd.f32 %v324, 1.0
    %v326 = vrcp.pop %v325
    %v327 = vmul.f32 %v325, %v326
    %v328 = vsub.f32 1.0, %v327
    %v329 = vmul.f32 %v326, %v328
    %v330 = vadd.f32 %v326, %v329
    %vm331 = vweird.f32 %v325
    %vm332 = vweird.f32 %v326
    %vm333 = vmor %vm331, %vm332
    %v334 = vsel %vm333, %v326, %v330
    %v335 = vand.u32 2147483647, %v325
    %vm336 = vcmp.eq.f32.partialorder %v335, 8.507059e+37
    %v337 = vand.u32 %v325, 2147483648
    %v338 = vor.u32 1.1754944e-38, %v337
    %v339 = vsel %vm336, %v338, %v334
    %v340 = vmul.f32 1.0, %v339
    %v341 = vtanh.pop %v321
    %v342 = vmul.f32 %v340, 0.0
    %344 = vrot.lane.b32.xlu0 %v341, 64
    %v345 = vpop.permute.xlu0 %344
    %v347 = vmul.f32 %v340, %v345
    %349 = vrot.lane.b32.xlu0 %v347, 32
    %v350 = vpop.permute.xlu0 %349
    %v352 = vadd.f32 %v342, %v350
    %v353 = vtanh.pop %v352
    %355 = vrot.lane.b32.xlu0 %v353, 64
    %v356 = vpop.permute.xlu0 %355
    %v358 = vmul.f32 %v340, %v356
    %vm359 = vcmp.gt.s32.totalorder %v145, 7
    %v360 = vsel %vm359, 1, 0
    %361 = vset.pattern.permute.xlu0 0
    %362 = vperm.xlu0 %361, %v360
    %v363 = vpop.permute.xlu0 %362
    %vm364 = vcmp.eq.s32.totalorder %v363, 1
    %v366 = vrot.slane %v358, 6
    %367 = vrot.lane.b32.xlu0 %v366, 32
    %v368 = vpop.permute.xlu0 %367
    %v370 = vsel %vm364, %v368, 0.0
    %v372 = vrot.slane %v352, 6
    %373 = vrot.lane.b32.xlu0 %v372, 96
    %v374 = vpop.permute.xlu0 %373
    %v376 = vsel %vm364, %v374, 0.0
    %378 = vrot.lane.b32.xlu0 %v370, 32
    %v379 = vpop.permute.xlu0 %378
    %vm381 = vcmask 517376
    %382 = vst.msk [vmem:[#allocation2 + $0xe] sm:$0x3] %vm381, %v379
    %v383 = vsel %vm162, %v294, 0
    %385 = vmatpush.msra.mxu0 0.0
    %386 = vmatpush.msra.mxu0 0.0
    %387 = vmatpush.msra.mxu0 0.0
    %388 = vmatpush.msra.mxu0 0.0
    %389 = vmatpush.msra.mxu0 0.0
    %390 = vmatpush.msra.mxu0 0.0
    %391 = vmatpush.msra.mxu0 0.0
    %392 = vmatpush.msra.mxu0 0.0
    %393 = vmatpush.msra.mxu0 0.0
    %394 = vmatpush.msra.mxu0 0.0
    %395 = vmatpush.msra.mxu0 0.0
    %396 = vmatpush.msra.mxu0 0.0
    %397 = vmatpush.msra.mxu0 %v218
    %398 = vmatpush.msra.mxu0 %v217
    %399 = vmatpush.msra.mxu0 %v216
    %400 = vmatpush.msra.mxu0 %v215
    %401 = vmatmul.f32.gmra.mxu0 %v383
    %v402 = vpop.f32.mrf.mxu0
    %v403 = vadd.f32 0.0, %v402
    %404 = vdwg.mxu0
    %v406 = vrot.slane %v403, 6
    %v408 = vadd.f32 %v187, %v406
    %v409 = vxor.u32 %v408, 2147483648
    %v410 = vmul.f32 %v409, 1.442695
    %v411 = vpow.pop %v410
    %v412 = vadd.f32 %v411, 1.0
    %v413 = vrcp.pop %v412
    %v414 = vmul.f32 %v412, %v413
    %v415 = vsub.f32 1.0, %v414
    %v416 = vmul.f32 %v413, %v415
    %v417 = vadd.f32 %v413, %v416
    %vm418 = vweird.f32 %v412
    %vm419 = vweird.f32 %v413
    %vm420 = vmor %vm418, %vm419
    %v421 = vsel %vm420, %v413, %v417
    %v422 = vand.u32 2147483647, %v412
    %vm423 = vcmp.eq.f32.partialorder %v422, 8.507059e+37
    %v424 = vand.u32 %v412, 2147483648
    %v425 = vor.u32 1.1754944e-38, %v424
    %v426 = vsel %vm423, %v425, %v421
    %v427 = vmul.f32 1.0, %v426
    %v428 = vtanh.pop %v408
    %v430 = vrot.slane %v291, 6
    %v432 = vmul.f32 %v427, %v430
    %434 = vrot.lane.b32.xlu0 %v428, 64
    %v435 = vpop.permute.xlu0 %434
    %v437 = vmul.f32 %v427, %v435
    %439 = vrot.lane.b32.xlu0 %v437, 32
    %v440 = vpop.permute.xlu0 %439
    %v442 = vadd.f32 %v432, %v440
    %v443 = vtanh.pop %v442
    %445 = vrot.lane.b32.xlu0 %v443, 64
    %v446 = vpop.permute.xlu0 %445
    %v448 = vmul.f32 %v427, %v446
    %vm449 = vcmp.gt.s32.totalorder %v145, 1
    %v450 = vsel %vm449, 1, 0
    %451 = vset.pattern.permute.xlu0 0
    %452 = vperm.xlu0 %451, %v450
    %v453 = vpop.permute.xlu0 %452
    %vm454 = vcmp.eq.s32.totalorder %v453, 1
    %v456 = vrot.slane %v448, 2
    %457 = vrot.lane.b32.xlu0 %v456, 32
    %v458 = vpop.permute.xlu0 %457
    %v460 = vsel %vm454, %v458, %v294
    %v462 = vrot.slane %v442, 2
    %463 = vrot.lane.b32.xlu0 %v462, 96
    %v464 = vpop.permute.xlu0 %463
    %466 = vrot.lane.b32.xlu0 %v291, 96
    %v467 = vpop.permute.xlu0 %466
    %v469 = vsel %vm454, %v464, %v467
    %v470 = vsel %vm454, %v458, 0.0
    %471 = vst.msk [vmem:[#allocation2 + $0x2] sm:$0x3] %vm296, %v470
    %v472 = vsel %vm162, %v370, 0
    %474 = vmatpush.msra.mxu0 0.0
    %475 = vmatpush.msra.mxu0 0.0
    %476 = vmatpush.msra.mxu0 0.0
    %477 = vmatpush.msra.mxu0 0.0
    %478 = vmatpush.msra.mxu0 0.0
    %479 = vmatpush.msra.mxu0 0.0
    %480 = vmatpush.msra.mxu0 0.0
    %481 = vmatpush.msra.mxu0 0.0
    %482 = vmatpush.msra.mxu0 0.0
    %483 = vmatpush.msra.mxu0 0.0
    %484 = vmatpush.msra.mxu0 0.0
    %485 = vmatpush.msra.mxu0 0.0
    %486 = vmatpush.msra.mxu0 %v222
    %487 = vmatpush.msra.mxu0 %v221
    %488 = vmatpush.msra.mxu0 %v220
    %489 = vmatpush.msra.mxu0 %v219
    %490 = vmatmul.f32.gmra.mxu0 %v472
    %v491 = vpop.f32.mrf.mxu0
    %v492 = vadd.f32 0.0, %v491
    %493 = vdwg.mxu0
    %v495 = vrot.slane %v492, 4
    %v497 = vadd.f32 %v213, %v495
    %v498 = vxor.u32 %v497, 2147483648
    %v499 = vmul.f32 %v498, 1.442695
    %v500 = vpow.pop %v499
    %v501 = vadd.f32 %v500, 1.0
    %v502 = vrcp.pop %v501
    %v503 = vmul.f32 %v501, %v502
    %v504 = vsub.f32 1.0, %v503
    %v505 = vmul.f32 %v502, %v504
    %v506 = vadd.f32 %v502, %v505
    %vm507 = vweird.f32 %v501
    %vm508 = vweird.f32 %v502
    %vm509 = vmor %vm507, %vm508
    %v510 = vsel %vm509, %v502, %v506
    %v511 = vand.u32 2147483647, %v501
    %vm512 = vcmp.eq.f32.partialorder %v511, 8.507059e+37
    %v513 = vand.u32 %v501, 2147483648
    %v514 = vor.u32 1.1754944e-38, %v513
    %v515 = vsel %vm512, %v514, %v510
    %v516 = vmul.f32 1.0, %v515
    %v517 = vtanh.pop %v497
    %v519 = vrot.slane %v376, 4
    %520 = vrot.lane.b32.xlu0 %v519, 32
    %v521 = vpop.permute.xlu0 %520
    %v523 = vmul.f32 %v516, %v521
    %525 = vrot.lane.b32.xlu0 %v517, 64
    %v526 = vpop.permute.xlu0 %525
    %v528 = vmul.f32 %v516, %v526
    %530 = vrot.lane.b32.xlu0 %v528, 32
    %v531 = vpop.permute.xlu0 %530
    %v533 = vadd.f32 %v523, %v531
    %v534 = vtanh.pop %v533
    %536 = vrot.lane.b32.xlu0 %v534, 64
    %v537 = vpop.permute.xlu0 %536
    %v539 = vmul.f32 %v516, %v537
    %vm540 = vcmp.gt.s32.totalorder %v145, 6
    %v541 = vsel %vm540, 1, 0
    %542 = vset.pattern.permute.xlu0 0
    %543 = vperm.xlu0 %542, %v541
    %v544 = vpop.permute.xlu0 %543
    %vm545 = vcmp.eq.s32.totalorder %v544, 1
    %v547 = vrot.slane %v539, 4
    %548 = vrot.lane.b32.xlu0 %v547, 32
    %v549 = vpop.permute.xlu0 %548
    %v551 = vsel %vm545, %v549, %v370
    %v553 = vrot.slane %v533, 4
    %554 = vrot.lane.b32.xlu0 %v553, 96
    %v555 = vpop.permute.xlu0 %554
    %v557 = vsel %vm545, %v555, %v376
    %v558 = vsel %vm545, %v549, 0.0
    %560 = vrot.lane.b32.xlu0 %v558, 32
    %v561 = vpop.permute.xlu0 %560
    %563 = vst.msk [vmem:[#allocation2 + $0xc] sm:$0x3] %vm381, %v561
    %v565 = vsel %vm162, %v460, 0
    %567 = vmatpush.msra.mxu0 0.0
    %568 = vmatpush.msra.mxu0 0.0
    %569 = vmatpush.msra.mxu0 0.0
    %570 = vmatpush.msra.mxu0 0.0
    %571 = vmatpush.msra.mxu0 0.0
    %572 = vmatpush.msra.mxu0 0.0
    %573 = vmatpush.msra.mxu0 0.0
    %574 = vmatpush.msra.mxu0 0.0
    %575 = vmatpush.msra.mxu0 0.0
    %576 = vmatpush.msra.mxu0 0.0
    %577 = vmatpush.msra.mxu0 0.0
    %578 = vmatpush.msra.mxu0 0.0
    %579 = vmatpush.msra.mxu0 %v218
    %580 = vmatpush.msra.mxu0 %v217
    %581 = vmatpush.msra.mxu0 %v216
    %582 = vmatpush.msra.mxu0 %v215
    %583 = vmatmul.f32.gmra.mxu0 %v565
    %v584 = vpop.f32.mrf.mxu0
    %v585 = vadd.f32 0.0, %v584
    %586 = vdwg.mxu0
    %v588 = vrot.slane %v585, 4
    %v590 = vadd.f32 %v187, %v588
    %v591 = vxor.u32 %v590, 2147483648
    %v592 = vmul.f32 %v591, 1.442695
    %v593 = vpow.pop %v592
    %v594 = vadd.f32 %v593, 1.0
    %v595 = vrcp.pop %v594
    %v596 = vmul.f32 %v594, %v595
    %v597 = vsub.f32 1.0, %v596
    %v598 = vmul.f32 %v595, %v597
    %v599 = vadd.f32 %v595, %v598
    %vm600 = vweird.f32 %v594
    %vm601 = vweird.f32 %v595
    %vm602 = vmor %vm600, %vm601
    %v603 = vsel %vm602, %v595, %v599
    %v604 = vand.u32 2147483647, %v594
    %vm605 = vcmp.eq.f32.partialorder %v604, 8.507059e+37
    %v606 = vand.u32 %v594, 2147483648
    %v607 = vor.u32 1.1754944e-38, %v606
    %v608 = vsel %vm605, %v607, %v603
    %v609 = vmul.f32 1.0, %v608
    %v610 = vtanh.pop %v590
    %v612 = vrot.slane %v469, 4
    %613 = vrot.lane.b32.xlu0 %v612, 32
    %v614 = vpop.permute.xlu0 %613
    %v616 = vmul.f32 %v609, %v614
    %618 = vrot.lane.b32.xlu0 %v610, 64
    %v619 = vpop.permute.xlu0 %618
    %v621 = vmul.f32 %v609, %v619
    %623 = vrot.lane.b32.xlu0 %v621, 32
    %v624 = vpop.permute.xlu0 %623
    %v626 = vadd.f32 %v616, %v624
    %v627 = vtanh.pop %v626
    %629 = vrot.lane.b32.xlu0 %v627, 64
    %v630 = vpop.permute.xlu0 %629
    %v632 = vmul.f32 %v609, %v630
    %vm633 = vcmp.gt.s32.totalorder %v145, 2
    %v634 = vsel %vm633, 1, 0
    %635 = vset.pattern.permute.xlu0 0
    %636 = vperm.xlu0 %635, %v634
    %v637 = vpop.permute.xlu0 %636
    %vm638 = vcmp.eq.s32.totalorder %v637, 1
    %v640 = vrot.slane %v632, 4
    %641 = vrot.lane.b32.xlu0 %v640, 32
    %v642 = vpop.permute.xlu0 %641
    %v644 = vsel %vm638, %v642, %v460
    %v646 = vrot.slane %v626, 4
    %647 = vrot.lane.b32.xlu0 %v646, 96
    %v648 = vpop.permute.xlu0 %647
    %v650 = vsel %vm638, %v648, %v469
    %v651 = vsel %vm638, %v642, 0.0
    %652 = vst.msk [vmem:[#allocation2 + $0x4] sm:$0x3] %vm296, %v651
    %v654 = vsel %vm162, %v551, 0
    %656 = vmatpush.msra.mxu0 0.0
    %657 = vmatpush.msra.mxu0 0.0
    %658 = vmatpush.msra.mxu0 0.0
    %659 = vmatpush.msra.mxu0 0.0
    %660 = vmatpush.msra.mxu0 0.0
    %661 = vmatpush.msra.mxu0 0.0
    %662 = vmatpush.msra.mxu0 0.0
    %663 = vmatpush.msra.mxu0 0.0
    %664 = vmatpush.msra.mxu0 0.0
    %665 = vmatpush.msra.mxu0 0.0
    %666 = vmatpush.msra.mxu0 0.0
    %667 = vmatpush.msra.mxu0 0.0
    %668 = vmatpush.msra.mxu0 %v222
    %669 = vmatpush.msra.mxu0 %v221
    %670 = vmatpush.msra.mxu0 %v220
    %671 = vmatpush.msra.mxu0 %v219
    %672 = vmatmul.f32.gmra.mxu0 %v654
    %v673 = vpop.f32.mrf.mxu0
    %v674 = vadd.f32 0.0, %v673
    %675 = vdwg.mxu0
    %v677 = vrot.slane %v674, 6
    %v679 = vadd.f32 %v213, %v677
    %v680 = vxor.u32 %v679, 2147483648
    %v681 = vmul.f32 %v680, 1.442695
    %v682 = vpow.pop %v681
    %v683 = vadd.f32 %v682, 1.0
    %v684 = vrcp.pop %v683
    %v685 = vmul.f32 %v683, %v684
    %v686 = vsub.f32 1.0, %v685
    %v687 = vmul.f32 %v684, %v686
    %v688 = vadd.f32 %v684, %v687
    %vm689 = vweird.f32 %v683
    %vm690 = vweird.f32 %v684
    %vm691 = vmor %vm689, %vm690
    %v692 = vsel %vm691, %v684, %v688
    %v693 = vand.u32 2147483647, %v683
    %vm694 = vcmp.eq.f32.partialorder %v693, 8.507059e+37
    %v695 = vand.u32 %v683, 2147483648
    %v696 = vor.u32 1.1754944e-38, %v695
    %v697 = vsel %vm694, %v696, %v692
    %v698 = vmul.f32 1.0, %v697
    %v699 = vtanh.pop %v679
    %v701 = vrot.slane %v557, 6
    %702 = vrot.lane.b32.xlu0 %v701, 32
    %v703 = vpop.permute.xlu0 %702
    %v705 = vmul.f32 %v698, %v703
    %707 = vrot.lane.b32.xlu0 %v699, 64
    %v708 = vpop.permute.xlu0 %707
    %v710 = vmul.f32 %v698, %v708
    %712 = vrot.lane.b32.xlu0 %v710, 32
    %v713 = vpop.permute.xlu0 %712
    %v715 = vadd.f32 %v705, %v713
    %v716 = vtanh.pop %v715
    %718 = vrot.lane.b32.xlu0 %v716, 64
    %v719 = vpop.permute.xlu0 %718
    %v721 = vmul.f32 %v698, %v719
    %vm722 = vcmp.gt.s32.totalorder %v145, 5
    %v723 = vsel %vm722, 1, 0
    %724 = vset.pattern.permute.xlu0 0
    %725 = vperm.xlu0 %724, %v723
    %v726 = vpop.permute.xlu0 %725
    %vm727 = vcmp.eq.s32.totalorder %v726, 1
    %v729 = vrot.slane %v721, 2
    %730 = vrot.lane.b32.xlu0 %v729, 32
    %v731 = vpop.permute.xlu0 %730
    %v733 = vsel %vm727, %v731, %v551
    %v735 = vrot.slane %v715, 2
    %736 = vrot.lane.b32.xlu0 %v735, 96
    %v737 = vpop.permute.xlu0 %736
    %v739 = vsel %vm727, %v737, %v557
    %v740 = vsel %vm727, %v731, 0.0
    %742 = vrot.lane.b32.xlu0 %v740, 32
    %v743 = vpop.permute.xlu0 %742
    %745 = vst.msk [vmem:[#allocation2 + $0xa] sm:$0x3] %vm381, %v743
    %v747 = vsel %vm162, %v644, 0
    %749 = vmatpush.msra.mxu0 0.0
    %750 = vmatpush.msra.mxu0 0.0
    %751 = vmatpush.msra.mxu0 0.0
    %752 = vmatpush.msra.mxu0 0.0
    %753 = vmatpush.msra.mxu0 0.0
    %754 = vmatpush.msra.mxu0 0.0
    %755 = vmatpush.msra.mxu0 0.0
    %756 = vmatpush.msra.mxu0 0.0
    %757 = vmatpush.msra.mxu0 0.0
    %758 = vmatpush.msra.mxu0 0.0
    %759 = vmatpush.msra.mxu0 0.0
    %760 = vmatpush.msra.mxu0 0.0
    %761 = vmatpush.msra.mxu0 %v218
    %762 = vmatpush.msra.mxu0 %v217
    %763 = vmatpush.msra.mxu0 %v216
    %764 = vmatpush.msra.mxu0 %v215
    %765 = vmatmul.f32.gmra.mxu0 %v747
    %v766 = vpop.f32.mrf.mxu0
    %v767 = vadd.f32 0.0, %v766
    %768 = vdwg.mxu0
    %v770 = vrot.slane %v767, 2
    %v772 = vadd.f32 %v187, %v770
    %v773 = vxor.u32 %v772, 2147483648
    %v774 = vmul.f32 %v773, 1.442695
    %v775 = vpow.pop %v774
    %v776 = vadd.f32 %v775, 1.0
    %v777 = vrcp.pop %v776
    %v778 = vmul.f32 %v776, %v777
    %v779 = vsub.f32 1.0, %v778
    %v780 = vmul.f32 %v777, %v779
    %v781 = vadd.f32 %v777, %v780
    %vm782 = vweird.f32 %v776
    %vm783 = vweird.f32 %v777
    %vm784 = vmor %vm782, %vm783
    %v785 = vsel %vm784, %v777, %v781
    %v786 = vand.u32 2147483647, %v776
    %vm787 = vcmp.eq.f32.partialorder %v786, 8.507059e+37
    %v788 = vand.u32 %v776, 2147483648
    %v789 = vor.u32 1.1754944e-38, %v788
    %v790 = vsel %vm787, %v789, %v785
    %v791 = vmul.f32 1.0, %v790
    %v792 = vtanh.pop %v772
    %v794 = vrot.slane %v650, 2
    %795 = vrot.lane.b32.xlu0 %v794, 32
    %v796 = vpop.permute.xlu0 %795
    %v798 = vmul.f32 %v791, %v796
    %800 = vrot.lane.b32.xlu0 %v792, 64
    %v801 = vpop.permute.xlu0 %800
    %v803 = vmul.f32 %v791, %v801
    %805 = vrot.lane.b32.xlu0 %v803, 32
    %v806 = vpop.permute.xlu0 %805
    %v808 = vadd.f32 %v798, %v806
    %v809 = vtanh.pop %v808
    %811 = vrot.lane.b32.xlu0 %v809, 64
    %v812 = vpop.permute.xlu0 %811
    %v814 = vmul.f32 %v791, %v812
    %vm815 = vcmp.gt.s32.totalorder %v145, 3
    %v816 = vsel %vm815, 1, 0
    %817 = vset.pattern.permute.xlu0 0
    %818 = vperm.xlu0 %817, %v816
    %v819 = vpop.permute.xlu0 %818
    %vm820 = vcmp.eq.s32.totalorder %v819, 1
    %v822 = vrot.slane %v814, 6
    %823 = vrot.lane.b32.xlu0 %v822, 32
    %v824 = vpop.permute.xlu0 %823
    %v826 = vsel %vm820, %v824, %v644
    %v828 = vrot.slane %v808, 6
    %829 = vrot.lane.b32.xlu0 %v828, 96
    %v830 = vpop.permute.xlu0 %829
    %v832 = vsel %vm820, %v830, %v650
    %v833 = vsel %vm820, %v824, 0.0
    %834 = vst.msk [vmem:[#allocation2 + $0x6] sm:$0x3] %vm296, %v833
    %v836 = vsel %vm162, %v733, 0
    %838 = vmatpush.msra.mxu0 0.0
    %839 = vmatpush.msra.mxu0 0.0
    %840 = vmatpush.msra.mxu0 0.0
    %841 = vmatpush.msra.mxu0 0.0
    %842 = vmatpush.msra.mxu0 0.0
    %843 = vmatpush.msra.mxu0 0.0
    %844 = vmatpush.msra.mxu0 0.0
    %845 = vmatpush.msra.mxu0 0.0
    %846 = vmatpush.msra.mxu0 0.0
    %847 = vmatpush.msra.mxu0 0.0
    %848 = vmatpush.msra.mxu0 0.0
    %849 = vmatpush.msra.mxu0 0.0
    %850 = vmatpush.msra.mxu0 %v222
    %851 = vmatpush.msra.mxu0 %v221
    %852 = vmatpush.msra.mxu0 %v220
    %853 = vmatpush.msra.mxu0 %v219
    %854 = vmatmul.f32.gmra.mxu0 %v836
    %v855 = vpop.f32.mrf.mxu0
    %v856 = vadd.f32 0.0, %v855
    %857 = vdwg.mxu0
    %v858 = vadd.f32 %v213, %v856
    %v859 = vxor.u32 %v858, 2147483648
    %v860 = vmul.f32 %v859, 1.442695
    %v861 = vpow.pop %v860
    %v862 = vadd.f32 %v861, 1.0
    %v863 = vrcp.pop %v862
    %v864 = vmul.f32 %v862, %v863
    %v865 = vsub.f32 1.0, %v864
    %v866 = vmul.f32 %v863, %v865
    %v867 = vadd.f32 %v863, %v866
    %vm868 = vweird.f32 %v862
    %vm869 = vweird.f32 %v863
    %vm870 = vmor %vm868, %vm869
    %v871 = vsel %vm870, %v863, %v867
    %v872 = vand.u32 2147483647, %v862
    %vm873 = vcmp.eq.f32.partialorder %v872, 8.507059e+37
    %v874 = vand.u32 %v862, 2147483648
    %v875 = vor.u32 1.1754944e-38, %v874
    %v876 = vsel %vm873, %v875, %v871
    %v877 = vmul.f32 1.0, %v876
    %v878 = vtanh.pop %v858
    %880 = vrot.lane.b32.xlu0 %v739, 32
    %v881 = vpop.permute.xlu0 %880
    %v883 = vmul.f32 %v877, %v881
    %885 = vrot.lane.b32.xlu0 %v878, 64
    %v886 = vpop.permute.xlu0 %885
    %v888 = vmul.f32 %v877, %v886
    %890 = vrot.lane.b32.xlu0 %v888, 32
    %v891 = vpop.permute.xlu0 %890
    %v893 = vadd.f32 %v883, %v891
    %v894 = vtanh.pop %v893
    %896 = vrot.lane.b32.xlu0 %v894, 64
    %v897 = vpop.permute.xlu0 %896
    %v899 = vmul.f32 %v877, %v897
    %vm900 = vcmp.gt.s32.totalorder %v145, 4
    %v901 = vsel %vm900, 1, 0
    %902 = vset.pattern.permute.xlu0 0
    %903 = vperm.xlu0 %902, %v901
    %v904 = vpop.permute.xlu0 %903
    %vm905 = vcmp.eq.s32.totalorder %v904, 1
    %906 = vrot.lane.b32.xlu0 %v733, 96
    %v907 = vpop.permute.xlu0 %906
    %v909 = vsel %vm905, %v899, %v907
    %v910 = vsel %vm905, %v893, %v881
    %v911 = vsel %vm905, %v899, 0.0
    %913 = vrot.lane.b32.xlu0 %v911, 64
    %v914 = vpop.permute.xlu0 %913
    %916 = vst.msk [vmem:[#allocation2 + $0x8] sm:$0x3] %vm381, %v914
    %v918 = vsel %vm162, %v826, 0
    %920 = vmatpush.msra.mxu0 0.0
    %921 = vmatpush.msra.mxu0 0.0
    %922 = vmatpush.msra.mxu0 0.0
    %923 = vmatpush.msra.mxu0 0.0
    %924 = vmatpush.msra.mxu0 0.0
    %925 = vmatpush.msra.mxu0 0.0
    %926 = vmatpush.msra.mxu0 0.0
    %927 = vmatpush.msra.mxu0 0.0
    %928 = vmatpush.msra.mxu0 0.0
    %929 = vmatpush.msra.mxu0 0.0
    %930 = vmatpush.msra.mxu0 0.0
    %931 = vmatpush.msra.mxu0 0.0
    %932 = vmatpush.msra.mxu0 %v218
    %933 = vmatpush.msra.mxu0 %v217
    %934 = vmatpush.msra.mxu0 %v216
    %935 = vmatpush.msra.mxu0 %v215
    %936 = vmatmul.f32.gmra.mxu0 %v918
    %v937 = vpop.f32.mrf.mxu0
    %v938 = vadd.f32 0.0, %v937
    %939 = vdwg.mxu0
    %v940 = vadd.f32 %v190, %v938
    %v941 = vxor.u32 %v940, 2147483648
    %v942 = vmul.f32 %v941, 1.442695
    %v943 = vpow.pop %v942
    %v944 = vadd.f32 %v943, 1.0
    %v945 = vrcp.pop %v944
    %v946 = vmul.f32 %v944, %v945
    %v947 = vsub.f32 1.0, %v946
    %v948 = vmul.f32 %v945, %v947
    %v949 = vadd.f32 %v945, %v948
    %vm950 = vweird.f32 %v944
    %vm951 = vweird.f32 %v945
    %vm952 = vmor %vm950, %vm951
    %v953 = vsel %vm952, %v945, %v949
    %v954 = vand.u32 2147483647, %v944
    %vm955 = vcmp.eq.f32.partialorder %v954, 8.507059e+37
    %v956 = vand.u32 %v944, 2147483648
    %v957 = vor.u32 1.1754944e-38, %v956
    %v958 = vsel %vm955, %v957, %v953
    %v959 = vmul.f32 1.0, %v958
    %v960 = vtanh.pop %v940
    %962 = vrot.lane.b32.xlu0 %v832, 32
    %v963 = vpop.permute.xlu0 %962
    %v965 = vmul.f32 %v959, %v963
    %967 = vrot.lane.b32.xlu0 %v960, 64
    %v968 = vpop.permute.xlu0 %967
    %v970 = vmul.f32 %v959, %v968
    %972 = vrot.lane.b32.xlu0 %v970, 32
    %v973 = vpop.permute.xlu0 %972
    %v975 = vadd.f32 %v965, %v973
    %v976 = vtanh.pop %v975
    %978 = vrot.lane.b32.xlu0 %v976, 64
    %v979 = vpop.permute.xlu0 %978
    %v981 = vmul.f32 %v959, %v979
    %982 = vrot.lane.b32.xlu0 %v826, 96
    %v983 = vpop.permute.xlu0 %982
    %v985 = vsel %vm905, %v981, %v983
    %v986 = vsel %vm905, %v975, %v963
    %v987 = vsel %vm905, %v981, 0.0
    %989 = vrot.lane.b32.xlu0 %v987, 32
    %v990 = vpop.permute.xlu0 %989
    %992 = vst.msk [vmem:[#allocation2 + $0x8] sm:$0x3] %vm296, %v990
    %994 = vrot.lane.b32.xlu0 %v909, 32
    %v995 = vpop.permute.xlu0 %994
    %v996 = vsel %vm162, %v995, 0
    %998 = vmatpush.msra.mxu0 0.0
    %999 = vmatpush.msra.mxu0 0.0
    %1000 = vmatpush.msra.mxu0 0.0
    %1001 = vmatpush.msra.mxu0 0.0
    %1002 = vmatpush.msra.mxu0 0.0
    %1003 = vmatpush.msra.mxu0 0.0
    %1004 = vmatpush.msra.mxu0 0.0
    %1005 = vmatpush.msra.mxu0 0.0
    %1006 = vmatpush.msra.mxu0 0.0
    %1007 = vmatpush.msra.mxu0 0.0
    %1008 = vmatpush.msra.mxu0 0.0
    %1009 = vmatpush.msra.mxu0 0.0
    %1010 = vmatpush.msra.mxu0 %v222
    %1011 = vmatpush.msra.mxu0 %v221
    %1012 = vmatpush.msra.mxu0 %v220
    %1013 = vmatpush.msra.mxu0 %v219
    %1014 = vmatmul.f32.gmra.mxu0 %v996
    %v1015 = vpop.f32.mrf.mxu0
    %v1016 = vadd.f32 0.0, %v1015
    %1017 = vdwg.mxu0
    %v1019 = vrot.slane %v1016, 2
    %v1021 = vadd.f32 %v210, %v1019
    %v1022 = vxor.u32 %v1021, 2147483648
    %v1023 = vmul.f32 %v1022, 1.442695
    %v1024 = vpow.pop %v1023
    %v1025 = vadd.f32 %v1024, 1.0
    %v1026 = vrcp.pop %v1025
    %v1027 = vmul.f32 %v1025, %v1026
    %v1028 = vsub.f32 1.0, %v1027
    %v1029 = vmul.f32 %v1026, %v1028
    %v1030 = vadd.f32 %v1026, %v1029
    %vm1031 = vweird.f32 %v1025
    %vm1032 = vweird.f32 %v1026
    %vm1033 = vmor %vm1031, %vm1032
    %v1034 = vsel %vm1033, %v1026, %v1030
    %v1035 = vand.u32 2147483647, %v1025
    %vm1036 = vcmp.eq.f32.partialorder %v1035, 8.507059e+37
    %v1037 = vand.u32 %v1025, 2147483648
    %v1038 = vor.u32 1.1754944e-38, %v1037
    %v1039 = vsel %vm1036, %v1038, %v1034
    %v1040 = vmul.f32 1.0, %v1039
    %v1041 = vtanh.pop %v1021
    %v1043 = vrot.slane %v910, 2
    %v1045 = vmul.f32 %v1040, %v1043
    %1047 = vrot.lane.b32.xlu0 %v1041, 64
    %v1048 = vpop.permute.xlu0 %1047
    %v1050 = vmul.f32 %v1040, %v1048
    %1052 = vrot.lane.b32.xlu0 %v1050, 32
    %v1053 = vpop.permute.xlu0 %1052
    %v1055 = vadd.f32 %v1045, %v1053
    %v1056 = vtanh.pop %v1055
    %1058 = vrot.lane.b32.xlu0 %v1056, 64
    %v1059 = vpop.permute.xlu0 %1058
    %v1061 = vmul.f32 %v1040, %v1059
    %v1063 = vrot.slane %v1061, 6
    %1064 = vrot.lane.b32.xlu0 %v1063, 32
    %v1065 = vpop.permute.xlu0 %1064
    %v1068 = vsel %vm820, %v1065, %v995
    %v1070 = vrot.slane %v1055, 6
    %1071 = vrot.lane.b32.xlu0 %v1070, 96
    %v1072 = vpop.permute.xlu0 %1071
    %1074 = vrot.lane.b32.xlu0 %v910, 96
    %v1075 = vpop.permute.xlu0 %1074
    %v1077 = vsel %vm820, %v1072, %v1075
    %v1078 = vsel %vm820, %v1065, 0.0
    %1080 = vrot.lane.b32.xlu0 %v1078, 32
    %v1081 = vpop.permute.xlu0 %1080
    %1083 = vst.msk [vmem:[#allocation2 + $0x6] sm:$0x3] %vm381, %v1081
    %1085 = vrot.lane.b32.xlu0 %v985, 32
    %v1086 = vpop.permute.xlu0 %1085
    %v1087 = vsel %vm162, %v1086, 0
    %1089 = vmatpush.msra.mxu0 0.0
    %1090 = vmatpush.msra.mxu0 0.0
    %1091 = vmatpush.msra.mxu0 0.0
    %1092 = vmatpush.msra.mxu0 0.0
    %1093 = vmatpush.msra.mxu0 0.0
    %1094 = vmatpush.msra.mxu0 0.0
    %1095 = vmatpush.msra.mxu0 0.0
    %1096 = vmatpush.msra.mxu0 0.0
    %1097 = vmatpush.msra.mxu0 0.0
    %1098 = vmatpush.msra.mxu0 0.0
    %1099 = vmatpush.msra.mxu0 0.0
    %1100 = vmatpush.msra.mxu0 0.0
    %1101 = vmatpush.msra.mxu0 %v218
    %1102 = vmatpush.msra.mxu0 %v217
    %1103 = vmatpush.msra.mxu0 %v216
    %1104 = vmatpush.msra.mxu0 %v215
    %1105 = vmatmul.f32.gmra.mxu0 %v1087
    %v1106 = vpop.f32.mrf.mxu0
    %v1107 = vadd.f32 0.0, %v1106
    %1108 = vdwg.mxu0
    %v1110 = vrot.slane %v1107, 6
    %v1112 = vadd.f32 %v190, %v1110
    %v1113 = vxor.u32 %v1112, 2147483648
    %v1114 = vmul.f32 %v1113, 1.442695
    %v1115 = vpow.pop %v1114
    %v1116 = vadd.f32 %v1115, 1.0
    %v1117 = vrcp.pop %v1116
    %v1118 = vmul.f32 %v1116, %v1117
    %v1119 = vsub.f32 1.0, %v1118
    %v1120 = vmul.f32 %v1117, %v1119
    %v1121 = vadd.f32 %v1117, %v1120
    %vm1122 = vweird.f32 %v1116
    %vm1123 = vweird.f32 %v1117
    %vm1124 = vmor %vm1122, %vm1123
    %v1125 = vsel %vm1124, %v1117, %v1121
    %v1126 = vand.u32 2147483647, %v1116
    %vm1127 = vcmp.eq.f32.partialorder %v1126, 8.507059e+37
    %v1128 = vand.u32 %v1116, 2147483648
    %v1129 = vor.u32 1.1754944e-38, %v1128
    %v1130 = vsel %vm1127, %v1129, %v1125
    %v1131 = vmul.f32 1.0, %v1130
    %v1132 = vtanh.pop %v1112
    %v1134 = vrot.slane %v986, 6
    %v1136 = vmul.f32 %v1131, %v1134
    %1138 = vrot.lane.b32.xlu0 %v1132, 64
    %v1139 = vpop.permute.xlu0 %1138
    %v1141 = vmul.f32 %v1131, %v1139
    %1143 = vrot.lane.b32.xlu0 %v1141, 32
    %v1144 = vpop.permute.xlu0 %1143
    %v1146 = vadd.f32 %v1136, %v1144
    %v1147 = vtanh.pop %v1146
    %1149 = vrot.lane.b32.xlu0 %v1147, 64
    %v1150 = vpop.permute.xlu0 %1149
    %v1152 = vmul.f32 %v1131, %v1150
    %v1154 = vrot.slane %v1152, 2
    %1155 = vrot.lane.b32.xlu0 %v1154, 32
    %v1156 = vpop.permute.xlu0 %1155
    %v1159 = vsel %vm727, %v1156, %v1086
    %v1161 = vrot.slane %v1146, 2
    %1162 = vrot.lane.b32.xlu0 %v1161, 96
    %v1163 = vpop.permute.xlu0 %1162
    %1165 = vrot.lane.b32.xlu0 %v986, 96
    %v1166 = vpop.permute.xlu0 %1165
    %v1168 = vsel %vm727, %v1163, %v1166
    %v1169 = vsel %vm727, %v1156, 0.0
    %1170 = vst.msk [vmem:[#allocation2 + $0xa] sm:$0x3] %vm296, %v1169
    %v1172 = vsel %vm162, %v1068, 0
    %1174 = vmatpush.msra.mxu0 0.0
    %1175 = vmatpush.msra.mxu0 0.0
    %1176 = vmatpush.msra.mxu0 0.0
    %1177 = vmatpush.msra.mxu0 0.0
    %1178 = vmatpush.msra.mxu0 0.0
    %1179 = vmatpush.msra.mxu0 0.0
    %1180 = vmatpush.msra.mxu0 0.0
    %1181 = vmatpush.msra.mxu0 0.0
    %1182 = vmatpush.msra.mxu0 0.0
    %1183 = vmatpush.msra.mxu0 0.0
    %1184 = vmatpush.msra.mxu0 0.0
    %1185 = vmatpush.msra.mxu0 0.0
    %1186 = vmatpush.msra.mxu0 %v222
    %1187 = vmatpush.msra.mxu0 %v221
    %1188 = vmatpush.msra.mxu0 %v220
    %1189 = vmatpush.msra.mxu0 %v219
    %1190 = vmatmul.f32.gmra.mxu0 %v1172
    %v1191 = vpop.f32.mrf.mxu0
    %v1192 = vadd.f32 0.0, %v1191
    %1193 = vdwg.mxu0
    %v1195 = vrot.slane %v1192, 4
    %v1197 = vadd.f32 %v210, %v1195
    %v1198 = vxor.u32 %v1197, 2147483648
    %v1199 = vmul.f32 %v1198, 1.442695
    %v1200 = vpow.pop %v1199
    %v1201 = vadd.f32 %v1200, 1.0
    %v1202 = vrcp.pop %v1201
    %v1203 = vmul.f32 %v1201, %v1202
    %v1204 = vsub.f32 1.0, %v1203
    %v1205 = vmul.f32 %v1202, %v1204
    %v1206 = vadd.f32 %v1202, %v1205
    %vm1207 = vweird.f32 %v1201
    %vm1208 = vweird.f32 %v1202
    %vm1209 = vmor %vm1207, %vm1208
    %v1210 = vsel %vm1209, %v1202, %v1206
    %v1211 = vand.u32 2147483647, %v1201
    %vm1212 = vcmp.eq.f32.partialorder %v1211, 8.507059e+37
    %v1213 = vand.u32 %v1201, 2147483648
    %v1214 = vor.u32 1.1754944e-38, %v1213
    %v1215 = vsel %vm1212, %v1214, %v1210
    %v1216 = vmul.f32 1.0, %v1215
    %v1217 = vtanh.pop %v1197
    %v1219 = vrot.slane %v1077, 4
    %1220 = vrot.lane.b32.xlu0 %v1219, 32
    %v1221 = vpop.permute.xlu0 %1220
    %v1223 = vmul.f32 %v1216, %v1221
    %1225 = vrot.lane.b32.xlu0 %v1217, 64
    %v1226 = vpop.permute.xlu0 %1225
    %v1228 = vmul.f32 %v1216, %v1226
    %1230 = vrot.lane.b32.xlu0 %v1228, 32
    %v1231 = vpop.permute.xlu0 %1230
    %v1233 = vadd.f32 %v1223, %v1231
    %v1234 = vtanh.pop %v1233
    %1236 = vrot.lane.b32.xlu0 %v1234, 64
    %v1237 = vpop.permute.xlu0 %1236
    %v1239 = vmul.f32 %v1216, %v1237
    %v1241 = vrot.slane %v1239, 4
    %1242 = vrot.lane.b32.xlu0 %v1241, 32
    %v1243 = vpop.permute.xlu0 %1242
    %v1245 = vsel %vm638, %v1243, %v1068
    %v1247 = vrot.slane %v1233, 4
    %1248 = vrot.lane.b32.xlu0 %v1247, 96
    %v1249 = vpop.permute.xlu0 %1248
    %v1251 = vsel %vm638, %v1249, %v1077
    %v1252 = vsel %vm638, %v1243, 0.0
    %1254 = vrot.lane.b32.xlu0 %v1252, 32
    %v1255 = vpop.permute.xlu0 %1254
    %1257 = vst.msk [vmem:[#allocation2 + $0x4] sm:$0x3] %vm381, %v1255
    %v1259 = vsel %vm162, %v1159, 0
    %1261 = vmatpush.msra.mxu0 0.0
    %1262 = vmatpush.msra.mxu0 0.0
    %1263 = vmatpush.msra.mxu0 0.0
    %1264 = vmatpush.msra.mxu0 0.0
    %1265 = vmatpush.msra.mxu0 0.0
    %1266 = vmatpush.msra.mxu0 0.0
    %1267 = vmatpush.msra.mxu0 0.0
    %1268 = vmatpush.msra.mxu0 0.0
    %1269 = vmatpush.msra.mxu0 0.0
    %1270 = vmatpush.msra.mxu0 0.0
    %1271 = vmatpush.msra.mxu0 0.0
    %1272 = vmatpush.msra.mxu0 0.0
    %1273 = vmatpush.msra.mxu0 %v218
    %1274 = vmatpush.msra.mxu0 %v217
    %1275 = vmatpush.msra.mxu0 %v216
    %1276 = vmatpush.msra.mxu0 %v215
    %1277 = vmatmul.f32.gmra.mxu0 %v1259
    %v1278 = vpop.f32.mrf.mxu0
    %v1279 = vadd.f32 0.0, %v1278
    %1280 = vdwg.mxu0
    %v1282 = vrot.slane %v1279, 4
    %v1284 = vadd.f32 %v190, %v1282
    %v1285 = vxor.u32 %v1284, 2147483648
    %v1286 = vmul.f32 %v1285, 1.442695
    %v1287 = vpow.pop %v1286
    %v1288 = vadd.f32 %v1287, 1.0
    %v1289 = vrcp.pop %v1288
    %v1290 = vmul.f32 %v1288, %v1289
    %v1291 = vsub.f32 1.0, %v1290
    %v1292 = vmul.f32 %v1289, %v1291
    %v1293 = vadd.f32 %v1289, %v1292
    %vm1294 = vweird.f32 %v1288
    %vm1295 = vweird.f32 %v1289
    %vm1296 = vmor %vm1294, %vm1295
    %v1297 = vsel %vm1296, %v1289, %v1293
    %v1298 = vand.u32 2147483647, %v1288
    %vm1299 = vcmp.eq.f32.partialorder %v1298, 8.507059e+37
    %v1300 = vand.u32 %v1288, 2147483648
    %v1301 = vor.u32 1.1754944e-38, %v1300
    %v1302 = vsel %vm1299, %v1301, %v1297
    %v1303 = vmul.f32 1.0, %v1302
    %v1304 = vtanh.pop %v1284
    %v1306 = vrot.slane %v1168, 4
    %1307 = vrot.lane.b32.xlu0 %v1306, 32
    %v1308 = vpop.permute.xlu0 %1307
    %v1310 = vmul.f32 %v1303, %v1308
    %1312 = vrot.lane.b32.xlu0 %v1304, 64
    %v1313 = vpop.permute.xlu0 %1312
    %v1315 = vmul.f32 %v1303, %v1313
    %1317 = vrot.lane.b32.xlu0 %v1315, 32
    %v1318 = vpop.permute.xlu0 %1317
    %v1320 = vadd.f32 %v1310, %v1318
    %v1321 = vtanh.pop %v1320
    %1323 = vrot.lane.b32.xlu0 %v1321, 64
    %v1324 = vpop.permute.xlu0 %1323
    %v1326 = vmul.f32 %v1303, %v1324
    %v1328 = vrot.slane %v1326, 4
    %1329 = vrot.lane.b32.xlu0 %v1328, 32
    %v1330 = vpop.permute.xlu0 %1329
    %v1332 = vsel %vm545, %v1330, %v1159
    %v1334 = vrot.slane %v1320, 4
    %1335 = vrot.lane.b32.xlu0 %v1334, 96
    %v1336 = vpop.permute.xlu0 %1335
    %v1338 = vsel %vm545, %v1336, %v1168
    %v1339 = vsel %vm545, %v1330, 0.0
    %1340 = vst.msk [vmem:[#allocation2 + $0xc] sm:$0x3] %vm296, %v1339
    %v1342 = vsel %vm162, %v1245, 0
    %1344 = vmatpush.msra.mxu0 0.0
    %1345 = vmatpush.msra.mxu0 0.0
    %1346 = vmatpush.msra.mxu0 0.0
    %1347 = vmatpush.msra.mxu0 0.0
    %1348 = vmatpush.msra.mxu0 0.0
    %1349 = vmatpush.msra.mxu0 0.0
    %1350 = vmatpush.msra.mxu0 0.0
    %1351 = vmatpush.msra.mxu0 0.0
    %1352 = vmatpush.msra.mxu0 0.0
    %1353 = vmatpush.msra.mxu0 0.0
    %1354 = vmatpush.msra.mxu0 0.0
    %1355 = vmatpush.msra.mxu0 0.0
    %1356 = vmatpush.msra.mxu0 %v222
    %1357 = vmatpush.msra.mxu0 %v221
    %1358 = vmatpush.msra.mxu0 %v220
    %1359 = vmatpush.msra.mxu0 %v219
    %1360 = vmatmul.f32.gmra.mxu0 %v1342
    %v1361 = vpop.f32.mrf.mxu0
    %v1362 = vadd.f32 0.0, %v1361
    %1363 = vdwg.mxu0
    %v1365 = vrot.slane %v1362, 6
    %v1367 = vadd.f32 %v210, %v1365
    %v1368 = vxor.u32 %v1367, 2147483648
    %v1369 = vmul.f32 %v1368, 1.442695
    %v1370 = vpow.pop %v1369
    %v1371 = vadd.f32 %v1370, 1.0
    %v1372 = vrcp.pop %v1371
    %v1373 = vmul.f32 %v1371, %v1372
    %v1374 = vsub.f32 1.0, %v1373
    %v1375 = vmul.f32 %v1372, %v1374
    %v1376 = vadd.f32 %v1372, %v1375
    %vm1377 = vweird.f32 %v1371
    %vm1378 = vweird.f32 %v1372
    %vm1379 = vmor %vm1377, %vm1378
    %v1380 = vsel %vm1379, %v1372, %v1376
    %v1381 = vand.u32 2147483647, %v1371
    %vm1382 = vcmp.eq.f32.partialorder %v1381, 8.507059e+37
    %v1383 = vand.u32 %v1371, 2147483648
    %v1384 = vor.u32 1.1754944e-38, %v1383
    %v1385 = vsel %vm1382, %v1384, %v1380
    %v1386 = vmul.f32 1.0, %v1385
    %v1387 = vtanh.pop %v1367
    %v1389 = vrot.slane %v1251, 6
    %1390 = vrot.lane.b32.xlu0 %v1389, 32
    %v1391 = vpop.permute.xlu0 %1390
    %v1393 = vmul.f32 %v1386, %v1391
    %1395 = vrot.lane.b32.xlu0 %v1387, 64
    %v1396 = vpop.permute.xlu0 %1395
    %v1398 = vmul.f32 %v1386, %v1396
    %1400 = vrot.lane.b32.xlu0 %v1398, 32
    %v1401 = vpop.permute.xlu0 %1400
    %v1403 = vadd.f32 %v1393, %v1401
    %v1404 = vtanh.pop %v1403
    %1406 = vrot.lane.b32.xlu0 %v1404, 64
    %v1407 = vpop.permute.xlu0 %1406
    %v1409 = vmul.f32 %v1386, %v1407
    %v1411 = vrot.slane %v1409, 2
    %1412 = vrot.lane.b32.xlu0 %v1411, 32
    %v1413 = vpop.permute.xlu0 %1412
    %v1415 = vsel %vm454, %v1413, %v1245
    %v1417 = vrot.slane %v1403, 2
    %1418 = vrot.lane.b32.xlu0 %v1417, 96
    %v1419 = vpop.permute.xlu0 %1418
    %v1421 = vsel %vm454, %v1419, %v1251
    %v1422 = vsel %vm454, %v1413, 0.0
    %1424 = vrot.lane.b32.xlu0 %v1422, 32
    %v1425 = vpop.permute.xlu0 %1424
    %1427 = vst.msk [vmem:[#allocation2 + $0x2] sm:$0x3] %vm381, %v1425
    %v1429 = vsel %vm162, %v1332, 0
    %1431 = vmatpush.msra.mxu0 0.0
    %1432 = vmatpush.msra.mxu0 0.0
    %1433 = vmatpush.msra.mxu0 0.0
    %1434 = vmatpush.msra.mxu0 0.0
    %1435 = vmatpush.msra.mxu0 0.0
    %1436 = vmatpush.msra.mxu0 0.0
    %1437 = vmatpush.msra.mxu0 0.0
    %1438 = vmatpush.msra.mxu0 0.0
    %1439 = vmatpush.msra.mxu0 0.0
    %1440 = vmatpush.msra.mxu0 0.0
    %1441 = vmatpush.msra.mxu0 0.0
    %1442 = vmatpush.msra.mxu0 0.0
    %1443 = vmatpush.msra.mxu0 %v218
    %1444 = vmatpush.msra.mxu0 %v217
    %1445 = vmatpush.msra.mxu0 %v216
    %1446 = vmatpush.msra.mxu0 %v215
    %1447 = vmatmul.f32.gmra.mxu0 %v1429
    %v1448 = vpop.f32.mrf.mxu0
    %v1449 = vadd.f32 0.0, %v1448
    %1450 = vdwg.mxu0
    %v1452 = vrot.slane %v1449, 2
    %v1454 = vadd.f32 %v190, %v1452
    %v1455 = vxor.u32 %v1454, 2147483648
    %v1456 = vmul.f32 %v1455, 1.442695
    %v1457 = vpow.pop %v1456
    %v1458 = vadd.f32 %v1457, 1.0
    %v1459 = vrcp.pop %v1458
    %v1460 = vmul.f32 %v1458, %v1459
    %v1461 = vsub.f32 1.0, %v1460
    %v1462 = vmul.f32 %v1459, %v1461
    %v1463 = vadd.f32 %v1459, %v1462
    %vm1464 = vweird.f32 %v1458
    %vm1465 = vweird.f32 %v1459
    %vm1466 = vmor %vm1464, %vm1465
    %v1467 = vsel %vm1466, %v1459, %v1463
    %v1468 = vand.u32 2147483647, %v1458
    %vm1469 = vcmp.eq.f32.partialorder %v1468, 8.507059e+37
    %v1470 = vand.u32 %v1458, 2147483648
    %v1471 = vor.u32 1.1754944e-38, %v1470
    %v1472 = vsel %vm1469, %v1471, %v1467
    %v1473 = vmul.f32 1.0, %v1472
    %v1474 = vtanh.pop %v1454
    %v1476 = vrot.slane %v1338, 2
    %1477 = vrot.lane.b32.xlu0 %v1476, 32
    %v1478 = vpop.permute.xlu0 %1477
    %v1480 = vmul.f32 %v1473, %v1478
    %1482 = vrot.lane.b32.xlu0 %v1474, 64
    %v1483 = vpop.permute.xlu0 %1482
    %v1485 = vmul.f32 %v1473, %v1483
    %1487 = vrot.lane.b32.xlu0 %v1485, 32
    %v1488 = vpop.permute.xlu0 %1487
    %v1490 = vadd.f32 %v1480, %v1488
    %v1491 = vtanh.pop %v1490
    %1493 = vrot.lane.b32.xlu0 %v1491, 64
    %v1494 = vpop.permute.xlu0 %1493
    %v1496 = vmul.f32 %v1473, %v1494
    %v1498 = vrot.slane %v1496, 6
    %1499 = vrot.lane.b32.xlu0 %v1498, 32
    %v1500 = vpop.permute.xlu0 %1499
    %v1502 = vsel %vm364, %v1500, 0.0
    %1503 = vst.msk [vmem:[#allocation2 + $0xe] sm:$0x3] %vm296, %v1502
    %v1505 = vsel %vm162, %v1415, 0
    %1507 = vmatpush.msra.mxu0 0.0
    %1508 = vmatpush.msra.mxu0 0.0
    %1509 = vmatpush.msra.mxu0 0.0
    %1510 = vmatpush.msra.mxu0 0.0
    %1511 = vmatpush.msra.mxu0 0.0
    %1512 = vmatpush.msra.mxu0 0.0
    %1513 = vmatpush.msra.mxu0 0.0
    %1514 = vmatpush.msra.mxu0 0.0
    %1515 = vmatpush.msra.mxu0 0.0
    %1516 = vmatpush.msra.mxu0 0.0
    %1517 = vmatpush.msra.mxu0 0.0
    %1518 = vmatpush.msra.mxu0 0.0
    %1519 = vmatpush.msra.mxu0 %v222
    %1520 = vmatpush.msra.mxu0 %v221
    %1521 = vmatpush.msra.mxu0 %v220
    %1522 = vmatpush.msra.mxu0 %v219
    %1523 = vmatmul.f32.gmra.mxu0 %v1505
    %v1524 = vpop.f32.mrf.mxu0
    %v1525 = vadd.f32 0.0, %v1524
    %1526 = vdwg.mxu0
    %v1527 = vadd.f32 %v210, %v1525
    %v1528 = vxor.u32 %v1527, 2147483648
    %v1529 = vmul.f32 %v1528, 1.442695
    %v1530 = vpow.pop %v1529
    %v1531 = vadd.f32 %v1530, 1.0
    %v1532 = vrcp.pop %v1531
    %v1533 = vmul.f32 %v1531, %v1532
    %v1534 = vsub.f32 1.0, %v1533
    %v1535 = vmul.f32 %v1532, %v1534
    %v1536 = vadd.f32 %v1532, %v1535
    %vm1537 = vweird.f32 %v1531
    %vm1538 = vweird.f32 %v1532
    %vm1539 = vmor %vm1537, %vm1538
    %v1540 = vsel %vm1539, %v1532, %v1536
    %v1541 = vand.u32 2147483647, %v1531
    %vm1542 = vcmp.eq.f32.partialorder %v1541, 8.507059e+37
    %v1543 = vand.u32 %v1531, 2147483648
    %v1544 = vor.u32 1.1754944e-38, %v1543
    %v1545 = vsel %vm1542, %v1544, %v1540
    %v1546 = vmul.f32 1.0, %v1545
    %v1547 = vtanh.pop %v1527
    %1549 = vrot.lane.b32.xlu0 %v1421, 32
    %v1550 = vpop.permute.xlu0 %1549
    %v1552 = vmul.f32 %v1546, %v1550
    %1554 = vrot.lane.b32.xlu0 %v1547, 64
    %v1555 = vpop.permute.xlu0 %1554
    %v1557 = vmul.f32 %v1546, %v1555
    %1559 = vrot.lane.b32.xlu0 %v1557, 32
    %v1560 = vpop.permute.xlu0 %1559
    %v1562 = vadd.f32 %v1552, %v1560
    %v1563 = vtanh.pop %v1562
    %1565 = vrot.lane.b32.xlu0 %v1563, 64
    %v1566 = vpop.permute.xlu0 %1565
    %v1568 = vmul.f32 %v1546, %v1566
    %v1569 = vsel %vm289, %v1568, 0.0
    %1571 = vrot.lane.b32.xlu0 %v1569, 64
    %v1572 = vpop.permute.xlu0 %1571
    %1574 = vst.msk [vmem:[#allocation2] sm:$0x3] %vm381, %v1572
    %v1575 = vld [vmem:[#allocation2] sm:$0xff]
    %v1576 = vld [vmem:[#allocation2 + $0x8] sm:$0xff]
    %v1577 = vld [vmem:[#allocation9] sm:$0xff]
    %v1578 = vld [vmem:[#allocation9 + $0x8] sm:$0xff]
    %v1579 = vld [vmem:[#allocation9 + $0x10] sm:$0xff]
    %v1580 = vld [vmem:[#allocation9 + $0x18] sm:$0xff]
    %v1581 = vld [vmem:[#allocation9 + $0x20] sm:$0xff]
    %v1582 = vld [vmem:[#allocation9 + $0x28] sm:$0xff]
    %v1583 = vld [vmem:[#allocation9 + $0x30] sm:$0xff]
    %v1584 = vld [vmem:[#allocation9 + $0x38] sm:$0xff]
    %v1585 = vld [vmem:[#allocation9 + $0x40] sm:$0xff]
    %v1586 = vld [vmem:[#allocation9 + $0x48] sm:$0xff]
    %v1587 = vld [vmem:[#allocation9 + $0x50] sm:$0xff]
    %v1588 = vld [vmem:[#allocation9 + $0x58] sm:$0xff]
    %v1589 = vld [vmem:[#allocation9 + $0x60] sm:$0xff]
    %v1590 = vld [vmem:[#allocation9 + $0x68] sm:$0xff]
    %v1591 = vld [vmem:[#allocation9 + $0x70] sm:$0xff]
    %v1592 = vld [vmem:[#allocation9 + $0x78] sm:$0xff]
    %v1593 = vld [vmem:[%s9] sm:$0x3]
    %v1595 = vperm.slane %v1593, 0
    %v1596 = vperm.slane %v1593, 1
    %vm1599 = vcmask 523264
    %v1601 = vsel %vm1599, %v1575, 0
    %v1604 = vsel %vm1599, %v1576, 0
    %1606 = vmatpush.msra.mxu0 0.0
    %1607 = vmatpush.msra.mxu0 0.0
    %1608 = vmatpush.msra.mxu0 0.0
    %1609 = vmatpush.msra.mxu0 0.0
    %1610 = vmatpush.msra.mxu0 0.0
    %1611 = vmatpush.msra.mxu0 0.0
    %1612 = vmatpush.msra.mxu0 0.0
    %1613 = vmatpush.msra.mxu0 0.0
    %1614 = vmatpush.msra.mxu0 %v1591
    %1615 = vmatpush.msra.mxu0 %v1589
    %1616 = vmatpush.msra.mxu0 %v1587
    %1617 = vmatpush.msra.mxu0 %v1585
    %1618 = vmatpush.msra.mxu0 %v1583
    %1619 = vmatpush.msra.mxu0 %v1581
    %1620 = vmatpush.msra.mxu0 %v1579
    %1621 = vmatpush.msra.mxu0 %v1577
    %1622 = vmatmul.f32.gmra.mxu0 %v1601
    %v1623 = vpop.f32.mrf.mxu0
    %v1624 = vadd.f32 %v1595, %v1623
    %1625 = vmatmul.f32.gmra.mxu0 %v1604
    %v1626 = vpop.f32.mrf.mxu0
    %v1627 = vadd.f32 %v1595, %v1626
    %1628 = vdwg.mxu0
    %1629 = vmatpush.msra.mxu0 0.0
    %1630 = vmatpush.msra.mxu0 0.0
    %1631 = vmatpush.msra.mxu0 0.0
    %1632 = vmatpush.msra.mxu0 0.0
    %1633 = vmatpush.msra.mxu0 0.0
    %1634 = vmatpush.msra.mxu0 0.0
    %1635 = vmatpush.msra.mxu0 0.0
    %1636 = vmatpush.msra.mxu0 0.0
    %1637 = vmatpush.msra.mxu0 %v1592
    %1638 = vmatpush.msra.mxu0 %v1590
    %1639 = vmatpush.msra.mxu0 %v1588
    %1640 = vmatpush.msra.mxu0 %v1586
    %1641 = vmatpush.msra.mxu0 %v1584
    %1642 = vmatpush.msra.mxu0 %v1582
    %1643 = vmatpush.msra.mxu0 %v1580
    %1644 = vmatpush.msra.mxu0 %v1578
    %1645 = vmatmul.f32.gmra.mxu0 %v1601
    %v1646 = vpop.f32.mrf.mxu0
    %v1647 = vadd.f32 %v1596, %v1646
    %1648 = vmatmul.f32.gmra.mxu0 %v1604
    %v1649 = vpop.f32.mrf.mxu0
    %v1650 = vadd.f32 %v1596, %v1649
    %1651 = vdwg.mxu0
    %v1652 = vld [vmem:[#allocation10] sm:$0xff]
    %v1653 = vld [vmem:[#allocation10 + $0x8] sm:$0xff]
    %v1654 = vld [vmem:[#allocation10 + $0x10] sm:$0xff]
    %v1655 = vld [vmem:[#allocation10 + $0x18] sm:$0xff]
    %v1656 = vld [vmem:[#allocation12] sm:$0xff]
    %v1657 = vld [vmem:[#allocation12 + $0x8] sm:$0xff]
    %v1658 = vld [vmem:[#allocation12 + $0x10] sm:$0xff]
    %v1659 = vld [vmem:[#allocation12 + $0x18] sm:$0xff]
    %1660 = vmatpush.msra.mxu0 0.0
    %1661 = vmatpush.msra.mxu0 0.0
    %1662 = vmatpush.msra.mxu0 0.0
    %1663 = vmatpush.msra.mxu0 0.0
    %1664 = vmatpush.msra.mxu0 0.0
    %1665 = vmatpush.msra.mxu0 0.0
    %1666 = vmatpush.msra.mxu0 0.0
    %1667 = vmatpush.msra.mxu0 0.0
    %1668 = vmatpush.msra.mxu0 0.0
    %1669 = vmatpush.msra.mxu0 0.0
    %1670 = vmatpush.msra.mxu0 0.0
    %1671 = vmatpush.msra.mxu0 0.0
    %1672 = vmatpush.msra.mxu0 %v1655
    %1673 = vmatpush.msra.mxu0 %v1654
    %1674 = vmatpush.msra.mxu0 %v1653
    %1675 = vmatpush.msra.mxu0 %v1652
    %1676 = vmatmul.f32.gmra.mxu0 %v224
    %v1677 = vpop.f32.mrf.mxu0
    %v1678 = vadd.f32 0.0, %v1677
    %1679 = vdwg.mxu0
    %v1680 = vadd.f32 %v1624, %v1678
    %v1681 = vxor.u32 %v1680, 2147483648
    %v1682 = vmul.f32 %v1681, 1.442695
    %v1683 = vpow.pop %v1682
    %v1684 = vadd.f32 %v1683, 1.0
    %v1685 = vrcp.pop %v1684
    %v1686 = vmul.f32 %v1684, %v1685
    %v1687 = vsub.f32 1.0, %v1686
    %v1688 = vmul.f32 %v1685, %v1687
    %v1689 = vadd.f32 %v1685, %v1688
    %vm1690 = vweird.f32 %v1684
    %vm1691 = vweird.f32 %v1685
    %vm1692 = vmor %vm1690, %vm1691
    %v1693 = vsel %vm1692, %v1685, %v1689
    %v1694 = vand.u32 2147483647, %v1684
    %vm1695 = vcmp.eq.f32.partialorder %v1694, 8.507059e+37
    %v1696 = vand.u32 %v1684, 2147483648
    %v1697 = vor.u32 1.1754944e-38, %v1696
    %v1698 = vsel %vm1695, %v1697, %v1693
    %v1699 = vmul.f32 1.0, %v1698
    %v1700 = vtanh.pop %v1680
    %v1701 = vmul.f32 %v1699, 0.0
    %1703 = vrot.lane.b32.xlu0 %v1700, 64
    %v1704 = vpop.permute.xlu0 %1703
    %v1706 = vmul.f32 %v1699, %v1704
    %1708 = vrot.lane.b32.xlu0 %v1706, 32
    %v1709 = vpop.permute.xlu0 %1708
    %v1711 = vadd.f32 %v1701, %v1709
    %v1712 = vtanh.pop %v1711
    %1714 = vrot.lane.b32.xlu0 %v1712, 64
    %v1715 = vpop.permute.xlu0 %1714
    %v1717 = vmul.f32 %v1699, %v1715
    %v1718 = vsel %vm289, %v1717, 0.0
    %v1719 = vsel %vm289, %v1711, 0.0
    %1721 = vrot.lane.b32.xlu0 %v1718, 32
    %v1722 = vpop.permute.xlu0 %1721
    %1724 = vst.msk [vmem:[#allocation3] sm:$0x3] %vm296, %v1722
    %1725 = vmatpush.msra.mxu0 0.0
    %1726 = vmatpush.msra.mxu0 0.0
    %1727 = vmatpush.msra.mxu0 0.0
    %1728 = vmatpush.msra.mxu0 0.0
    %1729 = vmatpush.msra.mxu0 0.0
    %1730 = vmatpush.msra.mxu0 0.0
    %1731 = vmatpush.msra.mxu0 0.0
    %1732 = vmatpush.msra.mxu0 0.0
    %1733 = vmatpush.msra.mxu0 0.0
    %1734 = vmatpush.msra.mxu0 0.0
    %1735 = vmatpush.msra.mxu0 0.0
    %1736 = vmatpush.msra.mxu0 0.0
    %1737 = vmatpush.msra.mxu0 %v1659
    %1738 = vmatpush.msra.mxu0 %v1658
    %1739 = vmatpush.msra.mxu0 %v1657
    %1740 = vmatpush.msra.mxu0 %v1656
    %1741 = vmatmul.f32.gmra.mxu0 %v224
    %v1742 = vpop.f32.mrf.mxu0
    %v1743 = vadd.f32 0.0, %v1742
    %1744 = vdwg.mxu0
    %v1746 = vrot.slane %v1743, 2
    %v1748 = vadd.f32 %v1650, %v1746
    %v1749 = vxor.u32 %v1748, 2147483648
    %v1750 = vmul.f32 %v1749, 1.442695
    %v1751 = vpow.pop %v1750
    %v1752 = vadd.f32 %v1751, 1.0
    %v1753 = vrcp.pop %v1752
    %v1754 = vmul.f32 %v1752, %v1753
    %v1755 = vsub.f32 1.0, %v1754
    %v1756 = vmul.f32 %v1753, %v1755
    %v1757 = vadd.f32 %v1753, %v1756
    %vm1758 = vweird.f32 %v1752
    %vm1759 = vweird.f32 %v1753
    %vm1760 = vmor %vm1758, %vm1759
    %v1761 = vsel %vm1760, %v1753, %v1757
    %v1762 = vand.u32 2147483647, %v1752
    %vm1763 = vcmp.eq.f32.partialorder %v1762, 8.507059e+37
    %v1764 = vand.u32 %v1752, 2147483648
    %v1765 = vor.u32 1.1754944e-38, %v1764
    %v1766 = vsel %vm1763, %v1765, %v1761
    %v1767 = vmul.f32 1.0, %v1766
    %v1768 = vtanh.pop %v1748
    %v1769 = vmul.f32 %v1767, 0.0
    %1771 = vrot.lane.b32.xlu0 %v1768, 64
    %v1772 = vpop.permute.xlu0 %1771
    %v1774 = vmul.f32 %v1767, %v1772
    %1776 = vrot.lane.b32.xlu0 %v1774, 32
    %v1777 = vpop.permute.xlu0 %1776
    %v1779 = vadd.f32 %v1769, %v1777
    %v1780 = vtanh.pop %v1779
    %1782 = vrot.lane.b32.xlu0 %v1780, 64
    %v1783 = vpop.permute.xlu0 %1782
    %v1785 = vmul.f32 %v1767, %v1783
    %v1787 = vrot.slane %v1785, 6
    %1788 = vrot.lane.b32.xlu0 %v1787, 32
    %v1789 = vpop.permute.xlu0 %1788
    %v1791 = vsel %vm364, %v1789, 0.0
    %v1793 = vrot.slane %v1779, 6
    %1794 = vrot.lane.b32.xlu0 %v1793, 96
    %v1795 = vpop.permute.xlu0 %1794
    %v1797 = vsel %vm364, %v1795, 0.0
    %1799 = vrot.lane.b32.xlu0 %v1791, 32
    %v1800 = vpop.permute.xlu0 %1799
    %1802 = vst.msk [vmem:[#allocation3 + $0xe] sm:$0x3] %vm381, %v1800
    %v1803 = vsel %vm162, %v1722, 0
    %1805 = vmatpush.msra.mxu0 0.0
    %1806 = vmatpush.msra.mxu0 0.0
    %1807 = vmatpush.msra.mxu0 0.0
    %1808 = vmatpush.msra.mxu0 0.0
    %1809 = vmatpush.msra.mxu0 0.0
    %1810 = vmatpush.msra.mxu0 0.0
    %1811 = vmatpush.msra.mxu0 0.0
    %1812 = vmatpush.msra.mxu0 0.0
    %1813 = vmatpush.msra.mxu0 0.0
    %1814 = vmatpush.msra.mxu0 0.0
    %1815 = vmatpush.msra.mxu0 0.0
    %1816 = vmatpush.msra.mxu0 0.0
    %1817 = vmatpush.msra.mxu0 %v1655
    %1818 = vmatpush.msra.mxu0 %v1654
    %1819 = vmatpush.msra.mxu0 %v1653
    %1820 = vmatpush.msra.mxu0 %v1652
    %1821 = vmatmul.f32.gmra.mxu0 %v1803
    %v1822 = vpop.f32.mrf.mxu0
    %v1823 = vadd.f32 0.0, %v1822
    %1824 = vdwg.mxu0
    %v1826 = vrot.slane %v1823, 6
    %v1828 = vadd.f32 %v1624, %v1826
    %v1829 = vxor.u32 %v1828, 2147483648
    %v1830 = vmul.f32 %v1829, 1.442695
    %v1831 = vpow.pop %v1830
    %v1832 = vadd.f32 %v1831, 1.0
    %v1833 = vrcp.pop %v1832
    %v1834 = vmul.f32 %v1832, %v1833
    %v1835 = vsub.f32 1.0, %v1834
    %v1836 = vmul.f32 %v1833, %v1835
    %v1837 = vadd.f32 %v1833, %v1836
    %vm1838 = vweird.f32 %v1832
    %vm1839 = vweird.f32 %v1833
    %vm1840 = vmor %vm1838, %vm1839
    %v1841 = vsel %vm1840, %v1833, %v1837
    %v1842 = vand.u32 2147483647, %v1832
    %vm1843 = vcmp.eq.f32.partialorder %v1842, 8.507059e+37
    %v1844 = vand.u32 %v1832, 2147483648
    %v1845 = vor.u32 1.1754944e-38, %v1844
    %v1846 = vsel %vm1843, %v1845, %v1841
    %v1847 = vmul.f32 1.0, %v1846
    %v1848 = vtanh.pop %v1828
    %v1850 = vrot.slane %v1719, 6
    %v1852 = vmul.f32 %v1847, %v1850
    %1854 = vrot.lane.b32.xlu0 %v1848, 64
    %v1855 = vpop.permute.xlu0 %1854
    %v1857 = vmul.f32 %v1847, %v1855
    %1859 = vrot.lane.b32.xlu0 %v1857, 32
    %v1860 = vpop.permute.xlu0 %1859
    %v1862 = vadd.f32 %v1852, %v1860
    %v1863 = vtanh.pop %v1862
    %1865 = vrot.lane.b32.xlu0 %v1863, 64
    %v1866 = vpop.permute.xlu0 %1865
    %v1868 = vmul.f32 %v1847, %v1866
    %v1870 = vrot.slane %v1868, 2
    %1871 = vrot.lane.b32.xlu0 %v1870, 32
    %v1872 = vpop.permute.xlu0 %1871
    %v1874 = vsel %vm454, %v1872, %v1722
    %v1876 = vrot.slane %v1862, 2
    %1877 = vrot.lane.b32.xlu0 %v1876, 96
    %v1878 = vpop.permute.xlu0 %1877
    %1880 = vrot.lane.b32.xlu0 %v1719, 96
    %v1881 = vpop.permute.xlu0 %1880
    %v1883 = vsel %vm454, %v1878, %v1881
    %v1884 = vsel %vm454, %v1872, 0.0
    %1885 = vst.msk [vmem:[#allocation3 + $0x2] sm:$0x3] %vm296, %v1884
    %v1886 = vsel %vm162, %v1791, 0
    %1888 = vmatpush.msra.mxu0 0.0
    %1889 = vmatpush.msra.mxu0 0.0
    %1890 = vmatpush.msra.mxu0 0.0
    %1891 = vmatpush.msra.mxu0 0.0
    %1892 = vmatpush.msra.mxu0 0.0
    %1893 = vmatpush.msra.mxu0 0.0
    %1894 = vmatpush.msra.mxu0 0.0
    %1895 = vmatpush.msra.mxu0 0.0
    %1896 = vmatpush.msra.mxu0 0.0
    %1897 = vmatpush.msra.mxu0 0.0
    %1898 = vmatpush.msra.mxu0 0.0
    %1899 = vmatpush.msra.mxu0 0.0
    %1900 = vmatpush.msra.mxu0 %v1659
    %1901 = vmatpush.msra.mxu0 %v1658
    %1902 = vmatpush.msra.mxu0 %v1657
    %1903 = vmatpush.msra.mxu0 %v1656
    %1904 = vmatmul.f32.gmra.mxu0 %v1886
    %v1905 = vpop.f32.mrf.mxu0
    %v1906 = vadd.f32 0.0, %v1905
    %1907 = vdwg.mxu0
    %v1909 = vrot.slane %v1906, 4
    %v1911 = vadd.f32 %v1650, %v1909
    %v1912 = vxor.u32 %v1911, 2147483648
    %v1913 = vmul.f32 %v1912, 1.442695
    %v1914 = vpow.pop %v1913
    %v1915 = vadd.f32 %v1914, 1.0
    %v1916 = vrcp.pop %v1915
    %v1917 = vmul.f32 %v1915, %v1916
    %v1918 = vsub.f32 1.0, %v1917
    %v1919 = vmul.f32 %v1916, %v1918
    %v1920 = vadd.f32 %v1916, %v1919
    %vm1921 = vweird.f32 %v1915
    %vm1922 = vweird.f32 %v1916
    %vm1923 = vmor %vm1921, %vm1922
    %v1924 = vsel %vm1923, %v1916, %v1920
    %v1925 = vand.u32 2147483647, %v1915
    %vm1926 = vcmp.eq.f32.partialorder %v1925, 8.507059e+37
    %v1927 = vand.u32 %v1915, 2147483648
    %v1928 = vor.u32 1.1754944e-38, %v1927
    %v1929 = vsel %vm1926, %v1928, %v1924
    %v1930 = vmul.f32 1.0, %v1929
    %v1931 = vtanh.pop %v1911
    %v1933 = vrot.slane %v1797, 4
    %1934 = vrot.lane.b32.xlu0 %v1933, 32
    %v1935 = vpop.permute.xlu0 %1934
    %v1937 = vmul.f32 %v1930, %v1935
    %1939 = vrot.lane.b32.xlu0 %v1931, 64
    %v1940 = vpop.permute.xlu0 %1939
    %v1942 = vmul.f32 %v1930, %v1940
    %1944 = vrot.lane.b32.xlu0 %v1942, 32
    %v1945 = vpop.permute.xlu0 %1944
    %v1947 = vadd.f32 %v1937, %v1945
    %v1948 = vtanh.pop %v1947
    %1950 = vrot.lane.b32.xlu0 %v1948, 64
    %v1951 = vpop.permute.xlu0 %1950
    %v1953 = vmul.f32 %v1930, %v1951
    %v1955 = vrot.slane %v1953, 4
    %1956 = vrot.lane.b32.xlu0 %v1955, 32
    %v1957 = vpop.permute.xlu0 %1956
    %v1959 = vsel %vm545, %v1957, %v1791
    %v1961 = vrot.slane %v1947, 4
    %1962 = vrot.lane.b32.xlu0 %v1961, 96
    %v1963 = vpop.permute.xlu0 %1962
    %v1965 = vsel %vm545, %v1963, %v1797
    %v1966 = vsel %vm545, %v1957, 0.0
    %1968 = vrot.lane.b32.xlu0 %v1966, 32
    %v1969 = vpop.permute.xlu0 %1968
    %1971 = vst.msk [vmem:[#allocation3 + $0xc] sm:$0x3] %vm381, %v1969
    %v1973 = vsel %vm162, %v1874, 0
    %1975 = vmatpush.msra.mxu0 0.0
    %1976 = vmatpush.msra.mxu0 0.0
    %1977 = vmatpush.msra.mxu0 0.0
    %1978 = vmatpush.msra.mxu0 0.0
    %1979 = vmatpush.msra.mxu0 0.0
    %1980 = vmatpush.msra.mxu0 0.0
    %1981 = vmatpush.msra.mxu0 0.0
    %1982 = vmatpush.msra.mxu0 0.0
    %1983 = vmatpush.msra.mxu0 0.0
    %1984 = vmatpush.msra.mxu0 0.0
    %1985 = vmatpush.msra.mxu0 0.0
    %1986 = vmatpush.msra.mxu0 0.0
    %1987 = vmatpush.msra.mxu0 %v1655
    %1988 = vmatpush.msra.mxu0 %v1654
    %1989 = vmatpush.msra.mxu0 %v1653
    %1990 = vmatpush.msra.mxu0 %v1652
    %1991 = vmatmul.f32.gmra.mxu0 %v1973
    %v1992 = vpop.f32.mrf.mxu0
    %v1993 = vadd.f32 0.0, %v1992
    %1994 = vdwg.mxu0
    %v1996 = vrot.slane %v1993, 4
    %v1998 = vadd.f32 %v1624, %v1996
    %v1999 = vxor.u32 %v1998, 2147483648
    %v2000 = vmul.f32 %v1999, 1.442695
    %v2001 = vpow.pop %v2000
    %v2002 = vadd.f32 %v2001, 1.0
    %v2003 = vrcp.pop %v2002
    %v2004 = vmul.f32 %v2002, %v2003
    %v2005 = vsub.f32 1.0, %v2004
    %v2006 = vmul.f32 %v2003, %v2005
    %v2007 = vadd.f32 %v2003, %v2006
    %vm2008 = vweird.f32 %v2002
    %vm2009 = vweird.f32 %v2003
    %vm2010 = vmor %vm2008, %vm2009
    %v2011 = vsel %vm2010, %v2003, %v2007
    %v2012 = vand.u32 2147483647, %v2002
    %vm2013 = vcmp.eq.f32.partialorder %v2012, 8.507059e+37
    %v2014 = vand.u32 %v2002, 2147483648
    %v2015 = vor.u32 1.1754944e-38, %v2014
    %v2016 = vsel %vm2013, %v2015, %v2011
    %v2017 = vmul.f32 1.0, %v2016
    %v2018 = vtanh.pop %v1998
    %v2020 = vrot.slane %v1883, 4
    %2021 = vrot.lane.b32.xlu0 %v2020, 32
    %v2022 = vpop.permute.xlu0 %2021
    %v2024 = vmul.f32 %v2017, %v2022
    %2026 = vrot.lane.b32.xlu0 %v2018, 64
    %v2027 = vpop.permute.xlu0 %2026
    %v2029 = vmul.f32 %v2017, %v2027
    %2031 = vrot.lane.b32.xlu0 %v2029, 32
    %v2032 = vpop.permute.xlu0 %2031
    %v2034 = vadd.f32 %v2024, %v2032
    %v2035 = vtanh.pop %v2034
    %2037 = vrot.lane.b32.xlu0 %v2035, 64
    %v2038 = vpop.permute.xlu0 %2037
    %v2040 = vmul.f32 %v2017, %v2038
    %v2042 = vrot.slane %v2040, 4
    %2043 = vrot.lane.b32.xlu0 %v2042, 32
    %v2044 = vpop.permute.xlu0 %2043
    %v2046 = vsel %vm638, %v2044, %v1874
    %v2048 = vrot.slane %v2034, 4
    %2049 = vrot.lane.b32.xlu0 %v2048, 96
    %v2050 = vpop.permute.xlu0 %2049
    %v2052 = vsel %vm638, %v2050, %v1883
    %v2053 = vsel %vm638, %v2044, 0.0
    %2054 = vst.msk [vmem:[#allocation3 + $0x4] sm:$0x3] %vm296, %v2053
    %v2056 = vsel %vm162, %v1959, 0
    %2058 = vmatpush.msra.mxu0 0.0
    %2059 = vmatpush.msra.mxu0 0.0
    %2060 = vmatpush.msra.mxu0 0.0
    %2061 = vmatpush.msra.mxu0 0.0
    %2062 = vmatpush.msra.mxu0 0.0
    %2063 = vmatpush.msra.mxu0 0.0
    %2064 = vmatpush.msra.mxu0 0.0
    %2065 = vmatpush.msra.mxu0 0.0
    %2066 = vmatpush.msra.mxu0 0.0
    %2067 = vmatpush.msra.mxu0 0.0
    %2068 = vmatpush.msra.mxu0 0.0
    %2069 = vmatpush.msra.mxu0 0.0
    %2070 = vmatpush.msra.mxu0 %v1659
    %2071 = vmatpush.msra.mxu0 %v1658
    %2072 = vmatpush.msra.mxu0 %v1657
    %2073 = vmatpush.msra.mxu0 %v1656
    %2074 = vmatmul.f32.gmra.mxu0 %v2056
    %v2075 = vpop.f32.mrf.mxu0
    %v2076 = vadd.f32 0.0, %v2075
    %2077 = vdwg.mxu0
    %v2079 = vrot.slane %v2076, 6
    %v2081 = vadd.f32 %v1650, %v2079
    %v2082 = vxor.u32 %v2081, 2147483648
    %v2083 = vmul.f32 %v2082, 1.442695
    %v2084 = vpow.pop %v2083
    %v2085 = vadd.f32 %v2084, 1.0
    %v2086 = vrcp.pop %v2085
    %v2087 = vmul.f32 %v2085, %v2086
    %v2088 = vsub.f32 1.0, %v2087
    %v2089 = vmul.f32 %v2086, %v2088
    %v2090 = vadd.f32 %v2086, %v2089
    %vm2091 = vweird.f32 %v2085
    %vm2092 = vweird.f32 %v2086
    %vm2093 = vmor %vm2091, %vm2092
    %v2094 = vsel %vm2093, %v2086, %v2090
    %v2095 = vand.u32 2147483647, %v2085
    %vm2096 = vcmp.eq.f32.partialorder %v2095, 8.507059e+37
    %v2097 = vand.u32 %v2085, 2147483648
    %v2098 = vor.u32 1.1754944e-38, %v2097
    %v2099 = vsel %vm2096, %v2098, %v2094
    %v2100 = vmul.f32 1.0, %v2099
    %v2101 = vtanh.pop %v2081
    %v2103 = vrot.slane %v1965, 6
    %2104 = vrot.lane.b32.xlu0 %v2103, 32
    %v2105 = vpop.permute.xlu0 %2104
    %v2107 = vmul.f32 %v2100, %v2105
    %2109 = vrot.lane.b32.xlu0 %v2101, 64
    %v2110 = vpop.permute.xlu0 %2109
    %v2112 = vmul.f32 %v2100, %v2110
    %2114 = vrot.lane.b32.xlu0 %v2112, 32
    %v2115 = vpop.permute.xlu0 %2114
    %v2117 = vadd.f32 %v2107, %v2115
    %v2118 = vtanh.pop %v2117
    %2120 = vrot.lane.b32.xlu0 %v2118, 64
    %v2121 = vpop.permute.xlu0 %2120
    %v2123 = vmul.f32 %v2100, %v2121
    %v2125 = vrot.slane %v2123, 2
    %2126 = vrot.lane.b32.xlu0 %v2125, 32
    %v2127 = vpop.permute.xlu0 %2126
    %v2129 = vsel %vm727, %v2127, %v1959
    %v2131 = vrot.slane %v2117, 2
    %2132 = vrot.lane.b32.xlu0 %v2131, 96
    %v2133 = vpop.permute.xlu0 %2132
    %v2135 = vsel %vm727, %v2133, %v1965
    %v2136 = vsel %vm727, %v2127, 0.0
    %2138 = vrot.lane.b32.xlu0 %v2136, 32
    %v2139 = vpop.permute.xlu0 %2138
    %2141 = vst.msk [vmem:[#allocation3 + $0xa] sm:$0x3] %vm381, %v2139
    %v2143 = vsel %vm162, %v2046, 0
    %2145 = vmatpush.msra.mxu0 0.0
    %2146 = vmatpush.msra.mxu0 0.0
    %2147 = vmatpush.msra.mxu0 0.0
    %2148 = vmatpush.msra.mxu0 0.0
    %2149 = vmatpush.msra.mxu0 0.0
    %2150 = vmatpush.msra.mxu0 0.0
    %2151 = vmatpush.msra.mxu0 0.0
    %2152 = vmatpush.msra.mxu0 0.0
    %2153 = vmatpush.msra.mxu0 0.0
    %2154 = vmatpush.msra.mxu0 0.0
    %2155 = vmatpush.msra.mxu0 0.0
    %2156 = vmatpush.msra.mxu0 0.0
    %2157 = vmatpush.msra.mxu0 %v1655
    %2158 = vmatpush.msra.mxu0 %v1654
    %2159 = vmatpush.msra.mxu0 %v1653
    %2160 = vmatpush.msra.mxu0 %v1652
    %2161 = vmatmul.f32.gmra.mxu0 %v2143
    %v2162 = vpop.f32.mrf.mxu0
    %v2163 = vadd.f32 0.0, %v2162
    %2164 = vdwg.mxu0
    %v2166 = vrot.slane %v2163, 2
    %v2168 = vadd.f32 %v1624, %v2166
    %v2169 = vxor.u32 %v2168, 2147483648
    %v2170 = vmul.f32 %v2169, 1.442695
    %v2171 = vpow.pop %v2170
    %v2172 = vadd.f32 %v2171, 1.0
    %v2173 = vrcp.pop %v2172
    %v2174 = vmul.f32 %v2172, %v2173
    %v2175 = vsub.f32 1.0, %v2174
    %v2176 = vmul.f32 %v2173, %v2175
    %v2177 = vadd.f32 %v2173, %v2176
    %vm2178 = vweird.f32 %v2172
    %vm2179 = vweird.f32 %v2173
    %vm2180 = vmor %vm2178, %vm2179
    %v2181 = vsel %vm2180, %v2173, %v2177
    %v2182 = vand.u32 2147483647, %v2172
    %vm2183 = vcmp.eq.f32.partialorder %v2182, 8.507059e+37
    %v2184 = vand.u32 %v2172, 2147483648
    %v2185 = vor.u32 1.1754944e-38, %v2184
    %v2186 = vsel %vm2183, %v2185, %v2181
    %v2187 = vmul.f32 1.0, %v2186
    %v2188 = vtanh.pop %v2168
    %v2190 = vrot.slane %v2052, 2
    %2191 = vrot.lane.b32.xlu0 %v2190, 32
    %v2192 = vpop.permute.xlu0 %2191
    %v2194 = vmul.f32 %v2187, %v2192
    %2196 = vrot.lane.b32.xlu0 %v2188, 64
    %v2197 = vpop.permute.xlu0 %2196
    %v2199 = vmul.f32 %v2187, %v2197
    %2201 = vrot.lane.b32.xlu0 %v2199, 32
    %v2202 = vpop.permute.xlu0 %2201
    %v2204 = vadd.f32 %v2194, %v2202
    %v2205 = vtanh.pop %v2204
    %2207 = vrot.lane.b32.xlu0 %v2205, 64
    %v2208 = vpop.permute.xlu0 %2207
    %v2210 = vmul.f32 %v2187, %v2208
    %v2212 = vrot.slane %v2210, 6
    %2213 = vrot.lane.b32.xlu0 %v2212, 32
    %v2214 = vpop.permute.xlu0 %2213
    %v2216 = vsel %vm820, %v2214, %v2046
    %v2218 = vrot.slane %v2204, 6
    %2219 = vrot.lane.b32.xlu0 %v2218, 96
    %v2220 = vpop.permute.xlu0 %2219
    %v2222 = vsel %vm820, %v2220, %v2052
    %v2223 = vsel %vm820, %v2214, 0.0
    %2224 = vst.msk [vmem:[#allocation3 + $0x6] sm:$0x3] %vm296, %v2223
    %v2226 = vsel %vm162, %v2129, 0
    %2228 = vmatpush.msra.mxu0 0.0
    %2229 = vmatpush.msra.mxu0 0.0
    %2230 = vmatpush.msra.mxu0 0.0
    %2231 = vmatpush.msra.mxu0 0.0
    %2232 = vmatpush.msra.mxu0 0.0
    %2233 = vmatpush.msra.mxu0 0.0
    %2234 = vmatpush.msra.mxu0 0.0
    %2235 = vmatpush.msra.mxu0 0.0
    %2236 = vmatpush.msra.mxu0 0.0
    %2237 = vmatpush.msra.mxu0 0.0
    %2238 = vmatpush.msra.mxu0 0.0
    %2239 = vmatpush.msra.mxu0 0.0
    %2240 = vmatpush.msra.mxu0 %v1659
    %2241 = vmatpush.msra.mxu0 %v1658
    %2242 = vmatpush.msra.mxu0 %v1657
    %2243 = vmatpush.msra.mxu0 %v1656
    %2244 = vmatmul.f32.gmra.mxu0 %v2226
    %v2245 = vpop.f32.mrf.mxu0
    %v2246 = vadd.f32 0.0, %v2245
    %2247 = vdwg.mxu0
    %v2248 = vadd.f32 %v1650, %v2246
    %v2249 = vxor.u32 %v2248, 2147483648
    %v2250 = vmul.f32 %v2249, 1.442695
    %v2251 = vpow.pop %v2250
    %v2252 = vadd.f32 %v2251, 1.0
    %v2253 = vrcp.pop %v2252
    %v2254 = vmul.f32 %v2252, %v2253
    %v2255 = vsub.f32 1.0, %v2254
    %v2256 = vmul.f32 %v2253, %v2255
    %v2257 = vadd.f32 %v2253, %v2256
    %vm2258 = vweird.f32 %v2252
    %vm2259 = vweird.f32 %v2253
    %vm2260 = vmor %vm2258, %vm2259
    %v2261 = vsel %vm2260, %v2253, %v2257
    %v2262 = vand.u32 2147483647, %v2252
    %vm2263 = vcmp.eq.f32.partialorder %v2262, 8.507059e+37
    %v2264 = vand.u32 %v2252, 2147483648
    %v2265 = vor.u32 1.1754944e-38, %v2264
    %v2266 = vsel %vm2263, %v2265, %v2261
    %v2267 = vmul.f32 1.0, %v2266
    %v2268 = vtanh.pop %v2248
    %2270 = vrot.lane.b32.xlu0 %v2135, 32
    %v2271 = vpop.permute.xlu0 %2270
    %v2273 = vmul.f32 %v2267, %v2271
    %2275 = vrot.lane.b32.xlu0 %v2268, 64
    %v2276 = vpop.permute.xlu0 %2275
    %v2278 = vmul.f32 %v2267, %v2276
    %2280 = vrot.lane.b32.xlu0 %v2278, 32
    %v2281 = vpop.permute.xlu0 %2280
    %v2283 = vadd.f32 %v2273, %v2281
    %v2284 = vtanh.pop %v2283
    %2286 = vrot.lane.b32.xlu0 %v2284, 64
    %v2287 = vpop.permute.xlu0 %2286
    %v2289 = vmul.f32 %v2267, %v2287
    %2290 = vrot.lane.b32.xlu0 %v2129, 96
    %v2291 = vpop.permute.xlu0 %2290
    %v2293 = vsel %vm905, %v2289, %v2291
    %v2294 = vsel %vm905, %v2283, %v2271
    %v2295 = vsel %vm905, %v2289, 0.0
    %2297 = vrot.lane.b32.xlu0 %v2295, 64
    %v2298 = vpop.permute.xlu0 %2297
    %2300 = vst.msk [vmem:[#allocation3 + $0x8] sm:$0x3] %vm381, %v2298
    %v2302 = vsel %vm162, %v2216, 0
    %2304 = vmatpush.msra.mxu0 0.0
    %2305 = vmatpush.msra.mxu0 0.0
    %2306 = vmatpush.msra.mxu0 0.0
    %2307 = vmatpush.msra.mxu0 0.0
    %2308 = vmatpush.msra.mxu0 0.0
    %2309 = vmatpush.msra.mxu0 0.0
    %2310 = vmatpush.msra.mxu0 0.0
    %2311 = vmatpush.msra.mxu0 0.0
    %2312 = vmatpush.msra.mxu0 0.0
    %2313 = vmatpush.msra.mxu0 0.0
    %2314 = vmatpush.msra.mxu0 0.0
    %2315 = vmatpush.msra.mxu0 0.0
    %2316 = vmatpush.msra.mxu0 %v1655
    %2317 = vmatpush.msra.mxu0 %v1654
    %2318 = vmatpush.msra.mxu0 %v1653
    %2319 = vmatpush.msra.mxu0 %v1652
    %2320 = vmatmul.f32.gmra.mxu0 %v2302
    %v2321 = vpop.f32.mrf.mxu0
    %v2322 = vadd.f32 0.0, %v2321
    %2323 = vdwg.mxu0
    %v2324 = vadd.f32 %v1627, %v2322
    %v2325 = vxor.u32 %v2324, 2147483648
    %v2326 = vmul.f32 %v2325, 1.442695
    %v2327 = vpow.pop %v2326
    %v2328 = vadd.f32 %v2327, 1.0
    %v2329 = vrcp.pop %v2328
    %v2330 = vmul.f32 %v2328, %v2329
    %v2331 = vsub.f32 1.0, %v2330
    %v2332 = vmul.f32 %v2329, %v2331
    %v2333 = vadd.f32 %v2329, %v2332
    %vm2334 = vweird.f32 %v2328
    %vm2335 = vweird.f32 %v2329
    %vm2336 = vmor %vm2334, %vm2335
    %v2337 = vsel %vm2336, %v2329, %v2333
    %v2338 = vand.u32 2147483647, %v2328
    %vm2339 = vcmp.eq.f32.partialorder %v2338, 8.507059e+37
    %v2340 = vand.u32 %v2328, 2147483648
    %v2341 = vor.u32 1.1754944e-38, %v2340
    %v2342 = vsel %vm2339, %v2341, %v2337
    %v2343 = vmul.f32 1.0, %v2342
    %v2344 = vtanh.pop %v2324
    %2346 = vrot.lane.b32.xlu0 %v2222, 32
    %v2347 = vpop.permute.xlu0 %2346
    %v2349 = vmul.f32 %v2343, %v2347
    %2351 = vrot.lane.b32.xlu0 %v2344, 64
    %v2352 = vpop.permute.xlu0 %2351
    %v2354 = vmul.f32 %v2343, %v2352
    %2356 = vrot.lane.b32.xlu0 %v2354, 32
    %v2357 = vpop.permute.xlu0 %2356
    %v2359 = vadd.f32 %v2349, %v2357
    %v2360 = vtanh.pop %v2359
    %2362 = vrot.lane.b32.xlu0 %v2360, 64
    %v2363 = vpop.permute.xlu0 %2362
    %v2365 = vmul.f32 %v2343, %v2363
    %2366 = vrot.lane.b32.xlu0 %v2216, 96
    %v2367 = vpop.permute.xlu0 %2366
    %v2369 = vsel %vm905, %v2365, %v2367
    %v2370 = vsel %vm905, %v2359, %v2347
    %v2371 = vsel %vm905, %v2365, 0.0
    %2373 = vrot.lane.b32.xlu0 %v2371, 32
    %v2374 = vpop.permute.xlu0 %2373
    %2376 = vst.msk [vmem:[#allocation3 + $0x8] sm:$0x3] %vm296, %v2374
    %2378 = vrot.lane.b32.xlu0 %v2293, 32
    %v2379 = vpop.permute.xlu0 %2378
    %v2380 = vsel %vm162, %v2379, 0
    %2382 = vmatpush.msra.mxu0 0.0
    %2383 = vmatpush.msra.mxu0 0.0
    %2384 = vmatpush.msra.mxu0 0.0
    %2385 = vmatpush.msra.mxu0 0.0
    %2386 = vmatpush.msra.mxu0 0.0
    %2387 = vmatpush.msra.mxu0 0.0
    %2388 = vmatpush.msra.mxu0 0.0
    %2389 = vmatpush.msra.mxu0 0.0
    %2390 = vmatpush.msra.mxu0 0.0
    %2391 = vmatpush.msra.mxu0 0.0
    %2392 = vmatpush.msra.mxu0 0.0
    %2393 = vmatpush.msra.mxu0 0.0
    %2394 = vmatpush.msra.mxu0 %v1659
    %2395 = vmatpush.msra.mxu0 %v1658
    %2396 = vmatpush.msra.mxu0 %v1657
    %2397 = vmatpush.msra.mxu0 %v1656
    %2398 = vmatmul.f32.gmra.mxu0 %v2380
    %v2399 = vpop.f32.mrf.mxu0
    %v2400 = vadd.f32 0.0, %v2399
    %2401 = vdwg.mxu0
    %v2403 = vrot.slane %v2400, 2
    %v2405 = vadd.f32 %v1647, %v2403
    %v2406 = vxor.u32 %v2405, 2147483648
    %v2407 = vmul.f32 %v2406, 1.442695
    %v2408 = vpow.pop %v2407
    %v2409 = vadd.f32 %v2408, 1.0
    %v2410 = vrcp.pop %v2409
    %v2411 = vmul.f32 %v2409, %v2410
    %v2412 = vsub.f32 1.0, %v2411
    %v2413 = vmul.f32 %v2410, %v2412
    %v2414 = vadd.f32 %v2410, %v2413
    %vm2415 = vweird.f32 %v2409
    %vm2416 = vweird.f32 %v2410
    %vm2417 = vmor %vm2415, %vm2416
    %v2418 = vsel %vm2417, %v2410, %v2414
    %v2419 = vand.u32 2147483647, %v2409
    %vm2420 = vcmp.eq.f32.partialorder %v2419, 8.507059e+37
    %v2421 = vand.u32 %v2409, 2147483648
    %v2422 = vor.u32 1.1754944e-38, %v2421
    %v2423 = vsel %vm2420, %v2422, %v2418
    %v2424 = vmul.f32 1.0, %v2423
    %v2425 = vtanh.pop %v2405
    %v2427 = vrot.slane %v2294, 2
    %v2429 = vmul.f32 %v2424, %v2427
    %2431 = vrot.lane.b32.xlu0 %v2425, 64
    %v2432 = vpop.permute.xlu0 %2431
    %v2434 = vmul.f32 %v2424, %v2432
    %2436 = vrot.lane.b32.xlu0 %v2434, 32
    %v2437 = vpop.permute.xlu0 %2436
    %v2439 = vadd.f32 %v2429, %v2437
    %v2440 = vtanh.pop %v2439
    %2442 = vrot.lane.b32.xlu0 %v2440, 64
    %v2443 = vpop.permute.xlu0 %2442
    %v2445 = vmul.f32 %v2424, %v2443
    %v2447 = vrot.slane %v2445, 6
    %2448 = vrot.lane.b32.xlu0 %v2447, 32
    %v2449 = vpop.permute.xlu0 %2448
    %v2452 = vsel %vm820, %v2449, %v2379
    %v2454 = vrot.slane %v2439, 6
    %2455 = vrot.lane.b32.xlu0 %v2454, 96
    %v2456 = vpop.permute.xlu0 %2455
    %2458 = vrot.lane.b32.xlu0 %v2294, 96
    %v2459 = vpop.permute.xlu0 %2458
    %v2461 = vsel %vm820, %v2456, %v2459
    %v2462 = vsel %vm820, %v2449, 0.0
    %2464 = vrot.lane.b32.xlu0 %v2462, 32
    %v2465 = vpop.permute.xlu0 %2464
    %2467 = vst.msk [vmem:[#allocation3 + $0x6] sm:$0x3] %vm381, %v2465
    %2469 = vrot.lane.b32.xlu0 %v2369, 32
    %v2470 = vpop.permute.xlu0 %2469
    %v2471 = vsel %vm162, %v2470, 0
    %2473 = vmatpush.msra.mxu0 0.0
    %2474 = vmatpush.msra.mxu0 0.0
    %2475 = vmatpush.msra.mxu0 0.0
    %2476 = vmatpush.msra.mxu0 0.0
    %2477 = vmatpush.msra.mxu0 0.0
    %2478 = vmatpush.msra.mxu0 0.0
    %2479 = vmatpush.msra.mxu0 0.0
    %2480 = vmatpush.msra.mxu0 0.0
    %2481 = vmatpush.msra.mxu0 0.0
    %2482 = vmatpush.msra.mxu0 0.0
    %2483 = vmatpush.msra.mxu0 0.0
    %2484 = vmatpush.msra.mxu0 0.0
    %2485 = vmatpush.msra.mxu0 %v1655
    %2486 = vmatpush.msra.mxu0 %v1654
    %2487 = vmatpush.msra.mxu0 %v1653
    %2488 = vmatpush.msra.mxu0 %v1652
    %2489 = vmatmul.f32.gmra.mxu0 %v2471
    %v2490 = vpop.f32.mrf.mxu0
    %v2491 = vadd.f32 0.0, %v2490
    %2492 = vdwg.mxu0
    %v2494 = vrot.slane %v2491, 6
    %v2496 = vadd.f32 %v1627, %v2494
    %v2497 = vxor.u32 %v2496, 2147483648
    %v2498 = vmul.f32 %v2497, 1.442695
    %v2499 = vpow.pop %v2498
    %v2500 = vadd.f32 %v2499, 1.0
    %v2501 = vrcp.pop %v2500
    %v2502 = vmul.f32 %v2500, %v2501
    %v2503 = vsub.f32 1.0, %v2502
    %v2504 = vmul.f32 %v2501, %v2503
    %v2505 = vadd.f32 %v2501, %v2504
    %vm2506 = vweird.f32 %v2500
    %vm2507 = vweird.f32 %v2501
    %vm2508 = vmor %vm2506, %vm2507
    %v2509 = vsel %vm2508, %v2501, %v2505
    %v2510 = vand.u32 2147483647, %v2500
    %vm2511 = vcmp.eq.f32.partialorder %v2510, 8.507059e+37
    %v2512 = vand.u32 %v2500, 2147483648
    %v2513 = vor.u32 1.1754944e-38, %v2512
    %v2514 = vsel %vm2511, %v2513, %v2509
    %v2515 = vmul.f32 1.0, %v2514
    %v2516 = vtanh.pop %v2496
    %v2518 = vrot.slane %v2370, 6
    %v2520 = vmul.f32 %v2515, %v2518
    %2522 = vrot.lane.b32.xlu0 %v2516, 64
    %v2523 = vpop.permute.xlu0 %2522
    %v2525 = vmul.f32 %v2515, %v2523
    %2527 = vrot.lane.b32.xlu0 %v2525, 32
    %v2528 = vpop.permute.xlu0 %2527
    %v2530 = vadd.f32 %v2520, %v2528
    %v2531 = vtanh.pop %v2530
    %2533 = vrot.lane.b32.xlu0 %v2531, 64
    %v2534 = vpop.permute.xlu0 %2533
    %v2536 = vmul.f32 %v2515, %v2534
    %v2538 = vrot.slane %v2536, 2
    %2539 = vrot.lane.b32.xlu0 %v2538, 32
    %v2540 = vpop.permute.xlu0 %2539
    %v2543 = vsel %vm727, %v2540, %v2470
    %v2545 = vrot.slane %v2530, 2
    %2546 = vrot.lane.b32.xlu0 %v2545, 96
    %v2547 = vpop.permute.xlu0 %2546
    %2549 = vrot.lane.b32.xlu0 %v2370, 96
    %v2550 = vpop.permute.xlu0 %2549
    %v2552 = vsel %vm727, %v2547, %v2550
    %v2553 = vsel %vm727, %v2540, 0.0
    %2554 = vst.msk [vmem:[#allocation3 + $0xa] sm:$0x3] %vm296, %v2553
    %v2556 = vsel %vm162, %v2452, 0
    %2558 = vmatpush.msra.mxu0 0.0
    %2559 = vmatpush.msra.mxu0 0.0
    %2560 = vmatpush.msra.mxu0 0.0
    %2561 = vmatpush.msra.mxu0 0.0
    %2562 = vmatpush.msra.mxu0 0.0
    %2563 = vmatpush.msra.mxu0 0.0
    %2564 = vmatpush.msra.mxu0 0.0
    %2565 = vmatpush.msra.mxu0 0.0
    %2566 = vmatpush.msra.mxu0 0.0
    %2567 = vmatpush.msra.mxu0 0.0
    %2568 = vmatpush.msra.mxu0 0.0
    %2569 = vmatpush.msra.mxu0 0.0
    %2570 = vmatpush.msra.mxu0 %v1659
    %2571 = vmatpush.msra.mxu0 %v1658
    %2572 = vmatpush.msra.mxu0 %v1657
    %2573 = vmatpush.msra.mxu0 %v1656
    %2574 = vmatmul.f32.gmra.mxu0 %v2556
    %v2575 = vpop.f32.mrf.mxu0
    %v2576 = vadd.f32 0.0, %v2575
    %2577 = vdwg.mxu0
    %v2579 = vrot.slane %v2576, 4
    %v2581 = vadd.f32 %v1647, %v2579
    %v2582 = vxor.u32 %v2581, 2147483648
    %v2583 = vmul.f32 %v2582, 1.442695
    %v2584 = vpow.pop %v2583
    %v2585 = vadd.f32 %v2584, 1.0
    %v2586 = vrcp.pop %v2585
    %v2587 = vmul.f32 %v2585, %v2586
    %v2588 = vsub.f32 1.0, %v2587
    %v2589 = vmul.f32 %v2586, %v2588
    %v2590 = vadd.f32 %v2586, %v2589
    %vm2591 = vweird.f32 %v2585
    %vm2592 = vweird.f32 %v2586
    %vm2593 = vmor %vm2591, %vm2592
    %v2594 = vsel %vm2593, %v2586, %v2590
    %v2595 = vand.u32 2147483647, %v2585
    %vm2596 = vcmp.eq.f32.partialorder %v2595, 8.507059e+37
    %v2597 = vand.u32 %v2585, 2147483648
    %v2598 = vor.u32 1.1754944e-38, %v2597
    %v2599 = vsel %vm2596, %v2598, %v2594
    %v2600 = vmul.f32 1.0, %v2599
    %v2601 = vtanh.pop %v2581
    %v2603 = vrot.slane %v2461, 4
    %2604 = vrot.lane.b32.xlu0 %v2603, 32
    %v2605 = vpop.permute.xlu0 %2604
    %v2607 = vmul.f32 %v2600, %v2605
    %2609 = vrot.lane.b32.xlu0 %v2601, 64
    %v2610 = vpop.permute.xlu0 %2609
    %v2612 = vmul.f32 %v2600, %v2610
    %2614 = vrot.lane.b32.xlu0 %v2612, 32
    %v2615 = vpop.permute.xlu0 %2614
    %v2617 = vadd.f32 %v2607, %v2615
    %v2618 = vtanh.pop %v2617
    %2620 = vrot.lane.b32.xlu0 %v2618, 64
    %v2621 = vpop.permute.xlu0 %2620
    %v2623 = vmul.f32 %v2600, %v2621
    %v2625 = vrot.slane %v2623, 4
    %2626 = vrot.lane.b32.xlu0 %v2625, 32
    %v2627 = vpop.permute.xlu0 %2626
    %v2629 = vsel %vm638, %v2627, %v2452
    %v2631 = vrot.slane %v2617, 4
    %2632 = vrot.lane.b32.xlu0 %v2631, 96
    %v2633 = vpop.permute.xlu0 %2632
    %v2635 = vsel %vm638, %v2633, %v2461
    %v2636 = vsel %vm638, %v2627, 0.0
    %2638 = vrot.lane.b32.xlu0 %v2636, 32
    %v2639 = vpop.permute.xlu0 %2638
    %2641 = vst.msk [vmem:[#allocation3 + $0x4] sm:$0x3] %vm381, %v2639
    %v2643 = vsel %vm162, %v2543, 0
    %2645 = vmatpush.msra.mxu0 0.0
    %2646 = vmatpush.msra.mxu0 0.0
    %2647 = vmatpush.msra.mxu0 0.0
    %2648 = vmatpush.msra.mxu0 0.0
    %2649 = vmatpush.msra.mxu0 0.0
    %2650 = vmatpush.msra.mxu0 0.0
    %2651 = vmatpush.msra.mxu0 0.0
    %2652 = vmatpush.msra.mxu0 0.0
    %2653 = vmatpush.msra.mxu0 0.0
    %2654 = vmatpush.msra.mxu0 0.0
    %2655 = vmatpush.msra.mxu0 0.0
    %2656 = vmatpush.msra.mxu0 0.0
    %2657 = vmatpush.msra.mxu0 %v1655
    %2658 = vmatpush.msra.mxu0 %v1654
    %2659 = vmatpush.msra.mxu0 %v1653
    %2660 = vmatpush.msra.mxu0 %v1652
    %2661 = vmatmul.f32.gmra.mxu0 %v2643
    %v2662 = vpop.f32.mrf.mxu0
    %v2663 = vadd.f32 0.0, %v2662
    %2664 = vdwg.mxu0
    %v2666 = vrot.slane %v2663, 4
    %v2668 = vadd.f32 %v1627, %v2666
    %v2669 = vxor.u32 %v2668, 2147483648
    %v2670 = vmul.f32 %v2669, 1.442695
    %v2671 = vpow.pop %v2670
    %v2672 = vadd.f32 %v2671, 1.0
    %v2673 = vrcp.pop %v2672
    %v2674 = vmul.f32 %v2672, %v2673
    %v2675 = vsub.f32 1.0, %v2674
    %v2676 = vmul.f32 %v2673, %v2675
    %v2677 = vadd.f32 %v2673, %v2676
    %vm2678 = vweird.f32 %v2672
    %vm2679 = vweird.f32 %v2673
    %vm2680 = vmor %vm2678, %vm2679
    %v2681 = vsel %vm2680, %v2673, %v2677
    %v2682 = vand.u32 2147483647, %v2672
    %vm2683 = vcmp.eq.f32.partialorder %v2682, 8.507059e+37
    %v2684 = vand.u32 %v2672, 2147483648
    %v2685 = vor.u32 1.1754944e-38, %v2684
    %v2686 = vsel %vm2683, %v2685, %v2681
    %v2687 = vmul.f32 1.0, %v2686
    %v2688 = vtanh.pop %v2668
    %v2690 = vrot.slane %v2552, 4
    %2691 = vrot.lane.b32.xlu0 %v2690, 32
    %v2692 = vpop.permute.xlu0 %2691
    %v2694 = vmul.f32 %v2687, %v2692
    %2696 = vrot.lane.b32.xlu0 %v2688, 64
    %v2697 = vpop.permute.xlu0 %2696
    %v2699 = vmul.f32 %v2687, %v2697
    %2701 = vrot.lane.b32.xlu0 %v2699, 32
    %v2702 = vpop.permute.xlu0 %2701
    %v2704 = vadd.f32 %v2694, %v2702
    %v2705 = vtanh.pop %v2704
    %2707 = vrot.lane.b32.xlu0 %v2705, 64
    %v2708 = vpop.permute.xlu0 %2707
    %v2710 = vmul.f32 %v2687, %v2708
    %v2712 = vrot.slane %v2710, 4
    %2713 = vrot.lane.b32.xlu0 %v2712, 32
    %v2714 = vpop.permute.xlu0 %2713
    %v2716 = vsel %vm545, %v2714, %v2543
    %v2718 = vrot.slane %v2704, 4
    %2719 = vrot.lane.b32.xlu0 %v2718, 96
    %v2720 = vpop.permute.xlu0 %2719
    %v2722 = vsel %vm545, %v2720, %v2552
    %v2723 = vsel %vm545, %v2714, 0.0
    %2724 = vst.msk [vmem:[#allocation3 + $0xc] sm:$0x3] %vm296, %v2723
    %v2726 = vsel %vm162, %v2629, 0
    %2728 = vmatpush.msra.mxu0 0.0
    %2729 = vmatpush.msra.mxu0 0.0
    %2730 = vmatpush.msra.mxu0 0.0
    %2731 = vmatpush.msra.mxu0 0.0
    %2732 = vmatpush.msra.mxu0 0.0
    %2733 = vmatpush.msra.mxu0 0.0
    %2734 = vmatpush.msra.mxu0 0.0
    %2735 = vmatpush.msra.mxu0 0.0
    %2736 = vmatpush.msra.mxu0 0.0
    %2737 = vmatpush.msra.mxu0 0.0
    %2738 = vmatpush.msra.mxu0 0.0
    %2739 = vmatpush.msra.mxu0 0.0
    %2740 = vmatpush.msra.mxu0 %v1659
    %2741 = vmatpush.msra.mxu0 %v1658
    %2742 = vmatpush.msra.mxu0 %v1657
    %2743 = vmatpush.msra.mxu0 %v1656
    %2744 = vmatmul.f32.gmra.mxu0 %v2726
    %v2745 = vpop.f32.mrf.mxu0
    %v2746 = vadd.f32 0.0, %v2745
    %2747 = vdwg.mxu0
    %v2749 = vrot.slane %v2746, 6
    %v2751 = vadd.f32 %v1647, %v2749
    %v2752 = vxor.u32 %v2751, 2147483648
    %v2753 = vmul.f32 %v2752, 1.442695
    %v2754 = vpow.pop %v2753
    %v2755 = vadd.f32 %v2754, 1.0
    %v2756 = vrcp.pop %v2755
    %v2757 = vmul.f32 %v2755, %v2756
    %v2758 = vsub.f32 1.0, %v2757
    %v2759 = vmul.f32 %v2756, %v2758
    %v2760 = vadd.f32 %v2756, %v2759
    %vm2761 = vweird.f32 %v2755
    %vm2762 = vweird.f32 %v2756
    %vm2763 = vmor %vm2761, %vm2762
    %v2764 = vsel %vm2763, %v2756, %v2760
    %v2765 = vand.u32 2147483647, %v2755
    %vm2766 = vcmp.eq.f32.partialorder %v2765, 8.507059e+37
    %v2767 = vand.u32 %v2755, 2147483648
    %v2768 = vor.u32 1.1754944e-38, %v2767
    %v2769 = vsel %vm2766, %v2768, %v2764
    %v2770 = vmul.f32 1.0, %v2769
    %v2771 = vtanh.pop %v2751
    %v2773 = vrot.slane %v2635, 6
    %2774 = vrot.lane.b32.xlu0 %v2773, 32
    %v2775 = vpop.permute.xlu0 %2774
    %v2777 = vmul.f32 %v2770, %v2775
    %2779 = vrot.lane.b32.xlu0 %v2771, 64
    %v2780 = vpop.permute.xlu0 %2779
    %v2782 = vmul.f32 %v2770, %v2780
    %2784 = vrot.lane.b32.xlu0 %v2782, 32
    %v2785 = vpop.permute.xlu0 %2784
    %v2787 = vadd.f32 %v2777, %v2785
    %v2788 = vtanh.pop %v2787
    %2790 = vrot.lane.b32.xlu0 %v2788, 64
    %v2791 = vpop.permute.xlu0 %2790
    %v2793 = vmul.f32 %v2770, %v2791
    %v2795 = vrot.slane %v2793, 2
    %2796 = vrot.lane.b32.xlu0 %v2795, 32
    %v2797 = vpop.permute.xlu0 %2796
    %v2799 = vsel %vm454, %v2797, %v2629
    %v2801 = vrot.slane %v2787, 2
    %2802 = vrot.lane.b32.xlu0 %v2801, 96
    %v2803 = vpop.permute.xlu0 %2802
    %v2805 = vsel %vm454, %v2803, %v2635
    %v2806 = vsel %vm454, %v2797, 0.0
    %2808 = vrot.lane.b32.xlu0 %v2806, 32
    %v2809 = vpop.permute.xlu0 %2808
    %2811 = vst.msk [vmem:[#allocation3 + $0x2] sm:$0x3] %vm381, %v2809
    %v2813 = vsel %vm162, %v2716, 0
    %2815 = vmatpush.msra.mxu0 0.0
    %2816 = vmatpush.msra.mxu0 0.0
    %2817 = vmatpush.msra.mxu0 0.0
    %2818 = vmatpush.msra.mxu0 0.0
    %2819 = vmatpush.msra.mxu0 0.0
    %2820 = vmatpush.msra.mxu0 0.0
    %2821 = vmatpush.msra.mxu0 0.0
    %2822 = vmatpush.msra.mxu0 0.0
    %2823 = vmatpush.msra.mxu0 0.0
    %2824 = vmatpush.msra.mxu0 0.0
    %2825 = vmatpush.msra.mxu0 0.0
    %2826 = vmatpush.msra.mxu0 0.0
    %2827 = vmatpush.msra.mxu0 %v1655
    %2828 = vmatpush.msra.mxu0 %v1654
    %2829 = vmatpush.msra.mxu0 %v1653
    %2830 = vmatpush.msra.mxu0 %v1652
    %2831 = vmatmul.f32.gmra.mxu0 %v2813
    %v2832 = vpop.f32.mrf.mxu0
    %v2833 = vadd.f32 0.0, %v2832
    %2834 = vdwg.mxu0
    %v2836 = vrot.slane %v2833, 2
    %v2838 = vadd.f32 %v1627, %v2836
    %v2839 = vxor.u32 %v2838, 2147483648
    %v2840 = vmul.f32 %v2839, 1.442695
    %v2841 = vpow.pop %v2840
    %v2842 = vadd.f32 %v2841, 1.0
    %v2843 = vrcp.pop %v2842
    %v2844 = vmul.f32 %v2842, %v2843
    %v2845 = vsub.f32 1.0, %v2844
    %v2846 = vmul.f32 %v2843, %v2845
    %v2847 = vadd.f32 %v2843, %v2846
    %vm2848 = vweird.f32 %v2842
    %vm2849 = vweird.f32 %v2843
    %vm2850 = vmor %vm2848, %vm2849
    %v2851 = vsel %vm2850, %v2843, %v2847
    %v2852 = vand.u32 2147483647, %v2842
    %vm2853 = vcmp.eq.f32.partialorder %v2852, 8.507059e+37
    %v2854 = vand.u32 %v2842, 2147483648
    %v2855 = vor.u32 1.1754944e-38, %v2854
    %v2856 = vsel %vm2853, %v2855, %v2851
    %v2857 = vmul.f32 1.0, %v2856
    %v2858 = vtanh.pop %v2838
    %v2860 = vrot.slane %v2722, 2
    %2861 = vrot.lane.b32.xlu0 %v2860, 32
    %v2862 = vpop.permute.xlu0 %2861
    %v2864 = vmul.f32 %v2857, %v2862
    %2866 = vrot.lane.b32.xlu0 %v2858, 64
    %v2867 = vpop.permute.xlu0 %2866
    %v2869 = vmul.f32 %v2857, %v2867
    %2871 = vrot.lane.b32.xlu0 %v2869, 32
    %v2872 = vpop.permute.xlu0 %2871
    %v2874 = vadd.f32 %v2864, %v2872
    %v2875 = vtanh.pop %v2874
    %2877 = vrot.lane.b32.xlu0 %v2875, 64
    %v2878 = vpop.permute.xlu0 %2877
    %v2880 = vmul.f32 %v2857, %v2878
    %v2882 = vrot.slane %v2880, 6
    %2883 = vrot.lane.b32.xlu0 %v2882, 32
    %v2884 = vpop.permute.xlu0 %2883
    %v2886 = vsel %vm364, %v2884, 0.0
    %2887 = vst.msk [vmem:[#allocation3 + $0xe] sm:$0x3] %vm296, %v2886
    %v2889 = vsel %vm162, %v2799, 0
    %2891 = vmatpush.msra.mxu0 0.0
    %2892 = vmatpush.msra.mxu0 0.0
    %2893 = vmatpush.msra.mxu0 0.0
    %2894 = vmatpush.msra.mxu0 0.0
    %2895 = vmatpush.msra.mxu0 0.0
    %2896 = vmatpush.msra.mxu0 0.0
    %2897 = vmatpush.msra.mxu0 0.0
    %2898 = vmatpush.msra.mxu0 0.0
    %2899 = vmatpush.msra.mxu0 0.0
    %2900 = vmatpush.msra.mxu0 0.0
    %2901 = vmatpush.msra.mxu0 0.0
    %2902 = vmatpush.msra.mxu0 0.0
    %2903 = vmatpush.msra.mxu0 %v1659
    %2904 = vmatpush.msra.mxu0 %v1658
    %2905 = vmatpush.msra.mxu0 %v1657
    %2906 = vmatpush.msra.mxu0 %v1656
    %2907 = vmatmul.f32.gmra.mxu0 %v2889
    %v2908 = vpop.f32.mrf.mxu0
    %v2909 = vadd.f32 0.0, %v2908
    %2910 = vdwg.mxu0
    %v2911 = vadd.f32 %v1647, %v2909
    %v2912 = vxor.u32 %v2911, 2147483648
    %v2913 = vmul.f32 %v2912, 1.442695
    %v2914 = vpow.pop %v2913
    %v2915 = vadd.f32 %v2914, 1.0
    %v2916 = vrcp.pop %v2915
    %v2917 = vmul.f32 %v2915, %v2916
    %v2918 = vsub.f32 1.0, %v2917
    %v2919 = vmul.f32 %v2916, %v2918
    %v2920 = vadd.f32 %v2916, %v2919
    %vm2921 = vweird.f32 %v2915
    %vm2922 = vweird.f32 %v2916
    %vm2923 = vmor %vm2921, %vm2922
    %v2924 = vsel %vm2923, %v2916, %v2920
    %v2925 = vand.u32 2147483647, %v2915
    %vm2926 = vcmp.eq.f32.partialorder %v2925, 8.507059e+37
    %v2927 = vand.u32 %v2915, 2147483648
    %v2928 = vor.u32 1.1754944e-38, %v2927
    %v2929 = vsel %vm2926, %v2928, %v2924
    %v2930 = vmul.f32 1.0, %v2929
    %v2931 = vtanh.pop %v2911
    %2933 = vrot.lane.b32.xlu0 %v2805, 32
    %v2934 = vpop.permute.xlu0 %2933
    %v2936 = vmul.f32 %v2930, %v2934
    %2938 = vrot.lane.b32.xlu0 %v2931, 64
    %v2939 = vpop.permute.xlu0 %2938
    %v2941 = vmul.f32 %v2930, %v2939
    %2943 = vrot.lane.b32.xlu0 %v2941, 32
    %v2944 = vpop.permute.xlu0 %2943
    %v2946 = vadd.f32 %v2936, %v2944
    %v2947 = vtanh.pop %v2946
    %2949 = vrot.lane.b32.xlu0 %v2947, 64
    %v2950 = vpop.permute.xlu0 %2949
    %v2952 = vmul.f32 %v2930, %v2950
    %v2953 = vsel %vm289, %v2952, 0.0
    %2955 = vrot.lane.b32.xlu0 %v2953, 64
    %v2956 = vpop.permute.xlu0 %2955
    %2958 = vst.msk [vmem:[#allocation3] sm:$0x3] %vm381, %v2956
    %v2959 = vld [vmem:[#allocation3] sm:$0xff]
    %v2960 = vld [vmem:[#allocation3 + $0x8] sm:$0xff]
    %v2961 = vld [vmem:[%s10] sm:$0xff]
    %v2962 = vld [vmem:[%s10 + $0x8] sm:$0xff]
    %v2963 = vld [vmem:[%s10 + $0x10] sm:$0xff]
    %v2964 = vld [vmem:[%s10 + $0x18] sm:$0xff]
    %v2965 = vld [vmem:[%s10 + $0x20] sm:$0xff]
    %v2966 = vld [vmem:[%s10 + $0x28] sm:$0xff]
    %v2967 = vld [vmem:[%s10 + $0x30] sm:$0xff]
    %v2968 = vld [vmem:[%s10 + $0x38] sm:$0xff]
    %v2969 = vld [vmem:[%s11] sm:$0x1]
    %v2971 = vperm.slane %v2969, 0
    %v2974 = vsel %vm1599, %v2959, 0
    %v2977 = vsel %vm1599, %v2960, 0
    %2979 = vmatpush.msra.mxu0 0.0
    %2980 = vmatpush.msra.mxu0 0.0
    %2981 = vmatpush.msra.mxu0 0.0
    %2982 = vmatpush.msra.mxu0 0.0
    %2983 = vmatpush.msra.mxu0 0.0
    %2984 = vmatpush.msra.mxu0 0.0
    %2985 = vmatpush.msra.mxu0 0.0
    %2986 = vmatpush.msra.mxu0 0.0
    %2987 = vmatpush.msra.mxu0 %v2968
    %2988 = vmatpush.msra.mxu0 %v2967
    %2989 = vmatpush.msra.mxu0 %v2966
    %2990 = vmatpush.msra.mxu0 %v2965
    %2991 = vmatpush.msra.mxu0 %v2964
    %2992 = vmatpush.msra.mxu0 %v2963
    %2993 = vmatpush.msra.mxu0 %v2962
    %2994 = vmatpush.msra.mxu0 %v2961
    %2995 = vmatmul.f32.gmra.mxu0 %v2974
    %v2996 = vpop.f32.mrf.mxu0
    %v2997 = vadd.f32 %v2971, %v2996
    %2998 = vmatmul.f32.gmra.mxu0 %v2977
    %v2999 = vpop.f32.mrf.mxu0
    %v3000 = vadd.f32 %v2971, %v2999
    %3001 = vdwg.mxu0
    %3002 = vst.msk [vmem:[#allocation15] sm:$0xff] %vm162, %v2997
    %3003 = vst.msk [vmem:[#allocation15 + $0x8] sm:$0xff] %vm162, %v3000
    %v3004 = vld [vmem:[#allocation13] sm:$0xff]
    %v3005 = vld [vmem:[#allocation13 + $0x8] sm:$0xff]
    %v3006 = vld [vmem:[#allocation13 + $0x10] sm:$0xff]
    %v3007 = vld [vmem:[#allocation13 + $0x18] sm:$0xff]
    %v3008 = vld [vmem:[%s13] sm:$0x1]
    %v3010 = vperm.slane %v3008, 0
    %v3013 = vsel %vm162, %v2997, 0
    %3015 = vmatpush.msra.mxu0 0.0
    %3016 = vmatpush.msra.mxu0 0.0
    %3017 = vmatpush.msra.mxu0 0.0
    %3018 = vmatpush.msra.mxu0 0.0
    %3019 = vmatpush.msra.mxu0 0.0
    %3020 = vmatpush.msra.mxu0 0.0
    %3021 = vmatpush.msra.mxu0 0.0
    %3022 = vmatpush.msra.mxu0 0.0
    %3023 = vmatpush.msra.mxu0 0.0
    %3024 = vmatpush.msra.mxu0 0.0
    %3025 = vmatpush.msra.mxu0 0.0
    %3026 = vmatpush.msra.mxu0 0.0
    %3027 = vmatpush.msra.mxu0 %v3007
    %3028 = vmatpush.msra.mxu0 %v3006
    %3029 = vmatpush.msra.mxu0 %v3005
    %3030 = vmatpush.msra.mxu0 %v3004
    %3031 = vmatmul.f32.gmra.mxu0 %v3013
    %v3032 = vpop.f32.mrf.mxu0
    %v3033 = vadd.f32 %v3010, %v3032
    %3034 = vdwg.mxu0
    %v3035 = vtanh.pop %v3033
    %3036 = vst.msk [vmem:[#allocation16] sm:$0x3] %vm296, %v3035
    // Predicated region
    $region82: #{tpu_custom_call.1} parent=1 // pred_check
      _
    $region83: #{tpu_custom_call.1} parent=1 // pred_check_branch
      %3038 = sbr.rel (0) target = $region85
    $region84: #{tpu_custom_call.1} parent=1 // pred_region
      %3040 = vsyncadd [#allocation6], 0
      %s3041 = sshll.u32 [#allocation15], 4
      %s3042 = int_to_ptr.vmem [resolvable:$true] %s3041
      %s3043 = sshll.u32 %s14, 4
      %s3044 = int_to_ptr.hbm [resolvable:$true] %s3043
      %3049 = dma.vmem_to_hbm [thread:$0]  %s3042, 256, %s3044, [#allocation6], 128, 128, 8
    $region85: #{tpu_custom_call.1} parent=1 // pred_fallthru
      _
    // Predicated region
    $region86: #{tpu_custom_call.1} parent=1 // pred_check
      _
    $region87: #{tpu_custom_call.1} parent=1 // pred_check_branch
      %3051 = sbr.rel (0) target = $region89
    $region88: #{tpu_custom_call.1} parent=1 // pred_region
      %3053 = vsyncadd [#allocation17], 0
      %s3055 = sshll.u32 [#allocation16], 4
      %s3056 = int_to_ptr.vmem [resolvable:$true] %s3055
      %s3057 = sshll.u32 %s15, 4
      %s3058 = int_to_ptr.hbm [resolvable:$true] %s3057
      %3060 = dma.vmem_to_hbm [thread:$0]  %s3056, 32, %s3058, [#allocation17]
    $region89: #{tpu_custom_call.1} parent=1 // pred_fallthru
      _
    // Predicated region
    $region90: #{tpu_custom_call.1} parent=1 // pred_check
      _
    $region91: #{tpu_custom_call.1} parent=1 // pred_check_branch
      %3062 = sbr.rel (0) target = $region93
    $region92: #{tpu_custom_call.1} parent=1 // pred_region
      %3064 = dma.done [#allocation6], 256
    $region93: #{tpu_custom_call.1} parent=1 // pred_fallthru
      _
    // Predicated region
    $region94: #{tpu_custom_call.1} parent=1 // pred_check
      _
    $region95: #{tpu_custom_call.1} parent=1 // pred_check_branch
      %3066 = sbr.rel (0) target = $region97
    $region96: #{tpu_custom_call.1} parent=1 // pred_region
      %3068 = dma.done [#allocation17], 32
    $region97: #{tpu_custom_call.1} parent=1 // pred_fallthru
      _
    %3069 = vsyncpa [#allocation5], 1
    %3070 = vsyncpa [#allocation8], 1
    %3071 = vsyncpa [#allocation11], 1
    %3072 = vsyncpa [#allocation14], 1
    %3073 = vsyncpa [#allocation6], 1
    %3074 = vsyncpa [#allocation17], 1

</llo_original>
